<compile_context>
chip_gen: v6e
topology: v6e:2x2x1
jax: 0.10.0
libtpu: 0.0.40
codegen_flags: <defaults>
</compile_context>

<pallas_src>
import math
import functools

import jax
import jax.numpy as jnp
from jax import lax
from jax.experimental import pallas as pl
from jax.experimental.pallas import tpu as pltpu


_MIB = 1024 * 1024


# ------------------------------- helpers -------------------------------------


def _physical_vmem_bytes():
    """Per-core physical VMEM; conservative fallback if the query is unavailable."""
    try:
        info = pltpu.get_tpu_info()
        cap = getattr(info, "vmem_capacity_bytes", None)
        if cap:
            return int(cap)
    except Exception:
        pass
    return 64 * _MIB  # conservative: v7x per-core VMEM


def _compiler_params(semantics, est_vmem_bytes):
    # Always set the scoped-VMEM limit explicitly (the XLA default is 16 MiB on v5e,
    # 32 MiB on v6e/v7x): request max(estimate, 32 MiB) but never more than ~85% of
    # the physical per-core VMEM (i.e. ~54 MiB on v7x, ~109 MiB on v5e/v6e).
    phys = _physical_vmem_bytes()
    limit = max(32 * _MIB, int(est_vmem_bytes))
    limit = min(limit, int(0.85 * phys))
    return pltpu.CompilerParams(dimension_semantics=semantics,
                                vmem_limit_bytes=limit)


def _pick_tile(n, candidates):
    for c in candidates:
        if n % c == 0:
            return c
    return n


def _rmsnorm(x, gamma, alpha):
    # rms = sqrt(mean(x^2, -1)); y = gamma * x / (rms + 1e-8) + alpha  (exact divide)
    rms = jnp.sqrt(jnp.mean(x * x, axis=-1, keepdims=True))
    return gamma * x / (rms + 1e-8) + alpha


def _gelu_exact(x):
    # Exact-erf GELU semantics (torch nn.GELU() default) via the Abramowitz-Stegun
    # 7.1.26 erf polynomial (|err| < 1.5e-7): uses only exp/abs/where/mul/add so it
    # lowers cleanly on Mosaic regardless of lax.erf support.
    z = x * (1.0 / math.sqrt(2.0))
    a1, a2, a3, a4, a5 = (0.254829592, -0.284496736, 1.421413741,
                          -1.453152027, 1.061405429)
    t = 1.0 / (1.0 + 0.3275911 * jnp.abs(z))
    poly = ((((a5 * t + a4) * t + a3) * t + a2) * t + a1) * t
    erf_abs = 1.0 - poly * jnp.exp(-z * z)
    erf_z = jnp.where(z >= 0.0, erf_abs, -erf_abs)
    return 0.5 * x * (1.0 + erf_z)
    # TODO(synk): optionally switch to tanh-GELU (EUP slot) if the accuracy budget allows.


# ------------------------------- kernels -------------------------------------


def transformer_layers_kernel(n_heads,
                              x_ref, wqkv_ref, bqkv_ref, wproj_ref, bproj_ref,
                              g1_ref, a1_ref, wff1_ref, bff1_ref,
                              wff2_ref, bff2_ref, g2_ref, a2_ref,
                              o_ref, mask_ref):
    """grid = (layer,). o_ref holds the full (B, S, E) residual stream, resident
    across layers.  One AttentionBlock per grid step:
      causal MHA -> proj -> RMSNorm -> MLP(exact GELU) -> RMSNorm.
    """
    layer = pl.program_id(0)
    B, S, E = o_ref.shape
    H = n_heads
    D = E // H
    scale = 1.0 / math.sqrt(D)
    bf16 = jnp.bfloat16
    f32 = jnp.float32

    # First layer: initialize the resident carry and the (S, S) additive causal mask.
    @pl.when(layer == 0)
    def _():
        o_ref[...] = x_ref[...]
        qi = lax.broadcasted_iota(jnp.int32, (S, S), 0)
        ki = lax.broadcasted_iota(jnp.int32, (S, S), 1)
        mask_ref[...] = jnp.where(ki <= qi, 0.0, -1e30).astype(f32)

    x = o_ref[...].reshape(B * S, E)          # (B*S, E) f32 residual stream

    # Fused QKV projection over ALL batch rows at once (MXU-dense), f32 accumulate.
    qkv = jnp.dot(x.astype(bf16), wqkv_ref[...],
                  preferred_element_type=f32) + bqkv_ref[...]
    qkv = qkv.astype(bf16)                     # one cast feeds all three attention matmuls

    mask = mask_ref[...]

    # Attention stays per-sequence (static loop over the small batch); the head
    # split/merge is ONE reshape + (1,0,2) transpose per tensor, not per-head slices.
    # TODO(synk): for long S, replace with an online-softmax (flash) kv-tile loop so
    # the (H, S, S) scores never fully materialize in VMEM.
    y_parts = []
    for b in range(B):
        r0, r1 = b * S, (b + 1) * S
        q = qkv[r0:r1, 0 * E:1 * E].reshape(S, H, D).transpose(1, 0, 2)   # (H,S,D)
        k = qkv[r0:r1, 1 * E:2 * E].reshape(S, H, D).transpose(1, 0, 2)
        v = qkv[r0:r1, 2 * E:3 * E].reshape(S, H, D).transpose(1, 0, 2)

        s = jnp.einsum('hqd,hkd->hqk', q, k,
                       preferred_element_type=f32) * scale                # (H,S,S) f32
        s = s + mask[None, :, :]
        s = s - jnp.max(s, axis=-1, keepdims=True)
        p = jnp.exp(s)
        p = p * pl.reciprocal(jnp.sum(p, axis=-1, keepdims=True), approx=True)

        yh = jnp.einsum('hqk,hkd->hqd', p.astype(bf16), v,
                        preferred_element_type=f32)                        # (H,S,D) f32
        y_parts.append(yh.transpose(1, 0, 2).reshape(S, E))                # (S,E)
    y = jnp.concatenate(y_parts, axis=0)                                   # (B*S, E)

    # Output projection + residual + RMSNorm (all batch rows at once).
    y = jnp.dot(y.astype(bf16), wproj_ref[...],
                preferred_element_type=f32) + bproj_ref[...]
    y = _rmsnorm(y + x, g1_ref[...], a1_ref[...])

    # Feedforward: Linear -> exact GELU -> Linear, residual + RMSNorm.
    # TODO(synk): for large E, stream wff1/wff2 in chunks of the 4E hidden dim (inner
    # pipelined K-loop + f32 accumulator scratch) so per-layer weights fit v7x's 64 MiB.
    h1 = jnp.dot(y.astype(bf16), wff1_ref[...],
                 preferred_element_type=f32) + bff1_ref[...]
    h1 = _gelu_exact(h1)
    xff = jnp.dot(h1.astype(bf16), wff2_ref[...],
                  preferred_element_type=f32) + bff2_ref[...]
    out = _rmsnorm(xff + y, g2_ref[...], a2_ref[...])
    o_ref[...] = out.reshape(B, S, E)


def logits_kernel(x_ref, w_ref, o_ref):
    """Tied vocab projection tile: (rt, E) bf16 @ (E, vt) bf16 -> (rt, vt) f32."""
    o_ref[...] = jnp.dot(x_ref[...], w_ref[...], preferred_element_type=jnp.float32)


# ------------------------------- wrappers -------------------------------------

_LAYER_PARAM_NAMES = ('wqkv', 'bqkv', 'wproj', 'bproj', 'g1', 'a1',
                      'wff1', 'bff1', 'wff2', 'bff2', 'g2', 'a2')


def run_transformer_layers(x, params, n_heads):
    """All layers in one pallas_call; grid = (layer,), batch folded into the block."""
    B, S, E = x.shape
    L = params['wqkv'].shape[0]
    H = n_heads
    assert E % H == 0, 'Embedding size must be divisible by number of heads'
    D = E // H

    w_args = [params[name] for name in _LAYER_PARAM_NAMES]

    act_map = lambda l: (0, 0, 0)       # activation: full (B,S,E) block, resident over layers
    w_map = lambda l: (l, 0, 0)         # weights: one layer slab per grid step

    in_specs = [pl.BlockSpec((B, S, E), act_map)]
    for w in w_args:
        in_specs.append(pl.BlockSpec((None,) + w.shape[1:], w_map))

    # Per-step VMEM estimate (double-buffered weights + activations + intermediates,
    # including the bf16 copies and head/score staging), with a 1.5x safety margin.
    w_bytes = sum(math.prod(w.shape[1:]) * w.dtype.itemsize for w in w_args)
    act_bytes = B * S * E * 4
    qkv_bytes = B * S * 3 * E * (4 + 2)                  # qkv f32 + bf16 copy
    head_bytes = 4 * H * S * D * (4 + 2)                 # per-seq q,k,v,y staging
    score_bytes = H * S * S * (4 + 4 + 2)                # s, p (f32), p (bf16) per-seq
    ff_bytes = B * S * 4 * E * (4 + 2)                   # hidden f32 + bf16 copy
    misc_bytes = 4 * B * S * E * 4 + S * S * 4           # residual/norm temps + mask
    est = int(1.5 * (2 * w_bytes + 2 * act_bytes + qkv_bytes + head_bytes
                     + score_bytes + ff_bytes + misc_bytes))

    kernel = functools.partial(transformer_layers_kernel, n_heads)
    return pl.pallas_call(
        kernel,
        out_shape=jax.ShapeDtypeStruct((B, S, E), jnp.float32),
        grid_spec=pltpu.PrefetchScalarGridSpec(
            num_scalar_prefetch=0,
            grid=(L,),
            in_specs=in_specs,
            out_specs=pl.BlockSpec((B, S, E), act_map),
            scratch_shapes=[pltpu.VMEM((S, S), jnp.float32)],   # causal mask, built once
        ),
        compiler_params=_compiler_params(("arbitrary",), est),
    )(x, *w_args)


def run_logits(x, emb_t):
    """logits = x @ emb.T, tiled over (row, vocab); emb_t is pre-transposed (E, V) bf16."""
    B, S, E = x.shape
    V = emb_t.shape[1]
    rows = B * S
    x2d = x.reshape(rows, E).astype(jnp.bfloat16)   # pre-cast ONCE (halves DMA, no per-tile cast)

    big_vmem = _physical_vmem_bytes() >= 96 * _MIB  # v5e/v6e (128 MiB) vs v7x (64 MiB)
    rt_cands = (1024, 512, 256, 128) if big_vmem else (512, 256, 128)
    vt_cands = (2048, 1024, 512, 256, 128) if big_vmem else (1024, 512, 256, 128)
    rt = _pick_tile(rows, rt_cands)
    vt = _pick_tile(V, vt_cands)
    # Block-shape legality: either a 128-multiple tile or the full extent.
    assert (rt % 8 == 0) or rt == rows
    assert (vt % 128 == 0) or vt == V
    grid = (rows // rt, V // vt)

    est = int(1.5 * 2 * (rt * E * 2 + E * vt * 2 + rt * vt * 4))
    # TODO(synk): add an E-reduction grid axis + f32 accumulator scratch for large E.

    out = pl.pallas_call(
        logits_kernel,
        out_shape=jax.ShapeDtypeStruct((rows, V), jnp.float32),
        grid_spec=pltpu.PrefetchScalarGridSpec(
            num_scalar_prefetch=0,
            grid=grid,
            in_specs=[pl.BlockSpec((rt, E), lambda i, j: (i, 0)),
                      pl.BlockSpec((E, vt), lambda i, j: (0, j))],
            out_specs=pl.BlockSpec((rt, vt), lambda i, j: (i, j)),
        ),
        compiler_params=_compiler_params(("parallel", "parallel"), est),
    )(x2d, emb_t)
    return out.reshape(B, S, V)


def forward(tokens, params, n_heads, max_seq_length):
    B, S = tokens.shape
    assert S <= max_seq_length, 'Sequence length exceeds max_seq_length'
    # Embedding lookups are glue (gather), done in plain JAX.
    x = params['emb'][tokens] + params['pos'][:S][None, :, :]
    x = run_transformer_layers(x, params, n_heads)
    return run_logits(x, params['emb_T'])


# --------------------------- deterministic init --------------------------------


def init_params(key, vocab_size, E, max_seq_length, n_layers):
    std = 0.02
    L = n_layers
    keys = jax.random.split(key, 6)

    emb = std * jax.random.normal(keys[0], (vocab_size, E), jnp.float32)
    pos = std * jax.random.normal(keys[1], (max_seq_length, E), jnp.float32)

    def w(k, shape):
        # matmul weights stored bf16 (MXU-native); f32 accumulation in-kernel
        return (std * jax.random.normal(k, shape, jnp.float32)).astype(jnp.bfloat16)

    params = {
        'emb': emb,                                  # (V, E) f32 for the gather
        'pos': pos,                                  # (max_S, E) f32
        # Tied weight, transposed ONCE at init (bf16; logits accumulate in f32).
        'emb_T': emb.T.astype(jnp.bfloat16),
        # stacked per-layer weights, torch Linear (out,in) stored transposed (in,out)
        'wqkv':  w(keys[2], (L, E, 3 * E)),
        'bqkv':  jnp.zeros((L, 1, 3 * E), jnp.float32),
        'wproj': w(keys[3], (L, E, E)),
        'bproj': jnp.zeros((L, 1, E), jnp.float32),
        'g1':    jnp.ones((L, 1, E), jnp.float32),
        'a1':    jnp.zeros((L, 1, E), jnp.float32),
        'wff1':  w(keys[4], (L, E, 4 * E)),
        'bff1':  jnp.zeros((L, 1, 4 * E), jnp.float32),
        'wff2':  w(keys[5], (L, 4 * E, E)),
        'bff2':  jnp.zeros((L, 1, E), jnp.float32),
        'g2':    jnp.ones((L, 1, E), jnp.float32),
        'a2':    jnp.zeros((L, 1, E), jnp.float32),
    }
    return params


# ---------------------------------- main ---------------------------------------


if __name__ == "__main__":
    vocab_size = 256
    embedding_size = 128
    max_seq_length = 32
    n_layers = 2
    n_heads = 4
    B, S = 2, 16

    key = jax.random.PRNGKey(0)
    kp, kt = jax.random.split(key)
    params = init_params(kp, vocab_size, embedding_size, max_seq_length, n_layers)
    tokens = jax.random.randint(kt, (B, S), 0, vocab_size, dtype=jnp.int32)

    fwd = jax.jit(functools.partial(forward, n_heads=n_heads,
                                    max_seq_length=max_seq_length))
    logits = fwd(tokens, params)
    logits = jax.block_until_ready(logits)

    assert logits.shape == (B, S, vocab_size), logits.shape
    assert logits.dtype == jnp.float32
    assert bool(jnp.all(jnp.isfinite(logits)))
    print("KERNEL_OK")
</pallas_src>

<mosaic_0001>
module attributes {stable_mosaic.version = 11 : i64} {
  func.func @logits_kernel(%arg0: i32, %arg1: i32, %arg2: memref<32x128xbf16, #tpu.memory_space<vmem>>, %arg3: memref<128x256xbf16, #tpu.memory_space<vmem>>, %arg4: memref<32x256xf32, #tpu.memory_space<vmem>>) attributes {dimension_semantics = [#tpu.dimension_semantics<parallel>, #tpu.dimension_semantics<parallel>], iteration_bounds = array<i64: 1, 1>, scalar_prefetch = 0 : i64, scratch_operands = 0 : i64, tpu.core_type = #tpu.core_type<tc>, window_params = [{transform_indices = @transform_0, window_bounds = array<i64: 32, 128>}, {transform_indices = @transform_1, window_bounds = array<i64: 128, 256>}, {transform_indices = @transform_2, window_bounds = array<i64: 32, 256>}]} {
    %c0 = arith.constant 0 : index
    %c0_0 = arith.constant 0 : index
    %0 = vector.load %arg2[%c0, %c0_0] : memref<32x128xbf16, #tpu.memory_space<vmem>>, vector<32x128xbf16>
    %c0_1 = arith.constant 0 : index
    %c0_2 = arith.constant 0 : index
    %1 = vector.load %arg3[%c0_1, %c0_2] : memref<128x256xbf16, #tpu.memory_space<vmem>>, vector<128x256xbf16>
    %cst = arith.constant dense<0.000000e+00> : vector<32x256xf32>
    %2 = tpu.matmul %0, %1, %cst {dimension_numbers = #tpu.dot_dimension_numbers<[1], [0], [0], [1], [0, 0, 1, 1], [], []>} : vector<32x128xbf16>, vector<128x256xbf16>, vector<32x256xf32> -> vector<32x256xf32>
    %c0_3 = arith.constant 0 : index
    %c0_4 = arith.constant 0 : index
    %3 = vector.load %arg4[%c0_3, %c0_4] : memref<32x256xf32, #tpu.memory_space<vmem>>, vector<32x256xf32>
    tpu.vector_store %arg4[%c0_3, %c0_4], %2 {strides = array<i32>} : memref<32x256xf32, #tpu.memory_space<vmem>>, vector<32x256xf32>,
    return
  }
  func.func @transform_0(%arg0: i32, %arg1: i32) -> (i32, i32) {
    %c0_i32 = arith.constant 0 : i32
    %c0_i32_0 = arith.constant 0 : i32
    return %arg0, %c0_i32 : i32, i32
  }
  func.func @transform_1(%arg0: i32, %arg1: i32) -> (i32, i32) {
    %c0_i32 = arith.constant 0 : i32
    %c0_i32_0 = arith.constant 0 : i32
    return %c0_i32, %arg1 : i32, i32
  }
  func.func @transform_2(%arg0: i32, %arg1: i32) -> (i32, i32) {
    %c0_i32 = arith.constant 0 : i32
    return %arg0, %arg1 : i32, i32
  }
}

module attributes {stable_mosaic.version = 11 : i64} {
  func.func @transformer_layers_kernel(%arg0: i32, %arg1: memref<2x16x128xf32, #tpu.memory_space<vmem>>, %arg2: memref<1x128x384xbf16, #tpu.memory_space<vmem>>, %arg3: memref<1x1x384xf32, #tpu.memory_space<vmem>>, %arg4: memref<1x128x128xbf16, #tpu.memory_space<vmem>>, %arg5: memref<1x1x128xf32, #tpu.memory_space<vmem>>, %arg6: memref<1x1x128xf32, #tpu.memory_space<vmem>>, %arg7: memref<1x1x128xf32, #tpu.memory_space<vmem>>, %arg8: memref<1x128x512xbf16, #tpu.memory_space<vmem>>, %arg9: memref<1x1x512xf32, #tpu.memory_space<vmem>>, %arg10: memref<1x512x128xbf16, #tpu.memory_space<vmem>>, %arg11: memref<1x1x128xf32, #tpu.memory_space<vmem>>, %arg12: memref<1x1x128xf32, #tpu.memory_space<vmem>>, %arg13: memref<1x1x128xf32, #tpu.memory_space<vmem>>, %arg14: memref<2x16x128xf32, #tpu.memory_space<vmem>>, %arg15: memref<16x16xf32, #tpu.memory_space<vmem>>) attributes {dimension_semantics = [#tpu.dimension_semantics<arbitrary>], iteration_bounds = array<i64: 2>, scalar_prefetch = 0 : i64, scratch_operands = 1 : i64, tpu.core_type = #tpu.core_type<tc>, window_params = [{pipeline_mode = #tpu.pipeline_mode<synchronous>, transform_indices = @transform_0, window_bounds = array<i64: 2, 16, 128>}, {transform_indices = @transform_1, window_bounds = array<i64: 1, 128, 384>}, {transform_indices = @transform_2, window_bounds = array<i64: 1, 1, 384>}, {transform_indices = @transform_3, window_bounds = array<i64: 1, 128, 128>}, {transform_indices = @transform_4, window_bounds = array<i64: 1, 1, 128>}, {transform_indices = @transform_5, window_bounds = array<i64: 1, 1, 128>}, {transform_indices = @transform_6, window_bounds = array<i64: 1, 1, 128>}, {transform_indices = @transform_7, window_bounds = array<i64: 1, 128, 512>}, {transform_indices = @transform_8, window_bounds = array<i64: 1, 1, 512>}, {transform_indices = @transform_9, window_bounds = array<i64: 1, 512, 128>}, {transform_indices = @transform_10, window_bounds = array<i64: 1, 1, 128>}, {transform_indices = @transform_11, window_bounds = array<i64: 1, 1, 128>}, {transform_indices = @transform_12, window_bounds = array<i64: 1, 1, 128>}, {pipeline_mode = #tpu.pipeline_mode<synchronous>, transform_indices = @transform_13, window_bounds = array<i64: 2, 16, 128>}]} {
    %c0_i32 = arith.constant 0 : i32
    %0 = arith.cmpi eq, %arg0, %c0_i32 : i32
    %1 = arith.extui %0 : i1 to i32
    %c0_i32_0 = arith.constant 0 : i32
    %2 = arith.cmpi ne, %1, %c0_i32_0 : i32
    scf.if %2 {
      %c0_78 = arith.constant 0 : index
      %c0_79 = arith.constant 0 : index
      %c0_80 = arith.constant 0 : index
      %178 = vector.load %arg1[%c0_78, %c0_79, %c0_80] : memref<2x16x128xf32, #tpu.memory_space<vmem>>, vector<2x16x128xf32>
      %c0_81 = arith.constant 0 : index
      %c0_82 = arith.constant 0 : index
      %c0_83 = arith.constant 0 : index
      %179 = vector.load %arg14[%c0_81, %c0_82, %c0_83] : memref<2x16x128xf32, #tpu.memory_space<vmem>>, vector<2x16x128xf32>
      tpu.vector_store %arg14[%c0_81, %c0_82, %c0_83], %178 {strides = array<i32>} : memref<2x16x128xf32, #tpu.memory_space<vmem>>, vector<2x16x128xf32>,
      %180 = tpu.iota {dimensions = array<i32: 0>} : vector<16x16xi32>
      %181 = tpu.iota {dimensions = array<i32: 1>} : vector<16x16xi32>
      %182 = arith.cmpi sle, %181, %180 : vector<16x16xi32>
      %cst_84 = arith.constant 0.000000e+00 : f32
      %cst_85 = arith.constant -1.000000e+30 : f32
      %183 = vector.broadcast %cst_84 : f32 to vector<16x16xf32>
      %184 = vector.broadcast %cst_85 : f32 to vector<16x16xf32>
      %185 = arith.select %182, %183, %184 : vector<16x16xi1>, vector<16x16xf32>
      %c0_86 = arith.constant 0 : index
      %c0_87 = arith.constant 0 : index
      %186 = vector.load %arg15[%c0_86, %c0_87] : memref<16x16xf32, #tpu.memory_space<vmem>>, vector<16x16xf32>
      tpu.vector_store %arg15[%c0_86, %c0_87], %185 {strides = array<i32>} : memref<16x16xf32, #tpu.memory_space<vmem>>, vector<16x16xf32>,
    } else {
    }
    %c0 = arith.constant 0 : index
    %c0_1 = arith.constant 0 : index
    %c0_2 = arith.constant 0 : index
    %3 = vector.load %arg14[%c0, %c0_1, %c0_2] : memref<2x16x128xf32, #tpu.memory_space<vmem>>, vector<2x16x128xf32>
    %4 = vector.shape_cast %3 : vector<2x16x128xf32> to vector<32x128xf32>
    %5 = arith.truncf %4 : vector<32x128xf32> to vector<32x128xbf16>
    %c0_3 = arith.constant 0 : index
    %c0_4 = arith.constant 0 : index
    %c0_5 = arith.constant 0 : index
    %6 = vector.load %arg2[%c0_3, %c0_4, %c0_5] : memref<1x128x384xbf16, #tpu.memory_space<vmem>>, vector<1x128x384xbf16>
    %7 = vector.shape_cast %6 : vector<1x128x384xbf16> to vector<128x384xbf16>
    %cst = arith.constant dense<0.000000e+00> : vector<32x384xf32>
    %8 = tpu.matmul %5, %7, %cst {dimension_numbers = #tpu.dot_dimension_numbers<[1], [0], [0], [1], [0, 0, 1, 1], [], []>} : vector<32x128xbf16>, vector<128x384xbf16>, vector<32x384xf32> -> vector<32x384xf32>
    %c0_6 = arith.constant 0 : index
    %c0_7 = arith.constant 0 : index
    %c0_8 = arith.constant 0 : index
    %9 = vector.load %arg3[%c0_6, %c0_7, %c0_8] : memref<1x1x384xf32, #tpu.memory_space<vmem>>, vector<1x1x384xf32>
    %10 = vector.shape_cast %9 : vector<1x1x384xf32> to vector<1x384xf32>
    %11 = vector.broadcast %10 : vector<1x384xf32> to vector<32x384xf32>
    %12 = arith.addf %8, %11 : vector<32x384xf32>
    %13 = arith.truncf %12 : vector<32x384xf32> to vector<32x384xbf16>
    %c0_9 = arith.constant 0 : index
    %c0_10 = arith.constant 0 : index
    %14 = vector.load %arg15[%c0_9, %c0_10] : memref<16x16xf32, #tpu.memory_space<vmem>>, vector<16x16xf32>
    %15 = vector.extract_strided_slice %13 {offsets = [0, 0], sizes = [16, 128], strides = [1, 1]} : vector<32x384xbf16> to vector<16x128xbf16>
    %16 = vector.shape_cast %15 : vector<16x128xbf16> to vector<16x4x32xbf16>
    %17 = tpu.transpose %16, [1, 0, 2] : vector<16x4x32xbf16> -> vector<4x16x32xbf16>
    %18 = vector.extract_strided_slice %13 {offsets = [0, 128], sizes = [16, 128], strides = [1, 1]} : vector<32x384xbf16> to vector<16x128xbf16>
    %19 = vector.shape_cast %18 : vector<16x128xbf16> to vector<16x4x32xbf16>
    %20 = tpu.transpose %19, [1, 0, 2] : vector<16x4x32xbf16> -> vector<4x16x32xbf16>
    %21 = vector.extract_strided_slice %13 {offsets = [0, 256], sizes = [16, 128], strides = [1, 1]} : vector<32x384xbf16> to vector<16x128xbf16>
    %22 = vector.shape_cast %21 : vector<16x128xbf16> to vector<16x4x32xbf16>
    %23 = tpu.transpose %22, [1, 0, 2] : vector<16x4x32xbf16> -> vector<4x16x32xbf16>
    "tpu.trace_start"() <{level = 10 : i32, message = "hqd,hkd->hqk"}> : () -> ()
    %cst_11 = arith.constant dense<0.000000e+00> : vector<4x16x16xf32>
    %24 = tpu.matmul %17, %20, %cst_11 {dimension_numbers = #tpu.dot_dimension_numbers<[2], [2], [1], [1], [0, 0, 0, 1, 1, 1], [0], [0]>} : vector<4x16x32xbf16>, vector<4x16x32xbf16>, vector<4x16x16xf32> -> vector<4x16x16xf32>
    "tpu.trace_stop"() : () -> ()
    %cst_12 = arith.constant 0.176776692 : f32
    %25 = vector.broadcast %cst_12 : f32 to vector<4x16x16xf32>
    %26 = arith.mulf %24, %25 : vector<4x16x16xf32>
    %27 = vector.shape_cast %14 : vector<16x16xf32> to vector<1x16x16xf32>
    %28 = vector.broadcast %27 : vector<1x16x16xf32> to vector<4x16x16xf32>
    %29 = arith.addf %26, %28 : vector<4x16x16xf32>
    %cst_13 = arith.constant dense<0xFF800000> : vector<4x16xf32>
    %30 = vector.multi_reduction <maximumf>, %29, %cst_13 [2] : vector<4x16x16xf32> to vector<4x16xf32>
    %31 = vector.shape_cast %30 : vector<4x16xf32> to vector<4x16x1xf32>
    %32 = vector.broadcast %31 : vector<4x16x1xf32> to vector<4x16x16xf32>
    %33 = arith.subf %29, %32 : vector<4x16x16xf32>
    %34 = math.exp %33 : vector<4x16x16xf32>
    %cst_14 = arith.constant dense<0.000000e+00> : vector<4x16xf32>
    %35 = vector.multi_reduction <add>, %34, %cst_14 [2] : vector<4x16x16xf32> to vector<4x16xf32>
    %36 = vector.shape_cast %35 : vector<4x16xf32> to vector<4x16x1xf32>
    %37 = tpu.reciprocal %36 {approx = true} : vector<4x16x1xf32> -> vector<4x16x1xf32>
    %38 = vector.broadcast %37 : vector<4x16x1xf32> to vector<4x16x16xf32>
    %39 = arith.mulf %34, %38 : vector<4x16x16xf32>
    %40 = arith.truncf %39 : vector<4x16x16xf32> to vector<4x16x16xbf16>
    "tpu.trace_start"() <{level = 10 : i32, message = "hqk,hkd->hqd"}> : () -> ()
    %cst_15 = arith.constant dense<0.000000e+00> : vector<4x16x32xf32>
    %41 = tpu.matmul %40, %23, %cst_15 {dimension_numbers = #tpu.dot_dimension_numbers<[2], [1], [1], [2], [0, 0, 0, 1, 1, 2], [0], [0]>} : vector<4x16x16xbf16>, vector<4x16x32xbf16>, vector<4x16x32xf32> -> vector<4x16x32xf32>
    "tpu.trace_stop"() : () -> ()
    %42 = tpu.transpose %41, [1, 0, 2] : vector<4x16x32xf32> -> vector<16x4x32xf32>
    %43 = vector.shape_cast %42 : vector<16x4x32xf32> to vector<16x128xf32>
    %44 = vector.extract_strided_slice %13 {offsets = [16, 0], sizes = [16, 128], strides = [1, 1]} : vector<32x384xbf16> to vector<16x128xbf16>
    %45 = vector.shape_cast %44 : vector<16x128xbf16> to vector<16x4x32xbf16>
    %46 = tpu.transpose %45, [1, 0, 2] : vector<16x4x32xbf16> -> vector<4x16x32xbf16>
    %47 = vector.extract_strided_slice %13 {offsets = [16, 128], sizes = [16, 128], strides = [1, 1]} : vector<32x384xbf16> to vector<16x128xbf16>
    %48 = vector.shape_cast %47 : vector<16x128xbf16> to vector<16x4x32xbf16>
    %49 = tpu.transpose %48, [1, 0, 2] : vector<16x4x32xbf16> -> vector<4x16x32xbf16>
    %50 = vector.extract_strided_slice %13 {offsets = [16, 256], sizes = [16, 128], strides = [1, 1]} : vector<32x384xbf16> to vector<16x128xbf16>
    %51 = vector.shape_cast %50 : vector<16x128xbf16> to vector<16x4x32xbf16>
    %52 = tpu.transpose %51, [1, 0, 2] : vector<16x4x32xbf16> -> vector<4x16x32xbf16>
    "tpu.trace_start"() <{level = 10 : i32, message = "hqd,hkd->hqk"}> : () -> ()
    %cst_16 = arith.constant dense<0.000000e+00> : vector<4x16x16xf32>
    %53 = tpu.matmul %46, %49, %cst_16 {dimension_numbers = #tpu.dot_dimension_numbers<[2], [2], [1], [1], [0, 0, 0, 1, 1, 1], [0], [0]>} : vector<4x16x32xbf16>, vector<4x16x32xbf16>, vector<4x16x16xf32> -> vector<4x16x16xf32>
    "tpu.trace_stop"() : () -> ()
    %cst_17 = arith.constant 0.176776692 : f32
    %54 = vector.broadcast %cst_17 : f32 to vector<4x16x16xf32>
    %55 = arith.mulf %53, %54 : vector<4x16x16xf32>
    %56 = vector.shape_cast %14 : vector<16x16xf32> to vector<1x16x16xf32>
    %57 = vector.broadcast %56 : vector<1x16x16xf32> to vector<4x16x16xf32>
    %58 = arith.addf %55, %57 : vector<4x16x16xf32>
    %cst_18 = arith.constant dense<0xFF800000> : vector<4x16xf32>
    %59 = vector.multi_reduction <maximumf>, %58, %cst_18 [2] : vector<4x16x16xf32> to vector<4x16xf32>
    %60 = vector.shape_cast %59 : vector<4x16xf32> to vector<4x16x1xf32>
    %61 = vector.broadcast %60 : vector<4x16x1xf32> to vector<4x16x16xf32>
    %62 = arith.subf %58, %61 : vector<4x16x16xf32>
    %63 = math.exp %62 : vector<4x16x16xf32>
    %cst_19 = arith.constant dense<0.000000e+00> : vector<4x16xf32>
    %64 = vector.multi_reduction <add>, %63, %cst_19 [2] : vector<4x16x16xf32> to vector<4x16xf32>
    %65 = vector.shape_cast %64 : vector<4x16xf32> to vector<4x16x1xf32>
    %66 = tpu.reciprocal %65 {approx = true} : vector<4x16x1xf32> -> vector<4x16x1xf32>
    %67 = vector.broadcast %66 : vector<4x16x1xf32> to vector<4x16x16xf32>
    %68 = arith.mulf %63, %67 : vector<4x16x16xf32>
    %69 = arith.truncf %68 : vector<4x16x16xf32> to vector<4x16x16xbf16>
    "tpu.trace_start"() <{level = 10 : i32, message = "hqk,hkd->hqd"}> : () -> ()
    %cst_20 = arith.constant dense<0.000000e+00> : vector<4x16x32xf32>
    %70 = tpu.matmul %69, %52, %cst_20 {dimension_numbers = #tpu.dot_dimension_numbers<[2], [1], [1], [2], [0, 0, 0, 1, 1, 2], [0], [0]>} : vector<4x16x16xbf16>, vector<4x16x32xbf16>, vector<4x16x32xf32> -> vector<4x16x32xf32>
    "tpu.trace_stop"() : () -> ()
    %71 = tpu.transpose %70, [1, 0, 2] : vector<4x16x32xf32> -> vector<16x4x32xf32>
    %72 = vector.shape_cast %71 : vector<16x4x32xf32> to vector<16x128xf32>
    %73 = tpu.concatenate %43, %72 in 0 : vector<16x128xf32>, vector<16x128xf32> -> vector<32x128xf32>
    %74 = arith.truncf %73 : vector<32x128xf32> to vector<32x128xbf16>
    %c0_21 = arith.constant 0 : index
    %c0_22 = arith.constant 0 : index
    %c0_23 = arith.constant 0 : index
    %75 = vector.load %arg4[%c0_21, %c0_22, %c0_23] : memref<1x128x128xbf16, #tpu.memory_space<vmem>>, vector<1x128x128xbf16>
    %76 = vector.shape_cast %75 : vector<1x128x128xbf16> to vector<128x128xbf16>
    %cst_24 = arith.constant dense<0.000000e+00> : vector<32x128xf32>
    %77 = tpu.matmul %74, %76, %cst_24 {dimension_numbers = #tpu.dot_dimension_numbers<[1], [0], [0], [1], [0, 0, 1, 1], [], []>} : vector<32x128xbf16>, vector<128x128xbf16>, vector<32x128xf32> -> vector<32x128xf32>
    %c0_25 = arith.constant 0 : index
    %c0_26 = arith.constant 0 : index
    %c0_27 = arith.constant 0 : index
    %78 = vector.load %arg5[%c0_25, %c0_26, %c0_27] : memref<1x1x128xf32, #tpu.memory_space<vmem>>, vector<1x1x128xf32>
    %79 = vector.shape_cast %78 : vector<1x1x128xf32> to vector<1x128xf32>
    %80 = vector.broadcast %79 : vector<1x128xf32> to vector<32x128xf32>
    %81 = arith.addf %77, %80 : vector<32x128xf32>
    %82 = arith.addf %81, %4 : vector<32x128xf32>
    %c0_28 = arith.constant 0 : index
    %c0_29 = arith.constant 0 : index
    %c0_30 = arith.constant 0 : index
    %83 = vector.load %arg6[%c0_28, %c0_29, %c0_30] : memref<1x1x128xf32, #tpu.memory_space<vmem>>, vector<1x1x128xf32>
    %84 = vector.shape_cast %83 : vector<1x1x128xf32> to vector<1x128xf32>
    %c0_31 = arith.constant 0 : index
    %c0_32 = arith.constant 0 : index
    %c0_33 = arith.constant 0 : index
    %85 = vector.load %arg7[%c0_31, %c0_32, %c0_33] : memref<1x1x128xf32, #tpu.memory_space<vmem>>, vector<1x1x128xf32>
    %86 = vector.shape_cast %85 : vector<1x1x128xf32> to vector<1x128xf32>
    %87 = arith.mulf %82, %82 : vector<32x128xf32>
    %cst_34 = arith.constant dense<0.000000e+00> : vector<32xf32>
    %88 = vector.multi_reduction <add>, %87, %cst_34 [1] : vector<32x128xf32> to vector<32xf32>
    %89 = vector.shape_cast %88 : vector<32xf32> to vector<32x1xf32>
    %cst_35 = arith.constant 1.280000e+02 : f32
    %90 = vector.broadcast %cst_35 : f32 to vector<32x1xf32>
    %91 = arith.divf %89, %90 : vector<32x1xf32>
    %92 = math.sqrt %91 : vector<32x1xf32>
    %93 = vector.broadcast %84 : vector<1x128xf32> to vector<32x128xf32>
    %94 = arith.mulf %93, %82 : vector<32x128xf32>
    %cst_36 = arith.constant 9.99999993E-9 : f32
    %95 = vector.broadcast %cst_36 : f32 to vector<32x1xf32>
    %96 = arith.addf %92, %95 : vector<32x1xf32>
    %97 = vector.broadcast %96 : vector<32x1xf32> to vector<32x128xf32>
    %98 = arith.divf %94, %97 : vector<32x128xf32>
    %99 = vector.broadcast %86 : vector<1x128xf32> to vector<32x128xf32>
    %100 = arith.addf %98, %99 : vector<32x128xf32>
    %101 = arith.truncf %100 : vector<32x128xf32> to vector<32x128xbf16>
    %c0_37 = arith.constant 0 : index
    %c0_38 = arith.constant 0 : index
    %c0_39 = arith.constant 0 : index
    %102 = vector.load %arg8[%c0_37, %c0_38, %c0_39] : memref<1x128x512xbf16, #tpu.memory_space<vmem>>, vector<1x128x512xbf16>
    %103 = vector.shape_cast %102 : vector<1x128x512xbf16> to vector<128x512xbf16>
    %cst_40 = arith.constant dense<0.000000e+00> : vector<32x512xf32>
    %104 = tpu.matmul %101, %103, %cst_40 {dimension_numbers = #tpu.dot_dimension_numbers<[1], [0], [0], [1], [0, 0, 1, 1], [], []>} : vector<32x128xbf16>, vector<128x512xbf16>, vector<32x512xf32> -> vector<32x512xf32>
    %c0_41 = arith.constant 0 : index
    %c0_42 = arith.constant 0 : index
    %c0_43 = arith.constant 0 : index
    %105 = vector.load %arg9[%c0_41, %c0_42, %c0_43] : memref<1x1x512xf32, #tpu.memory_space<vmem>>, vector<1x1x512xf32>
    %106 = vector.shape_cast %105 : vector<1x1x512xf32> to vector<1x512xf32>
    %107 = vector.broadcast %106 : vector<1x512xf32> to vector<32x512xf32>
    %108 = arith.addf %104, %107 : vector<32x512xf32>
    %cst_44 = arith.constant 0.707106769 : f32
    %109 = vector.broadcast %cst_44 : f32 to vector<32x512xf32>
    %110 = arith.mulf %108, %109 : vector<32x512xf32>
    %111 = math.absf %110 : vector<32x512xf32>
    %cst_45 = arith.constant 0.327591091 : f32
    %112 = vector.broadcast %cst_45 : f32 to vector<32x512xf32>
    %113 = arith.mulf %112, %111 : vector<32x512xf32>
    %cst_46 = arith.constant 1.000000e+00 : f32
    %114 = vector.broadcast %cst_46 : f32 to vector<32x512xf32>
    %115 = arith.addf %114, %113 : vector<32x512xf32>
    %cst_47 = arith.constant 1.000000e+00 : f32
    %116 = vector.broadcast %cst_47 : f32 to vector<32x512xf32>
    %117 = arith.divf %116, %115 : vector<32x512xf32>
    %cst_48 = arith.constant 1.06140542 : f32
    %118 = vector.broadcast %cst_48 : f32 to vector<32x512xf32>
    %119 = arith.mulf %118, %117 : vector<32x512xf32>
    %cst_49 = arith.constant -1.45315206 : f32
    %120 = vector.broadcast %cst_49 : f32 to vector<32x512xf32>
    %121 = arith.addf %119, %120 : vector<32x512xf32>
    %122 = arith.mulf %121, %117 : vector<32x512xf32>
    %cst_50 = arith.constant 1.42141378 : f32
    %123 = vector.broadcast %cst_50 : f32 to vector<32x512xf32>
    %124 = arith.addf %122, %123 : vector<32x512xf32>
    %125 = arith.mulf %124, %117 : vector<32x512xf32>
    %cst_51 = arith.constant -0.284496725 : f32
    %126 = vector.broadcast %cst_51 : f32 to vector<32x512xf32>
    %127 = arith.addf %125, %126 : vector<32x512xf32>
    %128 = arith.mulf %127, %117 : vector<32x512xf32>
    %cst_52 = arith.constant 0.254829586 : f32
    %129 = vector.broadcast %cst_52 : f32 to vector<32x512xf32>
    %130 = arith.addf %128, %129 : vector<32x512xf32>
    %131 = arith.mulf %130, %117 : vector<32x512xf32>
    %cst_53 = arith.constant 0.000000e+00 : f32
    %132 = vector.broadcast %cst_53 : f32 to vector<32x512xf32>
    %133 = arith.subf %132, %110 : vector<32x512xf32>
    %134 = arith.mulf %133, %110 : vector<32x512xf32>
    %135 = math.exp %134 : vector<32x512xf32>
    %136 = arith.mulf %131, %135 : vector<32x512xf32>
    %cst_54 = arith.constant 1.000000e+00 : f32
    %137 = vector.broadcast %cst_54 : f32 to vector<32x512xf32>
    %138 = arith.subf %137, %136 : vector<32x512xf32>
    %cst_55 = arith.constant 0.000000e+00 : f32
    %139 = vector.broadcast %cst_55 : f32 to vector<32x512xf32>
    %140 = arith.cmpf oge, %110, %139 : vector<32x512xf32>
    %cst_56 = arith.constant 0.000000e+00 : f32
    %141 = vector.broadcast %cst_56 : f32 to vector<32x512xf32>
    %142 = arith.subf %141, %138 : vector<32x512xf32>
    %143 = arith.select %140, %138, %142 : vector<32x512xi1>, vector<32x512xf32>
    %cst_57 = arith.constant 5.000000e-01 : f32
    %144 = vector.broadcast %cst_57 : f32 to vector<32x512xf32>
    %145 = arith.mulf %144, %108 : vector<32x512xf32>
    %cst_58 = arith.constant 1.000000e+00 : f32
    %146 = vector.broadcast %cst_58 : f32 to vector<32x512xf32>
    %147 = arith.addf %146, %143 : vector<32x512xf32>
    %148 = arith.mulf %145, %147 : vector<32x512xf32>
    %149 = arith.truncf %148 : vector<32x512xf32> to vector<32x512xbf16>
    %c0_59 = arith.constant 0 : index
    %c0_60 = arith.constant 0 : index
    %c0_61 = arith.constant 0 : index
    %150 = vector.load %arg10[%c0_59, %c0_60, %c0_61] : memref<1x512x128xbf16, #tpu.memory_space<vmem>>, vector<1x512x128xbf16>
    %151 = vector.shape_cast %150 : vector<1x512x128xbf16> to vector<512x128xbf16>
    %cst_62 = arith.constant dense<0.000000e+00> : vector<32x128xf32>
    %152 = tpu.matmul %149, %151, %cst_62 {dimension_numbers = #tpu.dot_dimension_numbers<[1], [0], [0], [1], [0, 0, 1, 1], [], []>} : vector<32x512xbf16>, vector<512x128xbf16>, vector<32x128xf32> -> vector<32x128xf32>
    %c0_63 = arith.constant 0 : index
    %c0_64 = arith.constant 0 : index
    %c0_65 = arith.constant 0 : index
    %153 = vector.load %arg11[%c0_63, %c0_64, %c0_65] : memref<1x1x128xf32, #tpu.memory_space<vmem>>, vector<1x1x128xf32>
    %154 = vector.shape_cast %153 : vector<1x1x128xf32> to vector<1x128xf32>
    %155 = vector.broadcast %154 : vector<1x128xf32> to vector<32x128xf32>
    %156 = arith.addf %152, %155 : vector<32x128xf32>
    %157 = arith.addf %156, %100 : vector<32x128xf32>
    %c0_66 = arith.constant 0 : index
    %c0_67 = arith.constant 0 : index
    %c0_68 = arith.constant 0 : index
    %158 = vector.load %arg12[%c0_66, %c0_67, %c0_68] : memref<1x1x128xf32, #tpu.memory_space<vmem>>, vector<1x1x128xf32>
    %159 = vector.shape_cast %158 : vector<1x1x128xf32> to vector<1x128xf32>
    %c0_69 = arith.constant 0 : index
    %c0_70 = arith.constant 0 : index
    %c0_71 = arith.constant 0 : index
    %160 = vector.load %arg13[%c0_69, %c0_70, %c0_71] : memref<1x1x128xf32, #tpu.memory_space<vmem>>, vector<1x1x128xf32>
    %161 = vector.shape_cast %160 : vector<1x1x128xf32> to vector<1x128xf32>
    %162 = arith.mulf %157, %157 : vector<32x128xf32>
    %cst_72 = arith.constant dense<0.000000e+00> : vector<32xf32>
    %163 = vector.multi_reduction <add>, %162, %cst_72 [1] : vector<32x128xf32> to vector<32xf32>
    %164 = vector.shape_cast %163 : vector<32xf32> to vector<32x1xf32>
    %cst_73 = arith.constant 1.280000e+02 : f32
    %165 = vector.broadcast %cst_73 : f32 to vector<32x1xf32>
    %166 = arith.divf %164, %165 : vector<32x1xf32>
    %167 = math.sqrt %166 : vector<32x1xf32>
    %168 = vector.broadcast %159 : vector<1x128xf32> to vector<32x128xf32>
    %169 = arith.mulf %168, %157 : vector<32x128xf32>
    %cst_74 = arith.constant 9.99999993E-9 : f32
    %170 = vector.broadcast %cst_74 : f32 to vector<32x1xf32>
    %171 = arith.addf %167, %170 : vector<32x1xf32>
    %172 = vector.broadcast %171 : vector<32x1xf32> to vector<32x128xf32>
    %173 = arith.divf %169, %172 : vector<32x128xf32>
    %174 = vector.broadcast %161 : vector<1x128xf32> to vector<32x128xf32>
    %175 = arith.addf %173, %174 : vector<32x128xf32>
    %176 = vector.shape_cast %175 : vector<32x128xf32> to vector<2x16x128xf32>
    %c0_75 = arith.constant 0 : index
    %c0_76 = arith.constant 0 : index
    %c0_77 = arith.constant 0 : index
    %177 = vector.load %arg14[%c0_75, %c0_76, %c0_77] : memref<2x16x128xf32, #tpu.memory_space<vmem>>, vector<2x16x128xf32>
    tpu.vector_store %arg14[%c0_75, %c0_76, %c0_77], %176 {strides = array<i32>} : memref<2x16x128xf32, #tpu.memory_space<vmem>>, vector<2x16x128xf32>,
    return
  }
  func.func @transform_0(%arg0: i32) -> (i32, i32, i32) {
    %c0_i32 = arith.constant 0 : i32
    %c0_i32_0 = arith.constant 0 : i32
    %c0_i32_1 = arith.constant 0 : i32
    %c0_i32_2 = arith.constant 0 : i32
    return %c0_i32, %c0_i32_0, %c0_i32_1 : i32, i32, i32
  }
  func.func @transform_1(%arg0: i32) -> (i32, i32, i32) {
    %c0_i32 = arith.constant 0 : i32
    %c0_i32_0 = arith.constant 0 : i32
    %c0_i32_1 = arith.constant 0 : i32
    return %arg0, %c0_i32, %c0_i32_0 : i32, i32, i32
  }
  func.func @transform_2(%arg0: i32) -> (i32, i32, i32) {
    %c0_i32 = arith.constant 0 : i32
    %c0_i32_0 = arith.constant 0 : i32
    %c0_i32_1 = arith.constant 0 : i32
    return %arg0, %c0_i32, %c0_i32_0 : i32, i32, i32
  }
  func.func @transform_3(%arg0: i32) -> (i32, i32, i32) {
    %c0_i32 = arith.constant 0 : i32
    %c0_i32_0 = arith.constant 0 : i32
    %c0_i32_1 = arith.constant 0 : i32
    return %arg0, %c0_i32, %c0_i32_0 : i32, i32, i32
  }
  func.func @transform_4(%arg0: i32) -> (i32, i32, i32) {
    %c0_i32 = arith.constant 0 : i32
    %c0_i32_0 = arith.constant 0 : i32
    %c0_i32_1 = arith.constant 0 : i32
    return %arg0, %c0_i32, %c0_i32_0 : i32, i32, i32
  }
  func.func @transform_5(%arg0: i32) -> (i32, i32, i32) {
    %c0_i32 = arith.constant 0 : i32
    %c0_i32_0 = arith.constant 0 : i32
    %c0_i32_1 = arith.constant 0 : i32
    return %arg0, %c0_i32, %c0_i32_0 : i32, i32, i32
  }
  func.func @transform_6(%arg0: i32) -> (i32, i32, i32) {
    %c0_i32 = arith.constant 0 : i32
    %c0_i32_0 = arith.constant 0 : i32
    %c0_i32_1 = arith.constant 0 : i32
    return %arg0, %c0_i32, %c0_i32_0 : i32, i32, i32
  }
  func.func @transform_7(%arg0: i32) -> (i32, i32, i32) {
    %c0_i32 = arith.constant 0 : i32
    %c0_i32_0 = arith.constant 0 : i32
    %c0_i32_1 = arith.constant 0 : i32
    return %arg0, %c0_i32, %c0_i32_0 : i32, i32, i32
  }
  func.func @transform_8(%arg0: i32) -> (i32, i32, i32) {
    %c0_i32 = arith.constant 0 : i32
    %c0_i32_0 = arith.constant 0 : i32
    %c0_i32_1 = arith.constant 0 : i32
    return %arg0, %c0_i32, %c0_i32_0 : i32, i32, i32
  }
  func.func @transform_9(%arg0: i32) -> (i32, i32, i32) {
    %c0_i32 = arith.constant 0 : i32
    %c0_i32_0 = arith.constant 0 : i32
    %c0_i32_1 = arith.constant 0 : i32
    return %arg0, %c0_i32, %c0_i32_0 : i32, i32, i32
  }
  func.func @transform_10(%arg0: i32) -> (i32, i32, i32) {
    %c0_i32 = arith.constant 0 : i32
    %c0_i32_0 = arith.constant 0 : i32
    %c0_i32_1 = arith.constant 0 : i32
    return %arg0, %c0_i32, %c0_i32_0 : i32, i32, i32
  }
  func.func @transform_11(%arg0: i32) -> (i32, i32, i32) {
    %c0_i32 = arith.constant 0 : i32
    %c0_i32_0 = arith.constant 0 : i32
    %c0_i32_1 = arith.constant 0 : i32
    return %arg0, %c0_i32, %c0_i32_0 : i32, i32, i32
  }
  func.func @transform_12(%arg0: i32) -> (i32, i32, i32) {
    %c0_i32 = arith.constant 0 : i32
    %c0_i32_0 = arith.constant 0 : i32
    %c0_i32_1 = arith.constant 0 : i32
    return %arg0, %c0_i32, %c0_i32_0 : i32, i32, i32
  }
  func.func @transform_13(%arg0: i32) -> (i32, i32, i32) {
    %c0_i32 = arith.constant 0 : i32
    %c0_i32_0 = arith.constant 0 : i32
    %c0_i32_1 = arith.constant 0 : i32
    %c0_i32_2 = arith.constant 0 : i32
    return %c0_i32, %c0_i32_0, %c0_i32_1 : i32, i32, i32
  }
}

</mosaic_0001>

<llo_original>
// kernel: forward.3
$region0: #{forward.3}
  #allocation0 [shape = 'u32[]', space=smem, size = 0x4, offset = 0x4, fixed_abs, tag = 'smem constant byte address 0x4 - core index']
  #allocation1 [shape = 'u32[144,128]{1,0:T(1,128)}', space=vmem, size = 0x12000, scoped, tag = 'internal scratch']
  %s0 = inlined_call_operand.vmem [shape: bf16[32,128], index: 0, kind: input, shape index: {}]
  %s1 = inlined_call_operand.vmem [shape: bf16[128,256], index: 1, kind: input, shape index: {}]
  %s2 = inlined_call_operand.hbm [shape: f32[32,256], index: 2, kind: output, shape index: {}]
  %s3 = sld [smem:[#allocation0]]
  $region18: #{forward.3} parent=0
    _
  %s5 = ssub.s32 1, %s3
  %s6 = scalar_select 0, %s5, %s3
  $region1: #{forward.3} parent=0
    #allocation2 [shape = 'u8[32768]{0}', space=vmem, size = 0x8000, scoped, tag = 'output window, operand 0, single buffered']
    #allocation3 [shape = 's32[1]{0}', space=sflag, size = 0x4, scoped, tag = 'scoped memory for forward.3']
    %7 = vsyncpa [#allocation3], 0
    // Predicated region
    $region2: #{forward.3} parent=1 // pred_check
      _
    $region3: #{forward.3} parent=1 // pred_check_branch
      %9 = sbr.rel (0) target = $region5
    $region4: #{forward.3} parent=1 // pred_region
      _
    $region5: #{forward.3} parent=1 // pred_fallthru
      _
    // Predicated region
    $region6: #{forward.3} parent=1 // pred_check
      _
    $region7: #{forward.3} parent=1 // pred_check_branch
      %11 = sbr.rel (0) target = $region9
    $region8: #{forward.3} parent=1 // pred_region
      _
    $region9: #{forward.3} parent=1 // pred_fallthru
      _
    %v13 = vld [vmem:[%s0] sm:$0xf]
    %v14 = vld [vmem:[%s0 + $0x4] sm:$0xf]
    %v15 = vld [vmem:[%s0 + $0x8] sm:$0xf]
    %v16 = vld [vmem:[%s0 + $0xc] sm:$0xf]
    %v17 = vld [vmem:[%s1] sm:$0xff]
    %v18 = vld [vmem:[%s1 + $0x8] sm:$0xff]
    %v19 = vld [vmem:[%s1 + $0x10] sm:$0xff]
    %v20 = vld [vmem:[%s1 + $0x18] sm:$0xff]
    %v21 = vld [vmem:[%s1 + $0x20] sm:$0xff]
    %v22 = vld [vmem:[%s1 + $0x28] sm:$0xff]
    %v23 = vld [vmem:[%s1 + $0x30] sm:$0xff]
    %v24 = vld [vmem:[%s1 + $0x38] sm:$0xff]
    %v25 = vld [vmem:[%s1 + $0x40] sm:$0xff]
    %v26 = vld [vmem:[%s1 + $0x48] sm:$0xff]
    %v27 = vld [vmem:[%s1 + $0x50] sm:$0xff]
    %v28 = vld [vmem:[%s1 + $0x58] sm:$0xff]
    %v29 = vld [vmem:[%s1 + $0x60] sm:$0xff]
    %v30 = vld [vmem:[%s1 + $0x68] sm:$0xff]
    %v31 = vld [vmem:[%s1 + $0x70] sm:$0xff]
    %v32 = vld [vmem:[%s1 + $0x78] sm:$0xff]
    %v37 = vunpack.c.l.b16 %v13
    %v38 = vunpack.c.l.b16 %v14
    %v39 = vunpack.c.l.b16 %v15
    %v40 = vunpack.c.l.b16 %v16
    %v41 = vpack.c.b16 %v38, %v37
    %v42 = vpack.c.b16 %v40, %v39
    %v61 = vunpack.c.l.b16 %v17
    %v62 = vunpack.c.h.b16 %v17
    %v63 = vunpack.c.l.b16 %v18
    %v64 = vunpack.c.h.b16 %v18
    %v65 = vunpack.c.l.b16 %v19
    %v66 = vunpack.c.h.b16 %v19
    %v67 = vunpack.c.l.b16 %v20
    %v68 = vunpack.c.h.b16 %v20
    %v69 = vunpack.c.l.b16 %v21
    %v70 = vunpack.c.h.b16 %v21
    %v71 = vunpack.c.l.b16 %v22
    %v72 = vunpack.c.h.b16 %v22
    %v73 = vunpack.c.l.b16 %v23
    %v74 = vunpack.c.h.b16 %v23
    %v75 = vunpack.c.l.b16 %v24
    %v76 = vunpack.c.h.b16 %v24
    %v77 = vunpack.c.l.b16 %v25
    %v78 = vunpack.c.h.b16 %v25
    %v79 = vunpack.c.l.b16 %v26
    %v80 = vunpack.c.h.b16 %v26
    %v81 = vunpack.c.l.b16 %v27
    %v82 = vunpack.c.h.b16 %v27
    %v83 = vunpack.c.l.b16 %v28
    %v84 = vunpack.c.h.b16 %v28
    %v85 = vunpack.c.l.b16 %v29
    %v86 = vunpack.c.h.b16 %v29
    %v87 = vunpack.c.l.b16 %v30
    %v88 = vunpack.c.h.b16 %v30
    %v89 = vunpack.c.l.b16 %v31
    %v90 = vunpack.c.h.b16 %v31
    %v91 = vunpack.c.l.b16 %v32
    %v92 = vunpack.c.h.b16 %v32
    %v93 = vpack.c.b16 %v63, %v61
    %v94 = vpack.c.b16 %v64, %v62
    %v95 = vpack.c.b16 %v67, %v65
    %v96 = vpack.c.b16 %v68, %v66
    %v97 = vpack.c.b16 %v71, %v69
    %v98 = vpack.c.b16 %v72, %v70
    %v99 = vpack.c.b16 %v75, %v73
    %v100 = vpack.c.b16 %v76, %v74
    %v101 = vpack.c.b16 %v79, %v77
    %v102 = vpack.c.b16 %v80, %v78
    %v103 = vpack.c.b16 %v83, %v81
    %v104 = vpack.c.b16 %v84, %v82
    %v105 = vpack.c.b16 %v87, %v85
    %v106 = vpack.c.b16 %v88, %v86
    %v107 = vpack.c.b16 %v91, %v89
    %v108 = vpack.c.b16 %v92, %v90
    %125 = vmatprep.subr.bf16.mxu0 %v108
    %126 = vmatpush1.bf16.msra.mxu0 %v107
    %127 = vmatprep.subr.bf16.mxu0 %v106
    %128 = vmatpush1.bf16.msra.mxu0 %v105
    %129 = vmatprep.subr.bf16.mxu0 %v104
    %130 = vmatpush1.bf16.msra.mxu0 %v103
    %131 = vmatprep.subr.bf16.mxu0 %v102
    %132 = vmatpush1.bf16.msra.mxu0 %v101
    %133 = vmatprep.subr.bf16.mxu0 %v100
    %134 = vmatpush1.bf16.msra.mxu0 %v99
    %135 = vmatprep.subr.bf16.mxu0 %v98
    %136 = vmatpush1.bf16.msra.mxu0 %v97
    %137 = vmatprep.subr.bf16.mxu0 %v96
    %138 = vmatpush1.bf16.msra.mxu0 %v95
    %139 = vmatprep.subr.bf16.mxu0 %v94
    %140 = vmatpush1.bf16.msra.mxu0 %v93
    %141 = vmatprep.subr.bf16.mxu0 0
    %142 = vmatpush2.bf16.msra.mxu0 0
    %143 = vmatprep.subr.bf16.mxu0 0
    %144 = vmatpush2.bf16.msra.mxu0 0
    %145 = vmatprep.subr.bf16.mxu0 0
    %146 = vmatpush2.bf16.msra.mxu0 0
    %147 = vmatprep.subr.bf16.mxu0 0
    %148 = vmatpush2.bf16.msra.mxu0 0
    %149 = vmatprep.subr.bf16.mxu0 0
    %150 = vmatpush2.bf16.msra.mxu0 0
    %151 = vmatprep.subr.bf16.mxu0 0
    %152 = vmatpush2.bf16.msra.mxu0 0
    %153 = vmatprep.subr.bf16.mxu0 0
    %154 = vmatpush2.bf16.msra.mxu0 0
    %155 = vmatprep.subr.bf16.mxu0 0
    %156 = vmatpush2.bf16.msra.mxu0 0
    %157 = vmatprep.mubr.bf16.mxu0 0
    %158 = vmatmul.mubr.bf16.gmra.mxu0 %v41
    %v159 = vpop.f32.mrf.mxu0
    %v160 = vadd.f32 0.0, %v159
    %v161 = vpop.f32.mrf.mxu0
    %v162 = vadd.f32 0.0, %v161
    %v163 = vpop.f32.mrf.mxu0
    %v164 = vadd.f32 0.0, %v163
    %v165 = vpop.f32.mrf.mxu0
    %v166 = vadd.f32 0.0, %v165
    %167 = vmatprep.mubr.bf16.mxu0 0
    %168 = vmatmul.mubr.bf16.gmra.mxu0 %v42
    %v169 = vpop.f32.mrf.mxu0
    %v170 = vadd.f32 0.0, %v169
    %v171 = vpop.f32.mrf.mxu0
    %v172 = vadd.f32 0.0, %v171
    %v173 = vpop.f32.mrf.mxu0
    %v174 = vadd.f32 0.0, %v173
    %v175 = vpop.f32.mrf.mxu0
    %v176 = vadd.f32 0.0, %v175
    %177 = vdwg.mxu0
    %178 = vst [vmem:[#allocation2] sm:$0xff] %v160
    %179 = vst [vmem:[#allocation2 + $0x8] sm:$0xff] %v162
    %180 = vst [vmem:[#allocation2 + $0x10] sm:$0xff] %v164
    %181 = vst [vmem:[#allocation2 + $0x18] sm:$0xff] %v166
    %182 = vst [vmem:[#allocation2 + $0x20] sm:$0xff] %v170
    %183 = vst [vmem:[#allocation2 + $0x28] sm:$0xff] %v172
    %184 = vst [vmem:[#allocation2 + $0x30] sm:$0xff] %v174
    %185 = vst [vmem:[#allocation2 + $0x38] sm:$0xff] %v176
    // Predicated region
    $region10: #{forward.3} parent=1 // pred_check
      _
    $region11: #{forward.3} parent=1 // pred_check_branch
      %187 = sbr.rel (0) target = $region13
    $region12: #{forward.3} parent=1 // pred_region
      %s189 = ssub.s32 1024, 1024
      %190 = vsyncadd [#allocation3], %s189
      %s191 = sshll.u32 [#allocation2], 4
      %s192 = int_to_ptr.vmem [resolvable:$true] %s191
      %197 = dma.vmem_to_hbm [thread:$0]  %s192, 1024, %s2, [#allocation3], 256, 256, 16
    $region13: #{forward.3} parent=1 // pred_fallthru
      _
    // Predicated region
    $region14: #{forward.3} parent=1 // pred_check
      _
    $region15: #{forward.3} parent=1 // pred_check_branch
      %199 = sbr.rel (0) target = $region17
    $region16: #{forward.3} parent=1 // pred_region
      %200 = dma.done [#allocation3], 1024
    $region17: #{forward.3} parent=1 // pred_fallthru
      _
    %201 = vsyncpa [#allocation3], 1

// kernel: forward.2
$region0: #{forward.2}
  #allocation0 [shape = 'u32[]', space=smem, size = 0x4, offset = 0x4, fixed_abs, tag = 'smem constant byte address 0x4 - core index']
  #allocation1 [shape = 'u32[144,128]{1,0:T(1,128)}', space=vmem, size = 0x12000, scoped, tag = 'internal scratch']
  #allocation2 [shape = 'f32[16,16]{1,0:T(8,128)}', space=vmem, size = 0x2000, scoped, tag = 'scratch operand']
  %s0 = inlined_call_operand.vmem [shape: f32[2,16,128], index: 0, kind: input, shape index: {}]
  %s1 = inlined_call_operand.vmem [shape: bf16[2,128,384], index: 1, kind: input, shape index: {}]
  %s2 = inlined_call_operand.vmem [shape: f32[2,1,384], index: 2, kind: input, shape index: {}]
  %s3 = inlined_call_operand.hbm [shape: bf16[2,128,128], index: 3, kind: input, shape index: {}]
  %s4 = inlined_call_operand.vmem [shape: f32[2,1,128], index: 4, kind: input, shape index: {}]
  %s5 = inlined_call_operand.vmem [shape: f32[2,1,128], index: 5, kind: input, shape index: {}]
  %s6 = inlined_call_operand.vmem [shape: f32[2,1,128], index: 6, kind: input, shape index: {}]
  %s7 = inlined_call_operand.hbm [shape: bf16[2,128,512], index: 7, kind: input, shape index: {}]
  %s8 = inlined_call_operand.vmem [shape: f32[2,1,512], index: 8, kind: input, shape index: {}]
  %s9 = inlined_call_operand.hbm [shape: bf16[2,512,128], index: 9, kind: input, shape index: {}]
  %s10 = inlined_call_operand.vmem [shape: f32[2,1,128], index: 10, kind: input, shape index: {}]
  %s11 = inlined_call_operand.vmem [shape: f32[2,1,128], index: 11, kind: input, shape index: {}]
  %s12 = inlined_call_operand.vmem [shape: f32[2,1,128], index: 12, kind: input, shape index: {}]
  %s13 = inlined_call_operand.vmem [shape: f32[2,16,128], index: 13, kind: output, shape index: {}]
  %s14 = sld [smem:[#allocation0]]
  $region101: #{forward.2} parent=0
    _
  %s16 = ssub.s32 1, %s14
  %s17 = scalar_select 0, %s16, %s14
  $region1: #{forward.2} parent=0
    #allocation3 [shape = 'u8[65536]{0}', space=vmem, size = 0x10000, scoped, tag = 'input window, operand 3']
    #allocation4 [shape = 's32[2]{0}', space=sflag, size = 0x8, scoped, tag = 'scoped memory for forward.2']
    #allocation5 [shape = 'u8[262144]{0}', space=vmem, size = 0x40000, scoped, tag = 'input window, operand 7']
    #allocation6 [shape = 's32[2]{0}', space=sflag, size = 0x8, scoped, tag = 'scoped memory for forward.2']
    #allocation7 [shape = 'u8[262144]{0}', space=vmem, size = 0x40000, scoped, tag = 'input window, operand 9']
    %18 = vsyncpa [#allocation4], 0
    %s19 = scalar_lea.sflag [#allocation4], 1
    %20 = vsyncpa %s19, 0
    %21 = vsyncpa [#allocation6], 0
    %s22 = scalar_lea.sflag [#allocation6], 1
    %23 = vsyncpa %s22, 0
    loop: start=0, step=1, limit=4
    $region2: #{forward.2} parent=1 // loop_pre_header
      _
    $region3: #{forward.2} parent=1 // loop_header
      %s25 = sphi 0, %s29
      %p26 = scmp.ge.s32.totalorder %s25, 4
      %s33 = sphi 0, %s33
      %s35 = sphi 0, %s33
      %s36 = sphi 0, %s35
      %s50 = sphi 0, %s36
      %s56 = sphi 0, %s58
      %s59 = sphi 0, %s56
      %s60 = sphi 0, %s59
      %s76 = sphi 0, %s60
      %s82 = sphi 0, %s84
      %s85 = sphi 0, %s82
      %s86 = sphi 0, %s85
      %s102 = sphi 0, %s86
      %s108 = sphi 0, %s110
      %s111 = sphi 0, %s108
      %s112 = sphi 0, %s111
      %s128 = sphi 0, %s112
      %s134 = sphi 0, %s136
      %s137 = sphi 0, %s134
      %s138 = sphi 0, %s137
      %s154 = sphi 0, %s138
      %s160 = sphi 0, %s162
      %s163 = sphi 0, %s160
      %s164 = sphi 0, %s163
      %s180 = sphi 0, %s164
      %s186 = sphi 0, %s188
      %s189 = sphi 0, %s186
      %s190 = sphi 0, %s189
      %s206 = sphi 0, %s190
      %s212 = sphi 0, %s214
      %s215 = sphi 0, %s212
      %s216 = sphi 0, %s215
      %s232 = sphi 0, %s216
      %s238 = sphi 0, %s240
      %s241 = sphi 0, %s238
      %s242 = sphi 0, %s241
      %s258 = sphi 0, %s242
      %s264 = sphi 0, %s266
      %s267 = sphi 0, %s264
      %s268 = sphi 0, %s267
      %s284 = sphi 0, %s268
      %s290 = sphi 0, %s292
      %s293 = sphi 0, %s290
      %s294 = sphi 0, %s293
      %s310 = sphi 0, %s294
      %s316 = sphi 0, %s318
      %s319 = sphi 0, %s316
      %s320 = sphi 0, %s319
      %s336 = sphi 0, %s320
      %s342 = sphi 0, %s344
      %s345 = sphi 0, %s342
      %s346 = sphi 0, %s345
      %s362 = sphi 0, %s346
      %s366 = sphi 0, %s366
      %s368 = sphi 0, %s366
      %s369 = sphi 0, %s368
      %s383 = sphi 0, %s369
    $region4: #{forward.2} parent=1 // loop_header_branch
      %28 = sbr.rel (%p26) target = $region8
    $region5: #{forward.2} parent=1 // loop_body
      %s30 = ssub.s32 %s25, 1
      %s31 = ssub.s32 %s25, 2
      %s32 = sadd.s32 %s25, 1
      %s34 = sadd.s32 %s33, 1
      %p37 = scmp.eq.s32.totalorder %s25, 1
      %p38 = scmp.ne.s32.totalorder %s33, %s35
      %p39 = scmp.eq.s32.totalorder %s25, 0
      %p40 = por %p38, %p39
      %p41 = scmp.ne.s32.totalorder %s33, %s35
      %p42 = scmp.eq.s32.totalorder %s30, 1
      %p43 = por %p41, %p42
      %p44 = scmp.ne.s32.totalorder %s35, %s36
      %p45 = scmp.eq.s32.totalorder %s30, 0
      %p46 = por %p44, %p45
      %p47 = scmp.ne.s32.totalorder %s35, %s36
      %p48 = scmp.eq.s32.totalorder %s31, 1
      %p49 = por %p47, %p48
      %p51 = scmp.ne.s32.totalorder %s36, %s50
      %p52 = scmp.eq.s32.totalorder %s31, 0
      %p53 = por %p51, %p52
      %s54 = ssub.s32 %s25, %s32
      %p55 = scmp.eq.s32.totalorder %s54, 0
      %s57 = sadd.s32 %s56, 1
      %s58 = scalar_select %p55, %s56, %s57
      %p61 = pneg %p55
      %p62 = scmp.eq.s32.totalorder %s25, 1
      %p63 = por %p61, %p62
      %p64 = scmp.ne.s32.totalorder %s56, %s59
      %p65 = scmp.eq.s32.totalorder %s25, 0
      %p66 = por %p64, %p65
      %p67 = scmp.ne.s32.totalorder %s56, %s59
      %p68 = scmp.eq.s32.totalorder %s30, 1
      %p69 = por %p67, %p68
      %p70 = scmp.ne.s32.totalorder %s59, %s60
      %p71 = scmp.eq.s32.totalorder %s30, 0
      %p72 = por %p70, %p71
      %p73 = scmp.ne.s32.totalorder %s59, %s60
      %p74 = scmp.eq.s32.totalorder %s31, 1
      %p75 = por %p73, %p74
      %p77 = scmp.ne.s32.totalorder %s60, %s76
      %p78 = scmp.eq.s32.totalorder %s31, 0
      %p79 = por %p77, %p78
      %s80 = ssub.s32 %s25, %s32
      %p81 = scmp.eq.s32.totalorder %s80, 0
      %s83 = sadd.s32 %s82, 1
      %s84 = scalar_select %p81, %s82, %s83
      %p87 = pneg %p81
      %p88 = scmp.eq.s32.totalorder %s25, 1
      %p89 = por %p87, %p88
      %p90 = scmp.ne.s32.totalorder %s82, %s85
      %p91 = scmp.eq.s32.totalorder %s25, 0
      %p92 = por %p90, %p91
      %p93 = scmp.ne.s32.totalorder %s82, %s85
      %p94 = scmp.eq.s32.totalorder %s30, 1
      %p95 = por %p93, %p94
      %p96 = scmp.ne.s32.totalorder %s85, %s86
      %p97 = scmp.eq.s32.totalorder %s30, 0
      %p98 = por %p96, %p97
      %p99 = scmp.ne.s32.totalorder %s85, %s86
      %p100 = scmp.eq.s32.totalorder %s31, 1
      %p101 = por %p99, %p100
      %p103 = scmp.ne.s32.totalorder %s86, %s102
      %p104 = scmp.eq.s32.totalorder %s31, 0
      %p105 = por %p103, %p104
      %s106 = ssub.s32 %s25, %s32
      %p107 = scmp.eq.s32.totalorder %s106, 0
      %s109 = sadd.s32 %s108, 1
      %s110 = scalar_select %p107, %s108, %s109
      %p113 = pneg %p107
      %p114 = scmp.eq.s32.totalorder %s25, 1
      %p115 = por %p113, %p114
      %p116 = scmp.ne.s32.totalorder %s108, %s111
      %p117 = scmp.eq.s32.totalorder %s25, 0
      %p118 = por %p116, %p117
      %p119 = scmp.ne.s32.totalorder %s108, %s111
      %p120 = scmp.eq.s32.totalorder %s30, 1
      %p121 = por %p119, %p120
      %p122 = scmp.ne.s32.totalorder %s111, %s112
      %p123 = scmp.eq.s32.totalorder %s30, 0
      %p124 = por %p122, %p123
      %p125 = scmp.ne.s32.totalorder %s111, %s112
      %p126 = scmp.eq.s32.totalorder %s31, 1
      %p127 = por %p125, %p126
      %p129 = scmp.ne.s32.totalorder %s112, %s128
      %p130 = scmp.eq.s32.totalorder %s31, 0
      %p131 = por %p129, %p130
      %s132 = ssub.s32 %s25, %s32
      %p133 = scmp.eq.s32.totalorder %s132, 0
      %s135 = sadd.s32 %s134, 1
      %s136 = scalar_select %p133, %s134, %s135
      %p139 = pneg %p133
      %p140 = scmp.eq.s32.totalorder %s25, 1
      %p141 = por %p139, %p140
      %p142 = scmp.ne.s32.totalorder %s134, %s137
      %p143 = scmp.eq.s32.totalorder %s25, 0
      %p144 = por %p142, %p143
      %p145 = scmp.ne.s32.totalorder %s134, %s137
      %p146 = scmp.eq.s32.totalorder %s30, 1
      %p147 = por %p145, %p146
      %p148 = scmp.ne.s32.totalorder %s137, %s138
      %p149 = scmp.eq.s32.totalorder %s30, 0
      %p150 = por %p148, %p149
      %p151 = scmp.ne.s32.totalorder %s137, %s138
      %p152 = scmp.eq.s32.totalorder %s31, 1
      %p153 = por %p151, %p152
      %p155 = scmp.ne.s32.totalorder %s138, %s154
      %p156 = scmp.eq.s32.totalorder %s31, 0
      %p157 = por %p155, %p156
      %s158 = ssub.s32 %s25, %s32
      %p159 = scmp.eq.s32.totalorder %s158, 0
      %s161 = sadd.s32 %s160, 1
      %s162 = scalar_select %p159, %s160, %s161
      %p165 = pneg %p159
      %p166 = scmp.eq.s32.totalorder %s25, 1
      %p167 = por %p165, %p166
      %p168 = scmp.ne.s32.totalorder %s160, %s163
      %p169 = scmp.eq.s32.totalorder %s25, 0
      %p170 = por %p168, %p169
      %p171 = scmp.ne.s32.totalorder %s160, %s163
      %p172 = scmp.eq.s32.totalorder %s30, 1
      %p173 = por %p171, %p172
      %p174 = scmp.ne.s32.totalorder %s163, %s164
      %p175 = scmp.eq.s32.totalorder %s30, 0
      %p176 = por %p174, %p175
      %p177 = scmp.ne.s32.totalorder %s163, %s164
      %p178 = scmp.eq.s32.totalorder %s31, 1
      %p179 = por %p177, %p178
      %p181 = scmp.ne.s32.totalorder %s164, %s180
      %p182 = scmp.eq.s32.totalorder %s31, 0
      %p183 = por %p181, %p182
      %s184 = ssub.s32 %s25, %s32
      %p185 = scmp.eq.s32.totalorder %s184, 0
      %s187 = sadd.s32 %s186, 1
      %s188 = scalar_select %p185, %s186, %s187
      %p191 = pneg %p185
      %p192 = scmp.eq.s32.totalorder %s25, 1
      %p193 = por %p191, %p192
      %p194 = scmp.ne.s32.totalorder %s186, %s189
      %p195 = scmp.eq.s32.totalorder %s25, 0
      %p196 = por %p194, %p195
      %p197 = scmp.ne.s32.totalorder %s186, %s189
      %p198 = scmp.eq.s32.totalorder %s30, 1
      %p199 = por %p197, %p198
      %p200 = scmp.ne.s32.totalorder %s189, %s190
      %p201 = scmp.eq.s32.totalorder %s30, 0
      %p202 = por %p200, %p201
      %p203 = scmp.ne.s32.totalorder %s189, %s190
      %p204 = scmp.eq.s32.totalorder %s31, 1
      %p205 = por %p203, %p204
      %p207 = scmp.ne.s32.totalorder %s190, %s206
      %p208 = scmp.eq.s32.totalorder %s31, 0
      %p209 = por %p207, %p208
      %s210 = ssub.s32 %s25, %s32
      %p211 = scmp.eq.s32.totalorder %s210, 0
      %s213 = sadd.s32 %s212, 1
      %s214 = scalar_select %p211, %s212, %s213
      %p217 = pneg %p211
      %p218 = scmp.eq.s32.totalorder %s25, 1
      %p219 = por %p217, %p218
      %p220 = scmp.ne.s32.totalorder %s212, %s215
      %p221 = scmp.eq.s32.totalorder %s25, 0
      %p222 = por %p220, %p221
      %p223 = scmp.ne.s32.totalorder %s212, %s215
      %p224 = scmp.eq.s32.totalorder %s30, 1
      %p225 = por %p223, %p224
      %p226 = scmp.ne.s32.totalorder %s215, %s216
      %p227 = scmp.eq.s32.totalorder %s30, 0
      %p228 = por %p226, %p227
      %p229 = scmp.ne.s32.totalorder %s215, %s216
      %p230 = scmp.eq.s32.totalorder %s31, 1
      %p231 = por %p229, %p230
      %p233 = scmp.ne.s32.totalorder %s216, %s232
      %p234 = scmp.eq.s32.totalorder %s31, 0
      %p235 = por %p233, %p234
      %s236 = ssub.s32 %s25, %s32
      %p237 = scmp.eq.s32.totalorder %s236, 0
      %s239 = sadd.s32 %s238, 1
      %s240 = scalar_select %p237, %s238, %s239
      %p243 = pneg %p237
      %p244 = scmp.eq.s32.totalorder %s25, 1
      %p245 = por %p243, %p244
      %p246 = scmp.ne.s32.totalorder %s238, %s241
      %p247 = scmp.eq.s32.totalorder %s25, 0
      %p248 = por %p246, %p247
      %p249 = scmp.ne.s32.totalorder %s238, %s241
      %p250 = scmp.eq.s32.totalorder %s30, 1
      %p251 = por %p249, %p250
      %p252 = scmp.ne.s32.totalorder %s241, %s242
      %p253 = scmp.eq.s32.totalorder %s30, 0
      %p254 = por %p252, %p253
      %p255 = scmp.ne.s32.totalorder %s241, %s242
      %p256 = scmp.eq.s32.totalorder %s31, 1
      %p257 = por %p255, %p256
      %p259 = scmp.ne.s32.totalorder %s242, %s258
      %p260 = scmp.eq.s32.totalorder %s31, 0
      %p261 = por %p259, %p260
      %s262 = ssub.s32 %s25, %s32
      %p263 = scmp.eq.s32.totalorder %s262, 0
      %s265 = sadd.s32 %s264, 1
      %s266 = scalar_select %p263, %s264, %s265
      %p269 = pneg %p263
      %p270 = scmp.eq.s32.totalorder %s25, 1
      %p271 = por %p269, %p270
      %p272 = scmp.ne.s32.totalorder %s264, %s267
      %p273 = scmp.eq.s32.totalorder %s25, 0
      %p274 = por %p272, %p273
      %p275 = scmp.ne.s32.totalorder %s264, %s267
      %p276 = scmp.eq.s32.totalorder %s30, 1
      %p277 = por %p275, %p276
      %p278 = scmp.ne.s32.totalorder %s267, %s268
      %p279 = scmp.eq.s32.totalorder %s30, 0
      %p280 = por %p278, %p279
      %p281 = scmp.ne.s32.totalorder %s267, %s268
      %p282 = scmp.eq.s32.totalorder %s31, 1
      %p283 = por %p281, %p282
      %p285 = scmp.ne.s32.totalorder %s268, %s284
      %p286 = scmp.eq.s32.totalorder %s31, 0
      %p287 = por %p285, %p286
      %s288 = ssub.s32 %s25, %s32
      %p289 = scmp.eq.s32.totalorder %s288, 0
      %s291 = sadd.s32 %s290, 1
      %s292 = scalar_select %p289, %s290, %s291
      %p295 = pneg %p289
      %p296 = scmp.eq.s32.totalorder %s25, 1
      %p297 = por %p295, %p296
      %p298 = scmp.ne.s32.totalorder %s290, %s293
      %p299 = scmp.eq.s32.totalorder %s25, 0
      %p300 = por %p298, %p299
      %p301 = scmp.ne.s32.totalorder %s290, %s293
      %p302 = scmp.eq.s32.totalorder %s30, 1
      %p303 = por %p301, %p302
      %p304 = scmp.ne.s32.totalorder %s293, %s294
      %p305 = scmp.eq.s32.totalorder %s30, 0
      %p306 = por %p304, %p305
      %p307 = scmp.ne.s32.totalorder %s293, %s294
      %p308 = scmp.eq.s32.totalorder %s31, 1
      %p309 = por %p307, %p308
      %p311 = scmp.ne.s32.totalorder %s294, %s310
      %p312 = scmp.eq.s32.totalorder %s31, 0
      %p313 = por %p311, %p312
      %s314 = ssub.s32 %s25, %s32
      %p315 = scmp.eq.s32.totalorder %s314, 0
      %s317 = sadd.s32 %s316, 1
      %s318 = scalar_select %p315, %s316, %s317
      %p321 = pneg %p315
      %p322 = scmp.eq.s32.totalorder %s25, 1
      %p323 = por %p321, %p322
      %p324 = scmp.ne.s32.totalorder %s316, %s319
      %p325 = scmp.eq.s32.totalorder %s25, 0
      %p326 = por %p324, %p325
      %p327 = scmp.ne.s32.totalorder %s316, %s319
      %p328 = scmp.eq.s32.totalorder %s30, 1
      %p329 = por %p327, %p328
      %p330 = scmp.ne.s32.totalorder %s319, %s320
      %p331 = scmp.eq.s32.totalorder %s30, 0
      %p332 = por %p330, %p331
      %p333 = scmp.ne.s32.totalorder %s319, %s320
      %p334 = scmp.eq.s32.totalorder %s31, 1
      %p335 = por %p333, %p334
      %p337 = scmp.ne.s32.totalorder %s320, %s336
      %p338 = scmp.eq.s32.totalorder %s31, 0
      %p339 = por %p337, %p338
      %s340 = ssub.s32 %s25, %s32
      %p341 = scmp.eq.s32.totalorder %s340, 0
      %s343 = sadd.s32 %s342, 1
      %s344 = scalar_select %p341, %s342, %s343
      %p347 = pneg %p341
      %p348 = scmp.eq.s32.totalorder %s25, 1
      %p349 = por %p347, %p348
      %p350 = scmp.ne.s32.totalorder %s342, %s345
      %p351 = scmp.eq.s32.totalorder %s25, 0
      %p352 = por %p350, %p351
      %p353 = scmp.ne.s32.totalorder %s342, %s345
      %p354 = scmp.eq.s32.totalorder %s30, 1
      %p355 = por %p353, %p354
      %p356 = scmp.ne.s32.totalorder %s345, %s346
      %p357 = scmp.eq.s32.totalorder %s30, 0
      %p358 = por %p356, %p357
      %p359 = scmp.ne.s32.totalorder %s345, %s346
      %p360 = scmp.eq.s32.totalorder %s31, 1
      %p361 = por %p359, %p360
      %p363 = scmp.ne.s32.totalorder %s346, %s362
      %p364 = scmp.eq.s32.totalorder %s31, 0
      %p365 = por %p363, %p364
      %s367 = sadd.s32 %s366, 1
      %p370 = scmp.eq.s32.totalorder %s25, 1
      %p371 = scmp.ne.s32.totalorder %s366, %s368
      %p372 = scmp.eq.s32.totalorder %s25, 0
      %p373 = por %p371, %p372
      %p374 = scmp.ne.s32.totalorder %s366, %s368
      %p375 = scmp.eq.s32.totalorder %s30, 1
      %p376 = por %p374, %p375
      %p377 = scmp.ne.s32.totalorder %s368, %s369
      %p378 = scmp.eq.s32.totalorder %s30, 0
      %p379 = por %p377, %p378
      %p380 = scmp.ne.s32.totalorder %s368, %s369
      %p381 = scmp.eq.s32.totalorder %s31, 1
      %p382 = por %p380, %p381
      %p384 = scmp.ne.s32.totalorder %s369, %s383
      %p385 = scmp.eq.s32.totalorder %s31, 0
      %p386 = por %p384, %p385
      %p387 = scmp.le.s32.totalorder 1, %s25
      %p388 = scmp.lt.s32.totalorder %s25, 3
      %p389 = pnand %p387, %p388
      %p390 = pneg %p389
      // Predicated region
      $region9: #{forward.2} parent=5 // pred_check
        _
      $region10: #{forward.2} parent=5 // pred_check_branch
        %392 = sbr.rel (%p389) target = $region12
      $region11: #{forward.2} parent=5 // pred_region
        %s393 = ssub.s32 %s25, 1
        // Predicated region
        $region13: #{forward.2} parent=11 // pred_check
          %p394 = pneg %p46
        $region14: #{forward.2} parent=11 // pred_check_branch
          %396 = sbr.rel (%p394) target = $region16
        $region15: #{forward.2} parent=11 // pred_region
          _
        $region16: #{forward.2} parent=11 // pred_fallthru
          _
      $region12: #{forward.2} parent=5 // pred_fallthru
        _
      %p397 = scmp.lt.s32.totalorder %s25, 2
      // Predicated region
      $region17: #{forward.2} parent=5 // pred_check
        %p398 = pneg %p397
      $region18: #{forward.2} parent=5 // pred_check_branch
        %400 = sbr.rel (%p398) target = $region20
      $region19: #{forward.2} parent=5 // pred_region
        // Predicated region
        $region21: #{forward.2} parent=19 // pred_check
          %p401 = pneg %p66
        $region22: #{forward.2} parent=19 // pred_check_branch
          %403 = sbr.rel (%p401) target = $region24
        $region23: #{forward.2} parent=19 // pred_region
          %p404 = scmp.lt.s32.totalorder %s25, 1
          %s405 = scalar_select %p404, %s25, 1
          %s406 = smul.addr %s405, 48
          %s407 = smul.addr %s406, 4
          %s408 = scalar_lea.vmem %s1, %s407
        $region24: #{forward.2} parent=19 // pred_fallthru
          _
        // Predicated region
        $region25: #{forward.2} parent=19 // pred_check
          %p409 = pneg %p92
        $region26: #{forward.2} parent=19 // pred_check_branch
          %411 = sbr.rel (%p409) target = $region28
        $region27: #{forward.2} parent=19 // pred_region
          %p412 = scmp.lt.s32.totalorder %s25, 1
          %s413 = scalar_select %p412, %s25, 1
          %s414 = smul.addr %s413, 3
          %s415 = scalar_lea.vmem %s2, %s414
        $region28: #{forward.2} parent=19 // pred_fallthru
          _
        // Predicated region
        $region29: #{forward.2} parent=19 // pred_check
          %p416 = pneg %p118
        $region30: #{forward.2} parent=19 // pred_check_branch
          %418 = sbr.rel (%p416) target = $region32
        $region31: #{forward.2} parent=19 // pred_region
          %s419 = sand.u32 %s108, 1
          %s420 = scalar_lea.sflag [#allocation4], %s419
          %s421 = sand.u32 %s108, 1
          %s422 = smul.addr %s421, 64
          %s423 = scalar_lea.vmem [#allocation3], %s422
          %s425 = ssub.s32 1024, 1024
          %426 = vsyncadd %s420, %s425
          %s427 = smul.addr %s25, 16
          %s428 = smul.addr %s427, 64
          %s429 = scalar_lea.hbm %s3, %s428
          %s430 = sshll.u32 %s423, 4
          %s431 = int_to_ptr.vmem [resolvable:$true] %s430
          %436 = dma.hbm_to_vmem [thread:$0]  %s429, 1024, %s431, %s420, 64, 64, 4
        $region32: #{forward.2} parent=19 // pred_fallthru
          _
        // Predicated region
        $region33: #{forward.2} parent=19 // pred_check
          %p437 = pneg %p144
        $region34: #{forward.2} parent=19 // pred_check_branch
          %439 = sbr.rel (%p437) target = $region36
        $region35: #{forward.2} parent=19 // pred_region
          %p440 = scmp.lt.s32.totalorder %s25, 1
          %s441 = scalar_select %p440, %s25, 1
          %s442 = scalar_lea.vmem %s4, %s441
        $region36: #{forward.2} parent=19 // pred_fallthru
          _
        // Predicated region
        $region37: #{forward.2} parent=19 // pred_check
          %p443 = pneg %p170
        $region38: #{forward.2} parent=19 // pred_check_branch
          %445 = sbr.rel (%p443) target = $region40
        $region39: #{forward.2} parent=19 // pred_region
          %p446 = scmp.lt.s32.totalorder %s25, 1
          %s447 = scalar_select %p446, %s25, 1
          %s448 = scalar_lea.vmem %s5, %s447
        $region40: #{forward.2} parent=19 // pred_fallthru
          _
        // Predicated region
        $region41: #{forward.2} parent=19 // pred_check
          %p449 = pneg %p196
        $region42: #{forward.2} parent=19 // pred_check_branch
          %451 = sbr.rel (%p449) target = $region44
        $region43: #{forward.2} parent=19 // pred_region
          %p452 = scmp.lt.s32.totalorder %s25, 1
          %s453 = scalar_select %p452, %s25, 1
          %s454 = scalar_lea.vmem %s6, %s453
        $region44: #{forward.2} parent=19 // pred_fallthru
          _
        // Predicated region
        $region45: #{forward.2} parent=19 // pred_check
          %p455 = pneg %p222
        $region46: #{forward.2} parent=19 // pred_check_branch
          %457 = sbr.rel (%p455) target = $region48
        $region47: #{forward.2} parent=19 // pred_region
          %s458 = sand.u32 %s25, 1
          %s459 = scalar_lea.sflag [#allocation6], %s458
          %s460 = sand.u32 %s212, 1
          %s461 = smul.addr %s460, 256
          %s462 = scalar_lea.vmem [#allocation5], %s461
          %s464 = ssub.s32 4096, 4096
          %465 = vsyncadd %s459, %s464
          %s466 = smul.addr %s25, 64
          %s467 = smul.addr %s466, 64
          %s468 = scalar_lea.hbm %s7, %s467
          %s469 = sshll.u32 %s462, 4
          %s470 = int_to_ptr.vmem [resolvable:$true] %s469
          %475 = dma.hbm_to_vmem [thread:$0]  %s468, 4096, %s470, %s459, 256, 256, 16
        $region48: #{forward.2} parent=19 // pred_fallthru
          _
        // Predicated region
        $region49: #{forward.2} parent=19 // pred_check
          %p476 = pneg %p248
        $region50: #{forward.2} parent=19 // pred_check_branch
          %478 = sbr.rel (%p476) target = $region52
        $region51: #{forward.2} parent=19 // pred_region
          %p479 = scmp.lt.s32.totalorder %s25, 1
          %s480 = scalar_select %p479, %s25, 1
          %s481 = smul.addr %s480, 4
          %s482 = scalar_lea.vmem %s8, %s481
        $region52: #{forward.2} parent=19 // pred_fallthru
          _
        // Predicated region
        $region53: #{forward.2} parent=19 // pred_check
          %p483 = pneg %p274
        $region54: #{forward.2} parent=19 // pred_check_branch
          %485 = sbr.rel (%p483) target = $region56
        $region55: #{forward.2} parent=19 // pred_region
          %s486 = sand.u32 %s25, 1
          %s487 = scalar_lea.sflag [#allocation6], %s486
          %s488 = sand.u32 %s264, 1
          %s489 = smul.addr %s488, 256
          %s490 = scalar_lea.vmem [#allocation7], %s489
          %s492 = ssub.s32 4096, 4096
          %493 = vsyncadd %s487, %s492
          %s494 = smul.addr %s25, 64
          %s495 = smul.addr %s494, 64
          %s496 = scalar_lea.hbm %s9, %s495
          %s497 = sshll.u32 %s490, 4
          %s498 = int_to_ptr.vmem [resolvable:$true] %s497
          %503 = dma.hbm_to_vmem [thread:$0]  %s496, 4096, %s498, %s487, 64, 64, 4
        $region56: #{forward.2} parent=19 // pred_fallthru
          _
        // Predicated region
        $region57: #{forward.2} parent=19 // pred_check
          %p504 = pneg %p300
        $region58: #{forward.2} parent=19 // pred_check_branch
          %506 = sbr.rel (%p504) target = $region60
        $region59: #{forward.2} parent=19 // pred_region
          %p507 = scmp.lt.s32.totalorder %s25, 1
          %s508 = scalar_select %p507, %s25, 1
          %s509 = scalar_lea.vmem %s10, %s508
        $region60: #{forward.2} parent=19 // pred_fallthru
          _
        // Predicated region
        $region61: #{forward.2} parent=19 // pred_check
          %p510 = pneg %p326
        $region62: #{forward.2} parent=19 // pred_check_branch
          %512 = sbr.rel (%p510) target = $region64
        $region63: #{forward.2} parent=19 // pred_region
          %p513 = scmp.lt.s32.totalorder %s25, 1
          %s514 = scalar_select %p513, %s25, 1
          %s515 = scalar_lea.vmem %s11, %s514
        $region64: #{forward.2} parent=19 // pred_fallthru
          _
        // Predicated region
        $region65: #{forward.2} parent=19 // pred_check
          %p516 = pneg %p352
        $region66: #{forward.2} parent=19 // pred_check_branch
          %518 = sbr.rel (%p516) target = $region68
        $region67: #{forward.2} parent=19 // pred_region
          %p519 = scmp.lt.s32.totalorder %s25, 1
          %s520 = scalar_select %p519, %s25, 1
          %s521 = scalar_lea.vmem %s12, %s520
        $region68: #{forward.2} parent=19 // pred_fallthru
          _
      $region20: #{forward.2} parent=5 // pred_fallthru
        _
      %p522 = scmp.le.s32.totalorder 1, %s25
      %p523 = scmp.lt.s32.totalorder %s25, 3
      %p524 = pnand %p522, %p523
      %p525 = pneg %p524
      // Predicated region
      $region69: #{forward.2} parent=5 // pred_check
        _
      $region70: #{forward.2} parent=5 // pred_check_branch
        %527 = sbr.rel (%p524) target = $region72
      $region71: #{forward.2} parent=5 // pred_region
        %s528 = ssub.s32 %s25, 1
        %s529 = sand.u32 %s111, 1
        %s530 = scalar_lea.sflag [#allocation4], %s529
        %s531 = sand.u32 %s111, 1
        %s532 = smul.addr %s531, 64
        %s533 = scalar_lea.vmem [#allocation3], %s532
        // Predicated region
        $region73: #{forward.2} parent=71 // pred_check
          %p534 = pneg %p124
        $region74: #{forward.2} parent=71 // pred_check_branch
          %536 = sbr.rel (%p534) target = $region76
        $region75: #{forward.2} parent=71 // pred_region
          %537 = dma.done %s530, 1024
        $region76: #{forward.2} parent=71 // pred_fallthru
          _
        %s538 = sand.u32 %s30, 1
        %s539 = scalar_lea.sflag [#allocation6], %s538
        %s540 = sand.u32 %s215, 1
        %s541 = smul.addr %s540, 256
        %s542 = scalar_lea.vmem [#allocation5], %s541
        // Predicated region
        $region77: #{forward.2} parent=71 // pred_check
          %p543 = pneg %p228
        $region78: #{forward.2} parent=71 // pred_check_branch
          %545 = sbr.rel (%p543) target = $region80
        $region79: #{forward.2} parent=71 // pred_region
          %546 = dma.done %s539, 4096
        $region80: #{forward.2} parent=71 // pred_fallthru
          _
        %s547 = sand.u32 %s30, 1
        %s548 = scalar_lea.sflag [#allocation6], %s547
        %s549 = sand.u32 %s267, 1
        %s550 = smul.addr %s549, 256
        %s551 = scalar_lea.vmem [#allocation7], %s550
        // Predicated region
        $region81: #{forward.2} parent=71 // pred_check
          %p552 = pneg %p280
        $region82: #{forward.2} parent=71 // pred_check_branch
          %554 = sbr.rel (%p552) target = $region84
        $region83: #{forward.2} parent=71 // pred_region
          %555 = dma.done %s548, 4096
        $region84: #{forward.2} parent=71 // pred_fallthru
          _
        %p556 = pneg %p46
        %p557 = pneg %p43
        %p558 = scmp.lt.s32.totalorder %s30, 1
        %s559 = scalar_select %p558, %s30, 1
        %s560 = smul.addr %s559, 48
        %s561 = smul.addr %s560, 4
        %s562 = scalar_lea.vmem %s1, %s561
        %p563 = pneg %p72
        %p564 = pneg %p69
        %p565 = scmp.lt.s32.totalorder %s30, 1
        %s566 = scalar_select %p565, %s30, 1
        %s567 = smul.addr %s566, 3
        %s568 = scalar_lea.vmem %s2, %s567
        %p569 = pneg %p98
        %p570 = pneg %p95
        %s571 = sand.u32 %s111, 1
        %s572 = scalar_lea.sflag [#allocation4], %s571
        %s573 = sand.u32 %s111, 1
        %s574 = smul.addr %s573, 64
        %s575 = scalar_lea.vmem [#allocation3], %s574
        %p576 = pneg %p124
        %p577 = pneg %p121
        %p578 = scmp.lt.s32.totalorder %s30, 1
        %s579 = scalar_select %p578, %s30, 1
        %s580 = scalar_lea.vmem %s4, %s579
        %p581 = pneg %p150
        %p582 = pneg %p147
        %p583 = scmp.lt.s32.totalorder %s30, 1
        %s584 = scalar_select %p583, %s30, 1
        %s585 = scalar_lea.vmem %s5, %s584
        %p586 = pneg %p176
        %p587 = pneg %p173
        %p588 = scmp.lt.s32.totalorder %s30, 1
        %s589 = scalar_select %p588, %s30, 1
        %s590 = scalar_lea.vmem %s6, %s589
        %p591 = pneg %p202
        %p592 = pneg %p199
        %s593 = sand.u32 %s30, 1
        %s594 = scalar_lea.sflag [#allocation6], %s593
        %s595 = sand.u32 %s215, 1
        %s596 = smul.addr %s595, 256
        %s597 = scalar_lea.vmem [#allocation5], %s596
        %p598 = pneg %p228
        %p599 = pneg %p225
        %p600 = scmp.lt.s32.totalorder %s30, 1
        %s601 = scalar_select %p600, %s30, 1
        %s602 = smul.addr %s601, 4
        %s603 = scalar_lea.vmem %s8, %s602
        %p604 = pneg %p254
        %p605 = pneg %p251
        %s606 = sand.u32 %s30, 1
        %s607 = scalar_lea.sflag [#allocation6], %s606
        %s608 = sand.u32 %s267, 1
        %s609 = smul.addr %s608, 256
        %s610 = scalar_lea.vmem [#allocation7], %s609
        %p611 = pneg %p280
        %p612 = pneg %p277
        %p613 = scmp.lt.s32.totalorder %s30, 1
        %s614 = scalar_select %p613, %s30, 1
        %s615 = scalar_lea.vmem %s10, %s614
        %p616 = pneg %p306
        %p617 = pneg %p303
        %p618 = scmp.lt.s32.totalorder %s30, 1
        %s619 = scalar_select %p618, %s30, 1
        %s620 = scalar_lea.vmem %s11, %s619
        %p621 = pneg %p332
        %p622 = pneg %p329
        %p623 = scmp.lt.s32.totalorder %s30, 1
        %s624 = scalar_select %p623, %s30, 1
        %s625 = scalar_lea.vmem %s12, %s624
        %p626 = pneg %p358
        %p627 = pneg %p355
        %p628 = pneg %p379
        %p629 = pneg %p376
        %p630 = scmp.lt.s32.totalorder %s30, 1
        %s631 = scalar_select %p630, %s30, 1
        %s632 = smul.addr %s631, 48
        %s633 = smul.addr %s632, 4
        %s634 = scalar_lea.vmem %s1, %s633
        %p635 = scmp.lt.s32.totalorder %s30, 1
        %s636 = scalar_select %p635, %s30, 1
        %s637 = smul.addr %s636, 3
        %s638 = scalar_lea.vmem %s2, %s637
        %p639 = scmp.lt.s32.totalorder %s30, 1
        %s640 = scalar_select %p639, %s30, 1
        %s641 = scalar_lea.vmem %s4, %s640
        %p642 = scmp.lt.s32.totalorder %s30, 1
        %s643 = scalar_select %p642, %s30, 1
        %s644 = scalar_lea.vmem %s5, %s643
        %p645 = scmp.lt.s32.totalorder %s30, 1
        %s646 = scalar_select %p645, %s30, 1
        %s647 = scalar_lea.vmem %s6, %s646
        %p648 = scmp.lt.s32.totalorder %s30, 1
        %s649 = scalar_select %p648, %s30, 1
        %s650 = smul.addr %s649, 4
        %s651 = scalar_lea.vmem %s8, %s650
        %p652 = scmp.lt.s32.totalorder %s30, 1
        %s653 = scalar_select %p652, %s30, 1
        %s654 = scalar_lea.vmem %s10, %s653
        %p655 = scmp.lt.s32.totalorder %s30, 1
        %s656 = scalar_select %p655, %s30, 1
        %s657 = scalar_lea.vmem %s11, %s656
        %p658 = scmp.lt.s32.totalorder %s30, 1
        %s659 = scalar_select %p658, %s30, 1
        %s660 = scalar_lea.vmem %s12, %s659
        %p662 = scmp.eq.s32.totalorder %s30, 0
        // Predicated region
        $region85: #{forward.2} parent=71 // pred_check
          %p663 = pneg %p662
        $region86: #{forward.2} parent=71 // pred_check_branch
          %665 = sbr.rel (%p663) target = $region88
        $region87: #{forward.2} parent=71 // pred_region
          %v666 = vld [vmem:[%s0] sm:$0xff]
          %v667 = vld [vmem:[%s0 + $0x8] sm:$0xff]
          %v668 = vld [vmem:[%s0 + $0x10] sm:$0xff]
          %v669 = vld [vmem:[%s0 + $0x18] sm:$0xff]
          %670 = vst [vmem:[%s13] sm:$0xff] %v666
          %671 = vst [vmem:[%s13 + $0x8] sm:$0xff] %v667
          %672 = vst [vmem:[%s13 + $0x10] sm:$0xff] %v668
          %673 = vst [vmem:[%s13 + $0x18] sm:$0xff] %v669
          %v674 = vlaneseq
          %v675 = vshrl.u32 %v674, 7
          %v676 = vadd.s32 %v675, 8
          %v677 = vlaneseq
          %v678 = vand.u32 %v677, 127
          %vm679 = vcmp.le.s32.totalorder %v678, %v675
          %vm680 = vcmp.le.s32.totalorder %v678, %v676
          %v681 = vsel %vm679, 0.0, -1e+30
          %v682 = vsel %vm680, 0.0, -1e+30
          %vm683 = vcmask 130048
          %684 = vst.msk [vmem:[#allocation2] sm:$0xff] %vm683, %v681
          %685 = vst.msk [vmem:[#allocation2 + $0x8] sm:$0xff] %vm683, %v682
        $region88: #{forward.2} parent=71 // pred_fallthru
          _
        %v686 = vld [vmem:[%s13] sm:$0xff]
        %v687 = vld [vmem:[%s13 + $0x8] sm:$0xff]
        %v688 = vld [vmem:[%s13 + $0x10] sm:$0xff]
        %v689 = vld [vmem:[%s13 + $0x18] sm:$0xff]
        %v690 = vpack.c.bf16 %v687, %v686
        %v691 = vpack.c.bf16 %v689, %v688
        %v692 = vld [vmem:[%s634] sm:$0xff]
        %v693 = vld [vmem:[%s634 + $0x8] sm:$0xf]
        %v694 = vld [vmem:[%s634 + $0xc] sm:$0xff]
        %v695 = vld [vmem:[%s634 + $0x14] sm:$0xf]
        %v696 = vld [vmem:[%s634 + $0x18] sm:$0xff]
        %v697 = vld [vmem:[%s634 + $0x20] sm:$0xf]
        %v698 = vld [vmem:[%s634 + $0x24] sm:$0xff]
        %v699 = vld [vmem:[%s634 + $0x2c] sm:$0xf]
        %v700 = vld [vmem:[%s634 + $0x30] sm:$0xff]
        %v701 = vld [vmem:[%s634 + $0x38] sm:$0xf]
        %v702 = vld [vmem:[%s634 + $0x3c] sm:$0xff]
        %v703 = vld [vmem:[%s634 + $0x44] sm:$0xf]
        %v704 = vld [vmem:[%s634 + $0x48] sm:$0xff]
        %v705 = vld [vmem:[%s634 + $0x50] sm:$0xf]
        %v706 = vld [vmem:[%s634 + $0x54] sm:$0xff]
        %v707 = vld [vmem:[%s634 + $0x5c] sm:$0xf]
        %v708 = vld [vmem:[%s634 + $0x60] sm:$0xff]
        %v709 = vld [vmem:[%s634 + $0x68] sm:$0xf]
        %v710 = vld [vmem:[%s634 + $0x6c] sm:$0xff]
        %v711 = vld [vmem:[%s634 + $0x74] sm:$0xf]
        %v712 = vld [vmem:[%s634 + $0x78] sm:$0xff]
        %v713 = vld [vmem:[%s634 + $0x80] sm:$0xf]
        %v714 = vld [vmem:[%s634 + $0x84] sm:$0xff]
        %v715 = vld [vmem:[%s634 + $0x8c] sm:$0xf]
        %v716 = vld [vmem:[%s634 + $0x90] sm:$0xff]
        %v717 = vld [vmem:[%s634 + $0x98] sm:$0xf]
        %v718 = vld [vmem:[%s634 + $0x9c] sm:$0xff]
        %v719 = vld [vmem:[%s634 + $0xa4] sm:$0xf]
        %v720 = vld [vmem:[%s634 + $0xa8] sm:$0xff]
        %v721 = vld [vmem:[%s634 + $0xb0] sm:$0xf]
        %v722 = vld [vmem:[%s634 + $0xb4] sm:$0xff]
        %v723 = vld [vmem:[%s634 + $0xbc] sm:$0xf]
        %v724 = vld [vmem:[%s638] sm:$0x7]
        %v726 = vlaneseq
        %v727 = vshrl.u32 %v726, 7
        %v728 = vsub.s32 0, %v727
        %v729 = vrot.slane %v724, %v728
        %v730 = vlaneseq
        %v731 = vshrl.u32 %v730, 7
        %v732 = vsub.s32 1, %v731
        %v733 = vrot.slane %v724, %v732
        %v734 = vlaneseq
        %v735 = vshrl.u32 %v734, 7
        %v736 = vsub.s32 2, %v735
        %v737 = vrot.slane %v724, %v736
        %v773 = vunpack.c.l.b16 %v692
        %v774 = vunpack.c.h.b16 %v692
        %v775 = vunpack.c.l.b16 %v693
        %v776 = vunpack.c.l.b16 %v694
        %v777 = vunpack.c.h.b16 %v694
        %v778 = vunpack.c.l.b16 %v695
        %v779 = vunpack.c.l.b16 %v696
        %v780 = vunpack.c.h.b16 %v696
        %v781 = vunpack.c.l.b16 %v697
        %v782 = vunpack.c.l.b16 %v698
        %v783 = vunpack.c.h.b16 %v698
        %v784 = vunpack.c.l.b16 %v699
        %v785 = vunpack.c.l.b16 %v700
        %v786 = vunpack.c.h.b16 %v700
        %v787 = vunpack.c.l.b16 %v701
        %v788 = vunpack.c.l.b16 %v702
        %v789 = vunpack.c.h.b16 %v702
        %v790 = vunpack.c.l.b16 %v703
        %v791 = vunpack.c.l.b16 %v704
        %v792 = vunpack.c.h.b16 %v704
        %v793 = vunpack.c.l.b16 %v705
        %v794 = vunpack.c.l.b16 %v706
        %v795 = vunpack.c.h.b16 %v706
        %v796 = vunpack.c.l.b16 %v707
        %v797 = vunpack.c.l.b16 %v708
        %v798 = vunpack.c.h.b16 %v708
        %v799 = vunpack.c.l.b16 %v709
        %v800 = vunpack.c.l.b16 %v710
        %v801 = vunpack.c.h.b16 %v710
        %v802 = vunpack.c.l.b16 %v711
        %v803 = vunpack.c.l.b16 %v712
        %v804 = vunpack.c.h.b16 %v712
        %v805 = vunpack.c.l.b16 %v713
        %v806 = vunpack.c.l.b16 %v714
        %v807 = vunpack.c.h.b16 %v714
        %v808 = vunpack.c.l.b16 %v715
        %v809 = vunpack.c.l.b16 %v716
        %v810 = vunpack.c.h.b16 %v716
        %v811 = vunpack.c.l.b16 %v717
        %v812 = vunpack.c.l.b16 %v718
        %v813 = vunpack.c.h.b16 %v718
        %v814 = vunpack.c.l.b16 %v719
        %v815 = vunpack.c.l.b16 %v720
        %v816 = vunpack.c.h.b16 %v720
        %v817 = vunpack.c.l.b16 %v721
        %v818 = vunpack.c.l.b16 %v722
        %v819 = vunpack.c.h.b16 %v722
        %v820 = vunpack.c.l.b16 %v723
        %v821 = vpack.c.b16 %v776, %v773
        %v822 = vpack.c.b16 %v777, %v774
        %v823 = vpack.c.b16 %v778, %v775
        %v824 = vpack.c.b16 %v782, %v779
        %v825 = vpack.c.b16 %v783, %v780
        %v826 = vpack.c.b16 %v784, %v781
        %v827 = vpack.c.b16 %v788, %v785
        %v828 = vpack.c.b16 %v789, %v786
        %v829 = vpack.c.b16 %v790, %v787
        %v830 = vpack.c.b16 %v794, %v791
        %v831 = vpack.c.b16 %v795, %v792
        %v832 = vpack.c.b16 %v796, %v793
        %v833 = vpack.c.b16 %v800, %v797
        %v834 = vpack.c.b16 %v801, %v798
        %v835 = vpack.c.b16 %v802, %v799
        %v836 = vpack.c.b16 %v806, %v803
        %v837 = vpack.c.b16 %v807, %v804
        %v838 = vpack.c.b16 %v808, %v805
        %v839 = vpack.c.b16 %v812, %v809
        %v840 = vpack.c.b16 %v813, %v810
        %v841 = vpack.c.b16 %v814, %v811
        %v842 = vpack.c.b16 %v818, %v815
        %v843 = vpack.c.b16 %v819, %v816
        %v844 = vpack.c.b16 %v820, %v817
        %869 = vmatprep.subr.bf16.mxu0 %v843
        %870 = vmatpush1.bf16.msra.mxu0 %v842
        %871 = vmatprep.subr.bf16.mxu0 %v840
        %872 = vmatpush1.bf16.msra.mxu0 %v839
        %873 = vmatprep.subr.bf16.mxu0 %v837
        %874 = vmatpush1.bf16.msra.mxu0 %v836
        %875 = vmatprep.subr.bf16.mxu0 %v834
        %876 = vmatpush1.bf16.msra.mxu0 %v833
        %877 = vmatprep.subr.bf16.mxu0 %v831
        %878 = vmatpush1.bf16.msra.mxu0 %v830
        %879 = vmatprep.subr.bf16.mxu0 %v828
        %880 = vmatpush1.bf16.msra.mxu0 %v827
        %881 = vmatprep.subr.bf16.mxu0 %v825
        %882 = vmatpush1.bf16.msra.mxu0 %v824
        %883 = vmatprep.subr.bf16.mxu0 %v822
        %884 = vmatpush1.bf16.msra.mxu0 %v821
        %885 = vmatprep.subr.bf16.mxu0 0
        %886 = vmatpush2.bf16.msra.mxu0 0
        %887 = vmatprep.subr.bf16.mxu0 0
        %888 = vmatpush2.bf16.msra.mxu0 0
        %889 = vmatprep.subr.bf16.mxu0 0
        %890 = vmatpush2.bf16.msra.mxu0 0
        %891 = vmatprep.subr.bf16.mxu0 0
        %892 = vmatpush2.bf16.msra.mxu0 0
        %893 = vmatprep.subr.bf16.mxu0 0
        %894 = vmatpush2.bf16.msra.mxu0 0
        %895 = vmatprep.subr.bf16.mxu0 0
        %896 = vmatpush2.bf16.msra.mxu0 0
        %897 = vmatprep.subr.bf16.mxu0 0
        %898 = vmatpush2.bf16.msra.mxu0 0
        %899 = vmatprep.subr.bf16.mxu0 0
        %900 = vmatpush2.bf16.msra.mxu0 0
        %901 = vmatprep.mubr.bf16.mxu0 0
        %902 = vmatmul.mubr.bf16.gmra.mxu0 %v690
        %v903 = vpop.f32.mrf.mxu0
        %v904 = vadd.f32 %v729, %v903
        %v905 = vpop.f32.mrf.mxu0
        %v906 = vadd.f32 %v733, %v905
        %v907 = vpop.f32.mrf.mxu0
        %v908 = vadd.f32 %v729, %v907
        %v909 = vpop.f32.mrf.mxu0
        %v910 = vadd.f32 %v733, %v909
        %911 = vmatprep.mubr.bf16.mxu0 0
        %912 = vmatmul.mubr.bf16.gmra.mxu0 %v691
        %v913 = vpop.f32.mrf.mxu0
        %v914 = vadd.f32 %v729, %v913
        %v915 = vpop.f32.mrf.mxu0
        %v916 = vadd.f32 %v733, %v915
        %v917 = vpop.f32.mrf.mxu0
        %v918 = vadd.f32 %v729, %v917
        %v919 = vpop.f32.mrf.mxu0
        %v920 = vadd.f32 %v733, %v919
        %921 = vdwg.mxu0
        %922 = vmatprep.subr.bf16.mxu0 0
        %923 = vmatpush1.bf16.msra.mxu0 %v844
        %924 = vmatprep.subr.bf16.mxu0 0
        %925 = vmatpush1.bf16.msra.mxu0 %v841
        %926 = vmatprep.subr.bf16.mxu0 0
        %927 = vmatpush1.bf16.msra.mxu0 %v838
        %928 = vmatprep.subr.bf16.mxu0 0
        %929 = vmatpush1.bf16.msra.mxu0 %v835
        %930 = vmatprep.subr.bf16.mxu0 0
        %931 = vmatpush1.bf16.msra.mxu0 %v832
        %932 = vmatprep.subr.bf16.mxu0 0
        %933 = vmatpush1.bf16.msra.mxu0 %v829
        %934 = vmatprep.subr.bf16.mxu0 0
        %935 = vmatpush1.bf16.msra.mxu0 %v826
        %936 = vmatprep.subr.bf16.mxu0 0
        %937 = vmatpush1.bf16.msra.mxu0 %v823
        %938 = vmatprep.subr.bf16.mxu0 0
        %939 = vmatpush2.bf16.msra.mxu0 0
        %940 = vmatprep.subr.bf16.mxu0 0
        %941 = vmatpush2.bf16.msra.mxu0 0
        %942 = vmatprep.subr.bf16.mxu0 0
        %943 = vmatpush2.bf16.msra.mxu0 0
        %944 = vmatprep.subr.bf16.mxu0 0
        %945 = vmatpush2.bf16.msra.mxu0 0
        %946 = vmatprep.subr.bf16.mxu0 0
        %947 = vmatpush2.bf16.msra.mxu0 0
        %948 = vmatprep.subr.bf16.mxu0 0
        %949 = vmatpush2.bf16.msra.mxu0 0
        %950 = vmatprep.subr.bf16.mxu0 0
        %951 = vmatpush2.bf16.msra.mxu0 0
        %952 = vmatprep.subr.bf16.mxu0 0
        %953 = vmatpush2.bf16.msra.mxu0 0
        %954 = vmatprep.mubr.bf16.mxu0 0
        %955 = vmatmul.mubr.bf16.gmra.mxu0 %v690
        %v956 = vpop.f32.mrf.mxu0
        %v957 = vadd.f32 %v737, %v956
        %v958 = vpop.f32.mrf.mxu0
        %v959 = vpop.f32.mrf.mxu0
        %v960 = vadd.f32 %v737, %v959
        %v961 = vpop.f32.mrf.mxu0
        %962 = vmatprep.mubr.bf16.mxu0 0
        %963 = vmatmul.mubr.bf16.gmra.mxu0 %v691
        %v964 = vpop.f32.mrf.mxu0
        %v965 = vadd.f32 %v737, %v964
        %v966 = vpop.f32.mrf.mxu0
        %v967 = vpop.f32.mrf.mxu0
        %v968 = vadd.f32 %v737, %v967
        %v969 = vpop.f32.mrf.mxu0
        %970 = vdwg.mxu0
        %v971 = vpack.c.bf16 %v908, %v904
        %v972 = vpack.c.bf16 %v910, %v906
        %v973 = vpack.c.bf16 %v960, %v957
        %v974 = vpack.c.bf16 %v918, %v914
        %v975 = vpack.c.bf16 %v920, %v916
        %v976 = vpack.c.bf16 %v968, %v965
        %v977 = vld [vmem:[#allocation2] sm:$0xff]
        %v978 = vld [vmem:[#allocation2 + $0x8] sm:$0xff]
        %980 = vrot.lane.b32.xlu0 %v971, 96
        %v981 = vpop.permute.xlu0 %980
        %982 = vrot.lane.b32.xlu0 %v971, 64
        %v983 = vpop.permute.xlu0 %982
        %984 = vrot.lane.b32.xlu0 %v971, 32
        %v985 = vpop.permute.xlu0 %984
        %v988 = vpack.i.b16 %v981, %v971
        %v990 = vshrl.u32 %v971, 16
        %v991 = vshrl.u32 %v981, 16
        %v992 = vpack.i.b16 %v991, %v990
        %v996 = vpack.i.b16 %v985, %v983
        %v998 = vshrl.u32 %v983, 16
        %v999 = vshrl.u32 %v985, 16
        %v1000 = vpack.i.b16 %v999, %v998
        %v1003 = vpack.i.b16 0, 0
        %v1005 = vshrl.u32 0, 16
        %v1006 = vpack.i.b16 %v1005, %v1005
        %v1008 = vcombine.high %v988, %v1003
        %v1010 = vunpack.c.l.s4 1983009808
        %v1011 = vunpack.c.0.s8 %v1010
        %v1012 = vlaneseq
        %v1013 = vshrl.u32 %v1012, 7
        %v1014 = vsub.s32 %v1011, %v1013
        %v1015 = vrot.slane %v988, %v1014
        %v1017 = vunpack.c.l.s4 1983009808
        %v1018 = vunpack.c.0.s8 %v1017
        %v1019 = vlaneseq
        %v1020 = vshrl.u32 %v1019, 7
        %v1021 = vsub.s32 %v1018, %v1020
        %v1022 = vrot.slane %v1008, %v1021
        %v1023 = vcombine.high %v996, %v1003
        %v1025 = vunpack.c.l.s4 1983009808
        %v1026 = vunpack.c.0.s8 %v1025
        %v1027 = vlaneseq
        %v1028 = vshrl.u32 %v1027, 7
        %v1029 = vsub.s32 %v1026, %v1028
        %v1030 = vrot.slane %v996, %v1029
        %v1032 = vunpack.c.l.s4 1983009808
        %v1033 = vunpack.c.0.s8 %v1032
        %v1034 = vlaneseq
        %v1035 = vshrl.u32 %v1034, 7
        %v1036 = vsub.s32 %v1033, %v1035
        %v1037 = vrot.slane %v1023, %v1036
        %v1038 = vcombine.low %v1015, %v1030
        %v1039 = vcombine.high %v1015, %v1030
        %v1041 = vunpack.c.l.s4 1934713408
        %v1042 = vunpack.c.0.s8 %v1041
        %v1043 = vlaneseq
        %v1044 = vshrl.u32 %v1043, 7
        %v1045 = vsub.s32 %v1042, %v1044
        %v1046 = vrot.slane %v1038, %v1045
        %v1048 = vunpack.c.l.s4 1934713408
        %v1049 = vunpack.c.0.s8 %v1048
        %v1050 = vlaneseq
        %v1051 = vshrl.u32 %v1050, 7
        %v1052 = vsub.s32 %v1049, %v1051
        %v1053 = vrot.slane %v1039, %v1052
        %v1054 = vcombine.low %v1022, %v1037
        %v1055 = vcombine.high %v1022, %v1037
        %v1057 = vunpack.c.l.s4 1934713408
        %v1058 = vunpack.c.0.s8 %v1057
        %v1059 = vlaneseq
        %v1060 = vshrl.u32 %v1059, 7
        %v1061 = vsub.s32 %v1058, %v1060
        %v1062 = vrot.slane %v1054, %v1061
        %v1064 = vunpack.c.l.s4 1934713408
        %v1065 = vunpack.c.0.s8 %v1064
        %v1066 = vlaneseq
        %v1067 = vshrl.u32 %v1066, 7
        %v1068 = vsub.s32 %v1065, %v1067
        %v1069 = vrot.slane %v1055, %v1068
        %v1070 = vcombine.high %v1046, 0
        %v1071 = vcombine.high %v1053, 0
        %v1072 = vcombine.high %v1062, 0
        %v1073 = vcombine.high %v1069, 0
        %v1074 = vcombine.high %v992, %v1006
        %v1076 = vunpack.c.l.s4 1983009808
        %v1077 = vunpack.c.0.s8 %v1076
        %v1078 = vlaneseq
        %v1079 = vshrl.u32 %v1078, 7
        %v1080 = vsub.s32 %v1077, %v1079
        %v1081 = vrot.slane %v992, %v1080
        %v1083 = vunpack.c.l.s4 1983009808
        %v1084 = vunpack.c.0.s8 %v1083
        %v1085 = vlaneseq
        %v1086 = vshrl.u32 %v1085, 7
        %v1087 = vsub.s32 %v1084, %v1086
        %v1088 = vrot.slane %v1074, %v1087
        %v1089 = vcombine.high %v1000, %v1006
        %v1091 = vunpack.c.l.s4 1983009808
        %v1092 = vunpack.c.0.s8 %v1091
        %v1093 = vlaneseq
        %v1094 = vshrl.u32 %v1093, 7
        %v1095 = vsub.s32 %v1092, %v1094
        %v1096 = vrot.slane %v1000, %v1095
        %v1098 = vunpack.c.l.s4 1983009808
        %v1099 = vunpack.c.0.s8 %v1098
        %v1100 = vlaneseq
        %v1101 = vshrl.u32 %v1100, 7
        %v1102 = vsub.s32 %v1099, %v1101
        %v1103 = vrot.slane %v1089, %v1102
        %v1104 = vcombine.low %v1081, %v1096
        %v1105 = vcombine.high %v1081, %v1096
        %v1107 = vunpack.c.l.s4 1934713408
        %v1108 = vunpack.c.0.s8 %v1107
        %v1109 = vlaneseq
        %v1110 = vshrl.u32 %v1109, 7
        %v1111 = vsub.s32 %v1108, %v1110
        %v1112 = vrot.slane %v1104, %v1111
        %v1114 = vunpack.c.l.s4 1934713408
        %v1115 = vunpack.c.0.s8 %v1114
        %v1116 = vlaneseq
        %v1117 = vshrl.u32 %v1116, 7
        %v1118 = vsub.s32 %v1115, %v1117
        %v1119 = vrot.slane %v1105, %v1118
        %v1120 = vcombine.low %v1088, %v1103
        %v1121 = vcombine.high %v1088, %v1103
        %v1123 = vunpack.c.l.s4 1934713408
        %v1124 = vunpack.c.0.s8 %v1123
        %v1125 = vlaneseq
        %v1126 = vshrl.u32 %v1125, 7
        %v1127 = vsub.s32 %v1124, %v1126
        %v1128 = vrot.slane %v1120, %v1127
        %v1130 = vunpack.c.l.s4 1934713408
        %v1131 = vunpack.c.0.s8 %v1130
        %v1132 = vlaneseq
        %v1133 = vshrl.u32 %v1132, 7
        %v1134 = vsub.s32 %v1131, %v1133
        %v1135 = vrot.slane %v1121, %v1134
        %v1136 = vcombine.high %v1112, 0
        %v1137 = vcombine.high %v1119, 0
        %v1138 = vcombine.high %v1128, 0
        %v1139 = vcombine.high %v1135, 0
        %v1140 = vcombine.low %v1046, %v1053
        %v1142 = vunpack.c.l.s4 1983009808
        %v1143 = vunpack.c.0.s8 %v1142
        %v1144 = vlaneseq
        %v1145 = vshrl.u32 %v1144, 7
        %v1146 = vsub.s32 %v1143, %v1145
        %v1147 = vrot.slane %v1140, %v1146
        %v1148 = vcombine.low %v1070, %v1071
        %v1150 = vunpack.c.l.s4 1983009808
        %v1151 = vunpack.c.0.s8 %v1150
        %v1152 = vlaneseq
        %v1153 = vshrl.u32 %v1152, 7
        %v1154 = vsub.s32 %v1151, %v1153
        %v1155 = vrot.slane %v1148, %v1154
        %v1156 = vcombine.low %v1062, %v1069
        %v1158 = vunpack.c.l.s4 1983009808
        %v1159 = vunpack.c.0.s8 %v1158
        %v1160 = vlaneseq
        %v1161 = vshrl.u32 %v1160, 7
        %v1162 = vsub.s32 %v1159, %v1161
        %v1163 = vrot.slane %v1156, %v1162
        %v1164 = vcombine.low %v1072, %v1073
        %v1166 = vunpack.c.l.s4 1983009808
        %v1167 = vunpack.c.0.s8 %v1166
        %v1168 = vlaneseq
        %v1169 = vshrl.u32 %v1168, 7
        %v1170 = vsub.s32 %v1167, %v1169
        %v1171 = vrot.slane %v1164, %v1170
        %v1172 = vcombine.low %v1147, %v1155
        %v1174 = vunpack.c.l.s4 1934713408
        %v1175 = vunpack.c.0.s8 %v1174
        %v1176 = vlaneseq
        %v1177 = vshrl.u32 %v1176, 7
        %v1178 = vsub.s32 %v1175, %v1177
        %v1179 = vrot.slane %v1172, %v1178
        %v1180 = vcombine.low %v1163, %v1171
        %v1182 = vunpack.c.l.s4 1934713408
        %v1183 = vunpack.c.0.s8 %v1182
        %v1184 = vlaneseq
        %v1185 = vshrl.u32 %v1184, 7
        %v1186 = vsub.s32 %v1183, %v1185
        %v1187 = vrot.slane %v1180, %v1186
        %v1188 = vcombine.low %v1179, %v1187
        %v1189 = vcombine.high %v1179, %v1187
        %v1190 = vcombine.low %v1112, %v1119
        %v1192 = vunpack.c.l.s4 1983009808
        %v1193 = vunpack.c.0.s8 %v1192
        %v1194 = vlaneseq
        %v1195 = vshrl.u32 %v1194, 7
        %v1196 = vsub.s32 %v1193, %v1195
        %v1197 = vrot.slane %v1190, %v1196
        %v1198 = vcombine.low %v1136, %v1137
        %v1200 = vunpack.c.l.s4 1983009808
        %v1201 = vunpack.c.0.s8 %v1200
        %v1202 = vlaneseq
        %v1203 = vshrl.u32 %v1202, 7
        %v1204 = vsub.s32 %v1201, %v1203
        %v1205 = vrot.slane %v1198, %v1204
        %v1206 = vcombine.low %v1128, %v1135
        %v1208 = vunpack.c.l.s4 1983009808
        %v1209 = vunpack.c.0.s8 %v1208
        %v1210 = vlaneseq
        %v1211 = vshrl.u32 %v1210, 7
        %v1212 = vsub.s32 %v1209, %v1211
        %v1213 = vrot.slane %v1206, %v1212
        %v1214 = vcombine.low %v1138, %v1139
        %v1216 = vunpack.c.l.s4 1983009808
        %v1217 = vunpack.c.0.s8 %v1216
        %v1218 = vlaneseq
        %v1219 = vshrl.u32 %v1218, 7
        %v1220 = vsub.s32 %v1217, %v1219
        %v1221 = vrot.slane %v1214, %v1220
        %v1222 = vcombine.low %v1197, %v1205
        %v1224 = vunpack.c.l.s4 1934713408
        %v1225 = vunpack.c.0.s8 %v1224
        %v1226 = vlaneseq
        %v1227 = vshrl.u32 %v1226, 7
        %v1228 = vsub.s32 %v1225, %v1227
        %v1229 = vrot.slane %v1222, %v1228
        %v1230 = vcombine.low %v1213, %v1221
        %v1232 = vunpack.c.l.s4 1934713408
        %v1233 = vunpack.c.0.s8 %v1232
        %v1234 = vlaneseq
        %v1235 = vshrl.u32 %v1234, 7
        %v1236 = vsub.s32 %v1233, %v1235
        %v1237 = vrot.slane %v1230, %v1236
        %v1238 = vcombine.low %v1229, %v1237
        %v1239 = vcombine.high %v1229, %v1237
        %v1242 = vpack.i.b16 %v1238, %v1188
        %v1243 = vshrl.u32 %v1188, 16
        %v1244 = vshrl.u32 %v1238, 16
        %v1245 = vpack.i.b16 %v1244, %v1243
        %v1248 = vpack.i.b16 %v1239, %v1189
        %v1249 = vshrl.u32 %v1189, 16
        %v1250 = vshrl.u32 %v1239, 16
        %v1251 = vpack.i.b16 %v1250, %v1249
        %1253 = vrot.lane.b32.xlu0 %v972, 96
        %v1254 = vpop.permute.xlu0 %1253
        %1255 = vrot.lane.b32.xlu0 %v972, 64
        %v1256 = vpop.permute.xlu0 %1255
        %1257 = vrot.lane.b32.xlu0 %v972, 32
        %v1258 = vpop.permute.xlu0 %1257
        %v1261 = vpack.i.b16 %v1254, %v972
        %v1263 = vshrl.u32 %v972, 16
        %v1264 = vshrl.u32 %v1254, 16
        %v1265 = vpack.i.b16 %v1264, %v1263
        %v1269 = vpack.i.b16 %v1258, %v1256
        %v1271 = vshrl.u32 %v1256, 16
        %v1272 = vshrl.u32 %v1258, 16
        %v1273 = vpack.i.b16 %v1272, %v1271
        %v1275 = vcombine.high %v1261, %v1003
        %v1277 = vunpack.c.l.s4 1983009808
        %v1278 = vunpack.c.0.s8 %v1277
        %v1279 = vlaneseq
        %v1280 = vshrl.u32 %v1279, 7
        %v1281 = vsub.s32 %v1278, %v1280
        %v1282 = vrot.slane %v1261, %v1281
        %v1284 = vunpack.c.l.s4 1983009808
        %v1285 = vunpack.c.0.s8 %v1284
        %v1286 = vlaneseq
        %v1287 = vshrl.u32 %v1286, 7
        %v1288 = vsub.s32 %v1285, %v1287
        %v1289 = vrot.slane %v1275, %v1288
        %v1290 = vcombine.high %v1269, %v1003
        %v1292 = vunpack.c.l.s4 1983009808
        %v1293 = vunpack.c.0.s8 %v1292
        %v1294 = vlaneseq
        %v1295 = vshrl.u32 %v1294, 7
        %v1296 = vsub.s32 %v1293, %v1295
        %v1297 = vrot.slane %v1269, %v1296
        %v1299 = vunpack.c.l.s4 1983009808
        %v1300 = vunpack.c.0.s8 %v1299
        %v1301 = vlaneseq
        %v1302 = vshrl.u32 %v1301, 7
        %v1303 = vsub.s32 %v1300, %v1302
        %v1304 = vrot.slane %v1290, %v1303
        %v1305 = vcombine.low %v1282, %v1297
        %v1306 = vcombine.high %v1282, %v1297
        %v1308 = vunpack.c.l.s4 1934713408
        %v1309 = vunpack.c.0.s8 %v1308
        %v1310 = vlaneseq
        %v1311 = vshrl.u32 %v1310, 7
        %v1312 = vsub.s32 %v1309, %v1311
        %v1313 = vrot.slane %v1305, %v1312
        %v1315 = vunpack.c.l.s4 1934713408
        %v1316 = vunpack.c.0.s8 %v1315
        %v1317 = vlaneseq
        %v1318 = vshrl.u32 %v1317, 7
        %v1319 = vsub.s32 %v1316, %v1318
        %v1320 = vrot.slane %v1306, %v1319
        %v1321 = vcombine.low %v1289, %v1304
        %v1322 = vcombine.high %v1289, %v1304
        %v1324 = vunpack.c.l.s4 1934713408
        %v1325 = vunpack.c.0.s8 %v1324
        %v1326 = vlaneseq
        %v1327 = vshrl.u32 %v1326, 7
        %v1328 = vsub.s32 %v1325, %v1327
        %v1329 = vrot.slane %v1321, %v1328
        %v1331 = vunpack.c.l.s4 1934713408
        %v1332 = vunpack.c.0.s8 %v1331
        %v1333 = vlaneseq
        %v1334 = vshrl.u32 %v1333, 7
        %v1335 = vsub.s32 %v1332, %v1334
        %v1336 = vrot.slane %v1322, %v1335
        %v1337 = vcombine.high %v1313, 0
        %v1338 = vcombine.high %v1320, 0
        %v1339 = vcombine.high %v1329, 0
        %v1340 = vcombine.high %v1336, 0
        %v1341 = vcombine.high %v1265, %v1006
        %v1343 = vunpack.c.l.s4 1983009808
        %v1344 = vunpack.c.0.s8 %v1343
        %v1345 = vlaneseq
        %v1346 = vshrl.u32 %v1345, 7
        %v1347 = vsub.s32 %v1344, %v1346
        %v1348 = vrot.slane %v1265, %v1347
        %v1350 = vunpack.c.l.s4 1983009808
        %v1351 = vunpack.c.0.s8 %v1350
        %v1352 = vlaneseq
        %v1353 = vshrl.u32 %v1352, 7
        %v1354 = vsub.s32 %v1351, %v1353
        %v1355 = vrot.slane %v1341, %v1354
        %v1356 = vcombine.high %v1273, %v1006
        %v1358 = vunpack.c.l.s4 1983009808
        %v1359 = vunpack.c.0.s8 %v1358
        %v1360 = vlaneseq
        %v1361 = vshrl.u32 %v1360, 7
        %v1362 = vsub.s32 %v1359, %v1361
        %v1363 = vrot.slane %v1273, %v1362
        %v1365 = vunpack.c.l.s4 1983009808
        %v1366 = vunpack.c.0.s8 %v1365
        %v1367 = vlaneseq
        %v1368 = vshrl.u32 %v1367, 7
        %v1369 = vsub.s32 %v1366, %v1368
        %v1370 = vrot.slane %v1356, %v1369
        %v1371 = vcombine.low %v1348, %v1363
        %v1372 = vcombine.high %v1348, %v1363
        %v1374 = vunpack.c.l.s4 1934713408
        %v1375 = vunpack.c.0.s8 %v1374
        %v1376 = vlaneseq
        %v1377 = vshrl.u32 %v1376, 7
        %v1378 = vsub.s32 %v1375, %v1377
        %v1379 = vrot.slane %v1371, %v1378
        %v1381 = vunpack.c.l.s4 1934713408
        %v1382 = vunpack.c.0.s8 %v1381
        %v1383 = vlaneseq
        %v1384 = vshrl.u32 %v1383, 7
        %v1385 = vsub.s32 %v1382, %v1384
        %v1386 = vrot.slane %v1372, %v1385
        %v1387 = vcombine.low %v1355, %v1370
        %v1388 = vcombine.high %v1355, %v1370
        %v1390 = vunpack.c.l.s4 1934713408
        %v1391 = vunpack.c.0.s8 %v1390
        %v1392 = vlaneseq
        %v1393 = vshrl.u32 %v1392, 7
        %v1394 = vsub.s32 %v1391, %v1393
        %v1395 = vrot.slane %v1387, %v1394
        %v1397 = vunpack.c.l.s4 1934713408
        %v1398 = vunpack.c.0.s8 %v1397
        %v1399 = vlaneseq
        %v1400 = vshrl.u32 %v1399, 7
        %v1401 = vsub.s32 %v1398, %v1400
        %v1402 = vrot.slane %v1388, %v1401
        %v1403 = vcombine.high %v1379, 0
        %v1404 = vcombine.high %v1386, 0
        %v1405 = vcombine.high %v1395, 0
        %v1406 = vcombine.high %v1402, 0
        %v1407 = vcombine.low %v1313, %v1320
        %v1409 = vunpack.c.l.s4 1983009808
        %v1410 = vunpack.c.0.s8 %v1409
        %v1411 = vlaneseq
        %v1412 = vshrl.u32 %v1411, 7
        %v1413 = vsub.s32 %v1410, %v1412
        %v1414 = vrot.slane %v1407, %v1413
        %v1415 = vcombine.low %v1337, %v1338
        %v1417 = vunpack.c.l.s4 1983009808
        %v1418 = vunpack.c.0.s8 %v1417
        %v1419 = vlaneseq
        %v1420 = vshrl.u32 %v1419, 7
        %v1421 = vsub.s32 %v1418, %v1420
        %v1422 = vrot.slane %v1415, %v1421
        %v1423 = vcombine.low %v1329, %v1336
        %v1425 = vunpack.c.l.s4 1983009808
        %v1426 = vunpack.c.0.s8 %v1425
        %v1427 = vlaneseq
        %v1428 = vshrl.u32 %v1427, 7
        %v1429 = vsub.s32 %v1426, %v1428
        %v1430 = vrot.slane %v1423, %v1429
        %v1431 = vcombine.low %v1339, %v1340
        %v1433 = vunpack.c.l.s4 1983009808
        %v1434 = vunpack.c.0.s8 %v1433
        %v1435 = vlaneseq
        %v1436 = vshrl.u32 %v1435, 7
        %v1437 = vsub.s32 %v1434, %v1436
        %v1438 = vrot.slane %v1431, %v1437
        %v1439 = vcombine.low %v1414, %v1422
        %v1441 = vunpack.c.l.s4 1934713408
        %v1442 = vunpack.c.0.s8 %v1441
        %v1443 = vlaneseq
        %v1444 = vshrl.u32 %v1443, 7
        %v1445 = vsub.s32 %v1442, %v1444
        %v1446 = vrot.slane %v1439, %v1445
        %v1447 = vcombine.low %v1430, %v1438
        %v1449 = vunpack.c.l.s4 1934713408
        %v1450 = vunpack.c.0.s8 %v1449
        %v1451 = vlaneseq
        %v1452 = vshrl.u32 %v1451, 7
        %v1453 = vsub.s32 %v1450, %v1452
        %v1454 = vrot.slane %v1447, %v1453
        %v1455 = vcombine.low %v1446, %v1454
        %v1456 = vcombine.high %v1446, %v1454
        %v1457 = vcombine.low %v1379, %v1386
        %v1459 = vunpack.c.l.s4 1983009808
        %v1460 = vunpack.c.0.s8 %v1459
        %v1461 = vlaneseq
        %v1462 = vshrl.u32 %v1461, 7
        %v1463 = vsub.s32 %v1460, %v1462
        %v1464 = vrot.slane %v1457, %v1463
        %v1465 = vcombine.low %v1403, %v1404
        %v1467 = vunpack.c.l.s4 1983009808
        %v1468 = vunpack.c.0.s8 %v1467
        %v1469 = vlaneseq
        %v1470 = vshrl.u32 %v1469, 7
        %v1471 = vsub.s32 %v1468, %v1470
        %v1472 = vrot.slane %v1465, %v1471
        %v1473 = vcombine.low %v1395, %v1402
        %v1475 = vunpack.c.l.s4 1983009808
        %v1476 = vunpack.c.0.s8 %v1475
        %v1477 = vlaneseq
        %v1478 = vshrl.u32 %v1477, 7
        %v1479 = vsub.s32 %v1476, %v1478
        %v1480 = vrot.slane %v1473, %v1479
        %v1481 = vcombine.low %v1405, %v1406
        %v1483 = vunpack.c.l.s4 1983009808
        %v1484 = vunpack.c.0.s8 %v1483
        %v1485 = vlaneseq
        %v1486 = vshrl.u32 %v1485, 7
        %v1487 = vsub.s32 %v1484, %v1486
        %v1488 = vrot.slane %v1481, %v1487
        %v1489 = vcombine.low %v1464, %v1472
        %v1491 = vunpack.c.l.s4 1934713408
        %v1492 = vunpack.c.0.s8 %v1491
        %v1493 = vlaneseq
        %v1494 = vshrl.u32 %v1493, 7
        %v1495 = vsub.s32 %v1492, %v1494
        %v1496 = vrot.slane %v1489, %v1495
        %v1497 = vcombine.low %v1480, %v1488
        %v1499 = vunpack.c.l.s4 1934713408
        %v1500 = vunpack.c.0.s8 %v1499
        %v1501 = vlaneseq
        %v1502 = vshrl.u32 %v1501, 7
        %v1503 = vsub.s32 %v1500, %v1502
        %v1504 = vrot.slane %v1497, %v1503
        %v1505 = vcombine.low %v1496, %v1504
        %v1506 = vcombine.high %v1496, %v1504
        %v1509 = vpack.i.b16 %v1505, %v1455
        %v1510 = vshrl.u32 %v1455, 16
        %v1511 = vshrl.u32 %v1505, 16
        %v1512 = vpack.i.b16 %v1511, %v1510
        %v1515 = vpack.i.b16 %v1506, %v1456
        %v1516 = vshrl.u32 %v1456, 16
        %v1517 = vshrl.u32 %v1506, 16
        %v1518 = vpack.i.b16 %v1517, %v1516
        %1520 = vrot.lane.b32.xlu0 %v973, 96
        %v1521 = vpop.permute.xlu0 %1520
        %1522 = vrot.lane.b32.xlu0 %v973, 64
        %v1523 = vpop.permute.xlu0 %1522
        %1524 = vrot.lane.b32.xlu0 %v973, 32
        %v1525 = vpop.permute.xlu0 %1524
        %v1528 = vpack.i.b16 %v1521, %v973
        %v1530 = vshrl.u32 %v973, 16
        %v1531 = vshrl.u32 %v1521, 16
        %v1532 = vpack.i.b16 %v1531, %v1530
        %v1536 = vpack.i.b16 %v1525, %v1523
        %v1538 = vshrl.u32 %v1523, 16
        %v1539 = vshrl.u32 %v1525, 16
        %v1540 = vpack.i.b16 %v1539, %v1538
        %v1542 = vcombine.high %v1528, %v1003
        %v1544 = vunpack.c.l.s4 1983009808
        %v1545 = vunpack.c.0.s8 %v1544
        %v1546 = vlaneseq
        %v1547 = vshrl.u32 %v1546, 7
        %v1548 = vsub.s32 %v1545, %v1547
        %v1549 = vrot.slane %v1528, %v1548
        %v1551 = vunpack.c.l.s4 1983009808
        %v1552 = vunpack.c.0.s8 %v1551
        %v1553 = vlaneseq
        %v1554 = vshrl.u32 %v1553, 7
        %v1555 = vsub.s32 %v1552, %v1554
        %v1556 = vrot.slane %v1542, %v1555
        %v1557 = vcombine.high %v1536, %v1003
        %v1559 = vunpack.c.l.s4 1983009808
        %v1560 = vunpack.c.0.s8 %v1559
        %v1561 = vlaneseq
        %v1562 = vshrl.u32 %v1561, 7
        %v1563 = vsub.s32 %v1560, %v1562
        %v1564 = vrot.slane %v1536, %v1563
        %v1566 = vunpack.c.l.s4 1983009808
        %v1567 = vunpack.c.0.s8 %v1566
        %v1568 = vlaneseq
        %v1569 = vshrl.u32 %v1568, 7
        %v1570 = vsub.s32 %v1567, %v1569
        %v1571 = vrot.slane %v1557, %v1570
        %v1572 = vcombine.low %v1549, %v1564
        %v1573 = vcombine.high %v1549, %v1564
        %v1575 = vunpack.c.l.s4 1934713408
        %v1576 = vunpack.c.0.s8 %v1575
        %v1577 = vlaneseq
        %v1578 = vshrl.u32 %v1577, 7
        %v1579 = vsub.s32 %v1576, %v1578
        %v1580 = vrot.slane %v1572, %v1579
        %v1582 = vunpack.c.l.s4 1934713408
        %v1583 = vunpack.c.0.s8 %v1582
        %v1584 = vlaneseq
        %v1585 = vshrl.u32 %v1584, 7
        %v1586 = vsub.s32 %v1583, %v1585
        %v1587 = vrot.slane %v1573, %v1586
        %v1588 = vcombine.low %v1556, %v1571
        %v1589 = vcombine.high %v1556, %v1571
        %v1591 = vunpack.c.l.s4 1934713408
        %v1592 = vunpack.c.0.s8 %v1591
        %v1593 = vlaneseq
        %v1594 = vshrl.u32 %v1593, 7
        %v1595 = vsub.s32 %v1592, %v1594
        %v1596 = vrot.slane %v1588, %v1595
        %v1598 = vunpack.c.l.s4 1934713408
        %v1599 = vunpack.c.0.s8 %v1598
        %v1600 = vlaneseq
        %v1601 = vshrl.u32 %v1600, 7
        %v1602 = vsub.s32 %v1599, %v1601
        %v1603 = vrot.slane %v1589, %v1602
        %v1604 = vcombine.high %v1580, 0
        %v1605 = vcombine.high %v1587, 0
        %v1606 = vcombine.high %v1596, 0
        %v1607 = vcombine.high %v1603, 0
        %v1608 = vcombine.high %v1532, %v1006
        %v1610 = vunpack.c.l.s4 1983009808
        %v1611 = vunpack.c.0.s8 %v1610
        %v1612 = vlaneseq
        %v1613 = vshrl.u32 %v1612, 7
        %v1614 = vsub.s32 %v1611, %v1613
        %v1615 = vrot.slane %v1532, %v1614
        %v1617 = vunpack.c.l.s4 1983009808
        %v1618 = vunpack.c.0.s8 %v1617
        %v1619 = vlaneseq
        %v1620 = vshrl.u32 %v1619, 7
        %v1621 = vsub.s32 %v1618, %v1620
        %v1622 = vrot.slane %v1608, %v1621
        %v1623 = vcombine.high %v1540, %v1006
        %v1625 = vunpack.c.l.s4 1983009808
        %v1626 = vunpack.c.0.s8 %v1625
        %v1627 = vlaneseq
        %v1628 = vshrl.u32 %v1627, 7
        %v1629 = vsub.s32 %v1626, %v1628
        %v1630 = vrot.slane %v1540, %v1629
        %v1632 = vunpack.c.l.s4 1983009808
        %v1633 = vunpack.c.0.s8 %v1632
        %v1634 = vlaneseq
        %v1635 = vshrl.u32 %v1634, 7
        %v1636 = vsub.s32 %v1633, %v1635
        %v1637 = vrot.slane %v1623, %v1636
        %v1638 = vcombine.low %v1615, %v1630
        %v1639 = vcombine.high %v1615, %v1630
        %v1641 = vunpack.c.l.s4 1934713408
        %v1642 = vunpack.c.0.s8 %v1641
        %v1643 = vlaneseq
        %v1644 = vshrl.u32 %v1643, 7
        %v1645 = vsub.s32 %v1642, %v1644
        %v1646 = vrot.slane %v1638, %v1645
        %v1648 = vunpack.c.l.s4 1934713408
        %v1649 = vunpack.c.0.s8 %v1648
        %v1650 = vlaneseq
        %v1651 = vshrl.u32 %v1650, 7
        %v1652 = vsub.s32 %v1649, %v1651
        %v1653 = vrot.slane %v1639, %v1652
        %v1654 = vcombine.low %v1622, %v1637
        %v1655 = vcombine.high %v1622, %v1637
        %v1657 = vunpack.c.l.s4 1934713408
        %v1658 = vunpack.c.0.s8 %v1657
        %v1659 = vlaneseq
        %v1660 = vshrl.u32 %v1659, 7
        %v1661 = vsub.s32 %v1658, %v1660
        %v1662 = vrot.slane %v1654, %v1661
        %v1664 = vunpack.c.l.s4 1934713408
        %v1665 = vunpack.c.0.s8 %v1664
        %v1666 = vlaneseq
        %v1667 = vshrl.u32 %v1666, 7
        %v1668 = vsub.s32 %v1665, %v1667
        %v1669 = vrot.slane %v1655, %v1668
        %v1670 = vcombine.high %v1646, 0
        %v1671 = vcombine.high %v1653, 0
        %v1672 = vcombine.high %v1662, 0
        %v1673 = vcombine.high %v1669, 0
        %v1674 = vcombine.low %v1580, %v1587
        %v1676 = vunpack.c.l.s4 1983009808
        %v1677 = vunpack.c.0.s8 %v1676
        %v1678 = vlaneseq
        %v1679 = vshrl.u32 %v1678, 7
        %v1680 = vsub.s32 %v1677, %v1679
        %v1681 = vrot.slane %v1674, %v1680
        %v1682 = vcombine.low %v1604, %v1605
        %v1684 = vunpack.c.l.s4 1983009808
        %v1685 = vunpack.c.0.s8 %v1684
        %v1686 = vlaneseq
        %v1687 = vshrl.u32 %v1686, 7
        %v1688 = vsub.s32 %v1685, %v1687
        %v1689 = vrot.slane %v1682, %v1688
        %v1690 = vcombine.low %v1596, %v1603
        %v1692 = vunpack.c.l.s4 1983009808
        %v1693 = vunpack.c.0.s8 %v1692
        %v1694 = vlaneseq
        %v1695 = vshrl.u32 %v1694, 7
        %v1696 = vsub.s32 %v1693, %v1695
        %v1697 = vrot.slane %v1690, %v1696
        %v1698 = vcombine.low %v1606, %v1607
        %v1700 = vunpack.c.l.s4 1983009808
        %v1701 = vunpack.c.0.s8 %v1700
        %v1702 = vlaneseq
        %v1703 = vshrl.u32 %v1702, 7
        %v1704 = vsub.s32 %v1701, %v1703
        %v1705 = vrot.slane %v1698, %v1704
        %v1706 = vcombine.low %v1681, %v1689
        %v1708 = vunpack.c.l.s4 1934713408
        %v1709 = vunpack.c.0.s8 %v1708
        %v1710 = vlaneseq
        %v1711 = vshrl.u32 %v1710, 7
        %v1712 = vsub.s32 %v1709, %v1711
        %v1713 = vrot.slane %v1706, %v1712
        %v1714 = vcombine.low %v1697, %v1705
        %v1716 = vunpack.c.l.s4 1934713408
        %v1717 = vunpack.c.0.s8 %v1716
        %v1718 = vlaneseq
        %v1719 = vshrl.u32 %v1718, 7
        %v1720 = vsub.s32 %v1717, %v1719
        %v1721 = vrot.slane %v1714, %v1720
        %v1722 = vcombine.low %v1713, %v1721
        %v1723 = vcombine.high %v1713, %v1721
        %v1724 = vcombine.low %v1646, %v1653
        %v1726 = vunpack.c.l.s4 1983009808
        %v1727 = vunpack.c.0.s8 %v1726
        %v1728 = vlaneseq
        %v1729 = vshrl.u32 %v1728, 7
        %v1730 = vsub.s32 %v1727, %v1729
        %v1731 = vrot.slane %v1724, %v1730
        %v1732 = vcombine.low %v1670, %v1671
        %v1734 = vunpack.c.l.s4 1983009808
        %v1735 = vunpack.c.0.s8 %v1734
        %v1736 = vlaneseq
        %v1737 = vshrl.u32 %v1736, 7
        %v1738 = vsub.s32 %v1735, %v1737
        %v1739 = vrot.slane %v1732, %v1738
        %v1740 = vcombine.low %v1662, %v1669
        %v1742 = vunpack.c.l.s4 1983009808
        %v1743 = vunpack.c.0.s8 %v1742
        %v1744 = vlaneseq
        %v1745 = vshrl.u32 %v1744, 7
        %v1746 = vsub.s32 %v1743, %v1745
        %v1747 = vrot.slane %v1740, %v1746
        %v1748 = vcombine.low %v1672, %v1673
        %v1750 = vunpack.c.l.s4 1983009808
        %v1751 = vunpack.c.0.s8 %v1750
        %v1752 = vlaneseq
        %v1753 = vshrl.u32 %v1752, 7
        %v1754 = vsub.s32 %v1751, %v1753
        %v1755 = vrot.slane %v1748, %v1754
        %v1756 = vcombine.low %v1731, %v1739
        %v1758 = vunpack.c.l.s4 1934713408
        %v1759 = vunpack.c.0.s8 %v1758
        %v1760 = vlaneseq
        %v1761 = vshrl.u32 %v1760, 7
        %v1762 = vsub.s32 %v1759, %v1761
        %v1763 = vrot.slane %v1756, %v1762
        %v1764 = vcombine.low %v1747, %v1755
        %v1766 = vunpack.c.l.s4 1934713408
        %v1767 = vunpack.c.0.s8 %v1766
        %v1768 = vlaneseq
        %v1769 = vshrl.u32 %v1768, 7
        %v1770 = vsub.s32 %v1767, %v1769
        %v1771 = vrot.slane %v1764, %v1770
        %v1772 = vcombine.low %v1763, %v1771
        %v1773 = vcombine.high %v1763, %v1771
        %v1776 = vpack.i.b16 %v1772, %v1722
        %v1778 = vshrl.u32 %v1722, 16
        %v1779 = vshrl.u32 %v1772, 16
        %v1780 = vpack.i.b16 %v1779, %v1778
        %v1784 = vpack.i.b16 %v1773, %v1723
        %v1786 = vshrl.u32 %v1723, 16
        %v1787 = vshrl.u32 %v1773, 16
        %v1788 = vpack.i.b16 %v1787, %v1786
        %vm1790 = vcmask 261120
        %v1792 = vsel %vm1790, %v1242, 0
        %v1795 = vsel %vm1790, %v1509, 0
        %1797 = vmatprep.subr.bf16.mxu0 0
        %1798 = vmatpush1.bf16.xpose.msra.mxu0 0
        %1799 = vmatprep.subr.bf16.mxu0 0
        %1800 = vmatpush1.bf16.xpose.msra.mxu0 0
        %1801 = vmatprep.subr.bf16.mxu0 0
        %1802 = vmatpush1.bf16.xpose.msra.mxu0 0
        %1803 = vmatprep.subr.bf16.mxu0 0
        %1804 = vmatpush1.bf16.xpose.msra.mxu0 0
        %1805 = vmatprep.subr.bf16.mxu0 0
        %1806 = vmatpush1.bf16.xpose.msra.mxu0 0
        %1807 = vmatprep.subr.bf16.mxu0 0
        %1808 = vmatpush1.bf16.xpose.msra.mxu0 0
        %1809 = vmatprep.subr.bf16.mxu0 0
        %1810 = vmatpush1.bf16.xpose.msra.mxu0 0
        %1811 = vmatprep.subr.bf16.mxu0 0
        %1812 = vmatpush1.bf16.xpose.msra.mxu0 %v1795
        %1813 = vmatprep.subr.bf16.mxu0 0
        %1814 = vmatpush2.bf16.xpose.msra.mxu0 0
        %1815 = vmatprep.subr.bf16.mxu0 0
        %1816 = vmatpush2.bf16.xpose.msra.mxu0 0
        %1817 = vmatprep.subr.bf16.mxu0 0
        %1818 = vmatpush2.bf16.xpose.msra.mxu0 0
        %1819 = vmatprep.subr.bf16.mxu0 0
        %1820 = vmatpush2.bf16.xpose.msra.mxu0 0
        %1821 = vmatprep.subr.bf16.mxu0 0
        %1822 = vmatpush2.bf16.xpose.msra.mxu0 0
        %1823 = vmatprep.subr.bf16.mxu0 0
        %1824 = vmatpush2.bf16.xpose.msra.mxu0 0
        %1825 = vmatprep.subr.bf16.mxu0 0
        %1826 = vmatpush2.bf16.xpose.msra.mxu0 0
        %1827 = vmatprep.subr.bf16.mxu0 0
        %1828 = vmatpush2.bf16.xpose.msra.mxu0 0
        %1829 = vmatprep.mubr.bf16.mxu0 0
        %1830 = vmatmul.mubr.bf16.gmra.mxu0 %v1792
        %v1831 = vpop.f32.mrf.mxu0
        %v1832 = vadd.f32 0.0, %v1831
        %v1833 = vpop.f32.mrf.mxu0
        %v1834 = vpop.f32.mrf.mxu0
        %v1835 = vadd.f32 0.0, %v1834
        %v1836 = vpop.f32.mrf.mxu0
        %1837 = vdwg.mxu0
        %v1839 = vsel %vm1790, %v1245, 0
        %v1842 = vsel %vm1790, %v1512, 0
        %1844 = vmatprep.subr.bf16.mxu0 0
        %1845 = vmatpush1.bf16.xpose.msra.mxu0 0
        %1846 = vmatprep.subr.bf16.mxu0 0
        %1847 = vmatpush1.bf16.xpose.msra.mxu0 0
        %1848 = vmatprep.subr.bf16.mxu0 0
        %1849 = vmatpush1.bf16.xpose.msra.mxu0 0
        %1850 = vmatprep.subr.bf16.mxu0 0
        %1851 = vmatpush1.bf16.xpose.msra.mxu0 0
        %1852 = vmatprep.subr.bf16.mxu0 0
        %1853 = vmatpush1.bf16.xpose.msra.mxu0 0
        %1854 = vmatprep.subr.bf16.mxu0 0
        %1855 = vmatpush1.bf16.xpose.msra.mxu0 0
        %1856 = vmatprep.subr.bf16.mxu0 0
        %1857 = vmatpush1.bf16.xpose.msra.mxu0 0
        %1858 = vmatprep.subr.bf16.mxu0 0
        %1859 = vmatpush1.bf16.xpose.msra.mxu0 %v1842
        %1860 = vmatprep.subr.bf16.mxu0 0
        %1861 = vmatpush2.bf16.xpose.msra.mxu0 0
        %1862 = vmatprep.subr.bf16.mxu0 0
        %1863 = vmatpush2.bf16.xpose.msra.mxu0 0
        %1864 = vmatprep.subr.bf16.mxu0 0
        %1865 = vmatpush2.bf16.xpose.msra.mxu0 0
        %1866 = vmatprep.subr.bf16.mxu0 0
        %1867 = vmatpush2.bf16.xpose.msra.mxu0 0
        %1868 = vmatprep.subr.bf16.mxu0 0
        %1869 = vmatpush2.bf16.xpose.msra.mxu0 0
        %1870 = vmatprep.subr.bf16.mxu0 0
        %1871 = vmatpush2.bf16.xpose.msra.mxu0 0
        %1872 = vmatprep.subr.bf16.mxu0 0
        %1873 = vmatpush2.bf16.xpose.msra.mxu0 0
        %1874 = vmatprep.subr.bf16.mxu0 0
        %1875 = vmatpush2.bf16.xpose.msra.mxu0 0
        %1876 = vmatprep.mubr.bf16.mxu0 0
        %1877 = vmatmul.mubr.bf16.gmra.mxu0 %v1839
        %v1878 = vpop.f32.mrf.mxu0
        %v1879 = vadd.f32 0.0, %v1878
        %v1880 = vpop.f32.mrf.mxu0
        %v1881 = vpop.f32.mrf.mxu0
        %v1882 = vadd.f32 0.0, %v1881
        %v1883 = vpop.f32.mrf.mxu0
        %1884 = vdwg.mxu0
        %v1886 = vsel %vm1790, %v1248, 0
        %v1889 = vsel %vm1790, %v1515, 0
        %1891 = vmatprep.subr.bf16.mxu0 0
        %1892 = vmatpush1.bf16.xpose.msra.mxu0 0
        %1893 = vmatprep.subr.bf16.mxu0 0
        %1894 = vmatpush1.bf16.xpose.msra.mxu0 0
        %1895 = vmatprep.subr.bf16.mxu0 0
        %1896 = vmatpush1.bf16.xpose.msra.mxu0 0
        %1897 = vmatprep.subr.bf16.mxu0 0
        %1898 = vmatpush1.bf16.xpose.msra.mxu0 0
        %1899 = vmatprep.subr.bf16.mxu0 0
        %1900 = vmatpush1.bf16.xpose.msra.mxu0 0
        %1901 = vmatprep.subr.bf16.mxu0 0
        %1902 = vmatpush1.bf16.xpose.msra.mxu0 0
        %1903 = vmatprep.subr.bf16.mxu0 0
        %1904 = vmatpush1.bf16.xpose.msra.mxu0 0
        %1905 = vmatprep.subr.bf16.mxu0 0
        %1906 = vmatpush1.bf16.xpose.msra.mxu0 %v1889
        %1907 = vmatprep.subr.bf16.mxu0 0
        %1908 = vmatpush2.bf16.xpose.msra.mxu0 0
        %1909 = vmatprep.subr.bf16.mxu0 0
        %1910 = vmatpush2.bf16.xpose.msra.mxu0 0
        %1911 = vmatprep.subr.bf16.mxu0 0
        %1912 = vmatpush2.bf16.xpose.msra.mxu0 0
        %1913 = vmatprep.subr.bf16.mxu0 0
        %1914 = vmatpush2.bf16.xpose.msra.mxu0 0
        %1915 = vmatprep.subr.bf16.mxu0 0
        %1916 = vmatpush2.bf16.xpose.msra.mxu0 0
        %1917 = vmatprep.subr.bf16.mxu0 0
        %1918 = vmatpush2.bf16.xpose.msra.mxu0 0
        %1919 = vmatprep.subr.bf16.mxu0 0
        %1920 = vmatpush2.bf16.xpose.msra.mxu0 0
        %1921 = vmatprep.subr.bf16.mxu0 0
        %1922 = vmatpush2.bf16.xpose.msra.mxu0 0
        %1923 = vmatprep.mubr.bf16.mxu0 0
        %1924 = vmatmul.mubr.bf16.gmra.mxu0 %v1886
        %v1925 = vpop.f32.mrf.mxu0
        %v1926 = vadd.f32 0.0, %v1925
        %v1927 = vpop.f32.mrf.mxu0
        %v1928 = vpop.f32.mrf.mxu0
        %v1929 = vadd.f32 0.0, %v1928
        %v1930 = vpop.f32.mrf.mxu0
        %1931 = vdwg.mxu0
        %v1933 = vsel %vm1790, %v1251, 0
        %v1936 = vsel %vm1790, %v1518, 0
        %1938 = vmatprep.subr.bf16.mxu0 0
        %1939 = vmatpush1.bf16.xpose.msra.mxu0 0
        %1940 = vmatprep.subr.bf16.mxu0 0
        %1941 = vmatpush1.bf16.xpose.msra.mxu0 0
        %1942 = vmatprep.subr.bf16.mxu0 0
        %1943 = vmatpush1.bf16.xpose.msra.mxu0 0
        %1944 = vmatprep.subr.bf16.mxu0 0
        %1945 = vmatpush1.bf16.xpose.msra.mxu0 0
        %1946 = vmatprep.subr.bf16.mxu0 0
        %1947 = vmatpush1.bf16.xpose.msra.mxu0 0
        %1948 = vmatprep.subr.bf16.mxu0 0
        %1949 = vmatpush1.bf16.xpose.msra.mxu0 0
        %1950 = vmatprep.subr.bf16.mxu0 0
        %1951 = vmatpush1.bf16.xpose.msra.mxu0 0
        %1952 = vmatprep.subr.bf16.mxu0 0
        %1953 = vmatpush1.bf16.xpose.msra.mxu0 %v1936
        %1954 = vmatprep.subr.bf16.mxu0 0
        %1955 = vmatpush2.bf16.xpose.msra.mxu0 0
        %1956 = vmatprep.subr.bf16.mxu0 0
        %1957 = vmatpush2.bf16.xpose.msra.mxu0 0
        %1958 = vmatprep.subr.bf16.mxu0 0
        %1959 = vmatpush2.bf16.xpose.msra.mxu0 0
        %1960 = vmatprep.subr.bf16.mxu0 0
        %1961 = vmatpush2.bf16.xpose.msra.mxu0 0
        %1962 = vmatprep.subr.bf16.mxu0 0
        %1963 = vmatpush2.bf16.xpose.msra.mxu0 0
        %1964 = vmatprep.subr.bf16.mxu0 0
        %1965 = vmatpush2.bf16.xpose.msra.mxu0 0
        %1966 = vmatprep.subr.bf16.mxu0 0
        %1967 = vmatpush2.bf16.xpose.msra.mxu0 0
        %1968 = vmatprep.subr.bf16.mxu0 0
        %1969 = vmatpush2.bf16.xpose.msra.mxu0 0
        %1970 = vmatprep.mubr.bf16.mxu0 0
        %1971 = vmatmul.mubr.bf16.gmra.mxu0 %v1933
        %v1972 = vpop.f32.mrf.mxu0
        %v1973 = vadd.f32 0.0, %v1972
        %v1974 = vpop.f32.mrf.mxu0
        %v1975 = vpop.f32.mrf.mxu0
        %v1976 = vadd.f32 0.0, %v1975
        %v1977 = vpop.f32.mrf.mxu0
        %1978 = vdwg.mxu0
        %v1979 = vmul.f32 %v1832, 0.17677669
        %v1980 = vmul.f32 %v1835, 0.17677669
        %v1981 = vmul.f32 %v1879, 0.17677669
        %v1982 = vmul.f32 %v1882, 0.17677669
        %v1983 = vmul.f32 %v1926, 0.17677669
        %v1984 = vmul.f32 %v1929, 0.17677669
        %v1985 = vmul.f32 %v1973, 0.17677669
        %v1986 = vmul.f32 %v1976, 0.17677669
        %v1987 = vadd.f32 %v1979, %v977
        %v1988 = vadd.f32 %v1980, %v978
        %v1989 = vadd.f32 %v1981, %v977
        %v1990 = vadd.f32 %v1982, %v978
        %v1991 = vadd.f32 %v1983, %v977
        %v1992 = vadd.f32 %v1984, %v978
        %v1993 = vadd.f32 %v1985, %v977
        %v1994 = vadd.f32 %v1986, %v978
        %vm1995 = vcmask 130048
        %v1996 = vsel %vm1995, %v1987, -inf
        %1997 = vmax.xlane.f32.xlu0 %v1996
        %v1998 = vpop.xlane.xlu0 %1997
        %v1999 = vsel %vm1995, %v1988, -inf
        %2000 = vmax.xlane.f32.xlu0 %v1999
        %v2001 = vpop.xlane.xlu0 %2000
        %v2002 = vsel %vm1995, %v1989, -inf
        %2003 = vmax.xlane.f32.xlu0 %v2002
        %v2004 = vpop.xlane.xlu0 %2003
        %v2005 = vsel %vm1995, %v1990, -inf
        %2006 = vmax.xlane.f32.xlu0 %v2005
        %v2007 = vpop.xlane.xlu0 %2006
        %v2008 = vsel %vm1995, %v1991, -inf
        %2009 = vmax.xlane.f32.xlu0 %v2008
        %v2010 = vpop.xlane.xlu0 %2009
        %v2011 = vsel %vm1995, %v1992, -inf
        %2012 = vmax.xlane.f32.xlu0 %v2011
        %v2013 = vpop.xlane.xlu0 %2012
        %v2014 = vsel %vm1995, %v1993, -inf
        %2015 = vmax.xlane.f32.xlu0 %v2014
        %v2016 = vpop.xlane.xlu0 %2015
        %v2017 = vsel %vm1995, %v1994, -inf
        %2018 = vmax.xlane.f32.xlu0 %v2017
        %v2019 = vpop.xlane.xlu0 %2018
        %v2020 = vsub.f32 %v1987, %v1998
        %v2021 = vsub.f32 %v1988, %v2001
        %v2022 = vsub.f32 %v1989, %v2004
        %v2023 = vsub.f32 %v1990, %v2007
        %v2024 = vsub.f32 %v1991, %v2010
        %v2025 = vsub.f32 %v1992, %v2013
        %v2026 = vsub.f32 %v1993, %v2016
        %v2027 = vsub.f32 %v1994, %v2019
        %v2028 = vmul.f32 %v2020, 1.442695
        %v2029 = vpow.pop %v2028
        %v2030 = vmul.f32 %v2021, 1.442695
        %v2031 = vpow.pop %v2030
        %v2032 = vmul.f32 %v2022, 1.442695
        %v2033 = vpow.pop %v2032
        %v2034 = vmul.f32 %v2023, 1.442695
        %v2035 = vpow.pop %v2034
        %v2036 = vmul.f32 %v2024, 1.442695
        %v2037 = vpow.pop %v2036
        %v2038 = vmul.f32 %v2025, 1.442695
        %v2039 = vpow.pop %v2038
        %v2040 = vmul.f32 %v2026, 1.442695
        %v2041 = vpow.pop %v2040
        %v2042 = vmul.f32 %v2027, 1.442695
        %v2043 = vpow.pop %v2042
        %v2044 = vsel %vm1995, %v2029, 0.0
        %2045 = vadd.xlane.f32.xlu0 %v2044
        %v2046 = vpop.xlane.xlu0 %2045
        %v2047 = vsel %vm1995, %v2031, 0.0
        %2048 = vadd.xlane.f32.xlu0 %v2047
        %v2049 = vpop.xlane.xlu0 %2048
        %v2050 = vsel %vm1995, %v2033, 0.0
        %2051 = vadd.xlane.f32.xlu0 %v2050
        %v2052 = vpop.xlane.xlu0 %2051
        %v2053 = vsel %vm1995, %v2035, 0.0
        %2054 = vadd.xlane.f32.xlu0 %v2053
        %v2055 = vpop.xlane.xlu0 %2054
        %v2056 = vsel %vm1995, %v2037, 0.0
        %2057 = vadd.xlane.f32.xlu0 %v2056
        %v2058 = vpop.xlane.xlu0 %2057
        %v2059 = vsel %vm1995, %v2039, 0.0
        %2060 = vadd.xlane.f32.xlu0 %v2059
        %v2061 = vpop.xlane.xlu0 %2060
        %v2062 = vsel %vm1995, %v2041, 0.0
        %2063 = vadd.xlane.f32.xlu0 %v2062
        %v2064 = vpop.xlane.xlu0 %2063
        %v2065 = vsel %vm1995, %v2043, 0.0
        %2066 = vadd.xlane.f32.xlu0 %v2065
        %v2067 = vpop.xlane.xlu0 %2066
        %v2068 = vrcp.pop %v2046
        %v2069 = vrcp.pop %v2049
        %v2070 = vrcp.pop %v2052
        %v2071 = vrcp.pop %v2055
        %v2072 = vrcp.pop %v2058
        %v2073 = vrcp.pop %v2061
        %v2074 = vrcp.pop %v2064
        %v2075 = vrcp.pop %v2067
        %v2076 = vmul.f32 %v2029, %v2068
        %v2077 = vmul.f32 %v2031, %v2069
        %v2078 = vmul.f32 %v2033, %v2070
        %v2079 = vmul.f32 %v2035, %v2071
        %v2080 = vmul.f32 %v2037, %v2072
        %v2081 = vmul.f32 %v2039, %v2073
        %v2082 = vmul.f32 %v2041, %v2074
        %v2083 = vmul.f32 %v2043, %v2075
        %v2084 = vpack.c.bf16 %v2077, %v2076
        %v2085 = vpack.c.bf16 %v2079, %v2078
        %v2086 = vpack.c.bf16 %v2081, %v2080
        %v2087 = vpack.c.bf16 %v2083, %v2082
        %v2089 = vsel %vm1995, %v2084, 0
        %2091 = vmatprep.subr.bf16.mxu0 0
        %2092 = vmatpush1.bf16.msra.mxu0 0
        %2093 = vmatprep.subr.bf16.mxu0 0
        %2094 = vmatpush1.bf16.msra.mxu0 0
        %2095 = vmatprep.subr.bf16.mxu0 0
        %2096 = vmatpush1.bf16.msra.mxu0 0
        %2097 = vmatprep.subr.bf16.mxu0 0
        %2098 = vmatpush1.bf16.msra.mxu0 0
        %2099 = vmatprep.subr.bf16.mxu0 0
        %2100 = vmatpush1.bf16.msra.mxu0 0
        %2101 = vmatprep.subr.bf16.mxu0 0
        %2102 = vmatpush1.bf16.msra.mxu0 0
        %2103 = vmatprep.subr.bf16.mxu0 0
        %2104 = vmatpush1.bf16.msra.mxu0 0
        %2105 = vmatprep.subr.bf16.mxu0 0
        %2106 = vmatpush1.bf16.msra.mxu0 %v1776
        %2107 = vmatprep.subr.bf16.mxu0 0
        %2108 = vmatpush2.bf16.msra.mxu0 0
        %2109 = vmatprep.subr.bf16.mxu0 0
        %2110 = vmatpush2.bf16.msra.mxu0 0
        %2111 = vmatprep.subr.bf16.mxu0 0
        %2112 = vmatpush2.bf16.msra.mxu0 0
        %2113 = vmatprep.subr.bf16.mxu0 0
        %2114 = vmatpush2.bf16.msra.mxu0 0
        %2115 = vmatprep.subr.bf16.mxu0 0
        %2116 = vmatpush2.bf16.msra.mxu0 0
        %2117 = vmatprep.subr.bf16.mxu0 0
        %2118 = vmatpush2.bf16.msra.mxu0 0
        %2119 = vmatprep.subr.bf16.mxu0 0
        %2120 = vmatpush2.bf16.msra.mxu0 0
        %2121 = vmatprep.subr.bf16.mxu0 0
        %2122 = vmatpush2.bf16.msra.mxu0 0
        %2123 = vmatprep.mubr.bf16.mxu0 0
        %2124 = vmatmul.mubr.bf16.gmra.mxu0 %v2089
        %v2125 = vpop.f32.mrf.mxu0
        %v2126 = vadd.f32 0.0, %v2125
        %v2127 = vpop.f32.mrf.mxu0
        %v2128 = vpop.f32.mrf.mxu0
        %v2129 = vadd.f32 0.0, %v2128
        %v2130 = vpop.f32.mrf.mxu0
        %2131 = vdwg.mxu0
        %v2133 = vsel %vm1995, %v2085, 0
        %2135 = vmatprep.subr.bf16.mxu0 0
        %2136 = vmatpush1.bf16.msra.mxu0 0
        %2137 = vmatprep.subr.bf16.mxu0 0
        %2138 = vmatpush1.bf16.msra.mxu0 0
        %2139 = vmatprep.subr.bf16.mxu0 0
        %2140 = vmatpush1.bf16.msra.mxu0 0
        %2141 = vmatprep.subr.bf16.mxu0 0
        %2142 = vmatpush1.bf16.msra.mxu0 0
        %2143 = vmatprep.subr.bf16.mxu0 0
        %2144 = vmatpush1.bf16.msra.mxu0 0
        %2145 = vmatprep.subr.bf16.mxu0 0
        %2146 = vmatpush1.bf16.msra.mxu0 0
        %2147 = vmatprep.subr.bf16.mxu0 0
        %2148 = vmatpush1.bf16.msra.mxu0 0
        %2149 = vmatprep.subr.bf16.mxu0 0
        %2150 = vmatpush1.bf16.msra.mxu0 %v1780
        %2151 = vmatprep.subr.bf16.mxu0 0
        %2152 = vmatpush2.bf16.msra.mxu0 0
        %2153 = vmatprep.subr.bf16.mxu0 0
        %2154 = vmatpush2.bf16.msra.mxu0 0
        %2155 = vmatprep.subr.bf16.mxu0 0
        %2156 = vmatpush2.bf16.msra.mxu0 0
        %2157 = vmatprep.subr.bf16.mxu0 0
        %2158 = vmatpush2.bf16.msra.mxu0 0
        %2159 = vmatprep.subr.bf16.mxu0 0
        %2160 = vmatpush2.bf16.msra.mxu0 0
        %2161 = vmatprep.subr.bf16.mxu0 0
        %2162 = vmatpush2.bf16.msra.mxu0 0
        %2163 = vmatprep.subr.bf16.mxu0 0
        %2164 = vmatpush2.bf16.msra.mxu0 0
        %2165 = vmatprep.subr.bf16.mxu0 0
        %2166 = vmatpush2.bf16.msra.mxu0 0
        %2167 = vmatprep.mubr.bf16.mxu0 0
        %2168 = vmatmul.mubr.bf16.gmra.mxu0 %v2133
        %v2169 = vpop.f32.mrf.mxu0
        %v2170 = vadd.f32 0.0, %v2169
        %v2171 = vpop.f32.mrf.mxu0
        %v2172 = vpop.f32.mrf.mxu0
        %v2173 = vadd.f32 0.0, %v2172
        %v2174 = vpop.f32.mrf.mxu0
        %2175 = vdwg.mxu0
        %v2177 = vsel %vm1995, %v2086, 0
        %2179 = vmatprep.subr.bf16.mxu0 0
        %2180 = vmatpush1.bf16.msra.mxu0 0
        %2181 = vmatprep.subr.bf16.mxu0 0
        %2182 = vmatpush1.bf16.msra.mxu0 0
        %2183 = vmatprep.subr.bf16.mxu0 0
        %2184 = vmatpush1.bf16.msra.mxu0 0
        %2185 = vmatprep.subr.bf16.mxu0 0
        %2186 = vmatpush1.bf16.msra.mxu0 0
        %2187 = vmatprep.subr.bf16.mxu0 0
        %2188 = vmatpush1.bf16.msra.mxu0 0
        %2189 = vmatprep.subr.bf16.mxu0 0
        %2190 = vmatpush1.bf16.msra.mxu0 0
        %2191 = vmatprep.subr.bf16.mxu0 0
        %2192 = vmatpush1.bf16.msra.mxu0 0
        %2193 = vmatprep.subr.bf16.mxu0 0
        %2194 = vmatpush1.bf16.msra.mxu0 %v1784
        %2195 = vmatprep.subr.bf16.mxu0 0
        %2196 = vmatpush2.bf16.msra.mxu0 0
        %2197 = vmatprep.subr.bf16.mxu0 0
        %2198 = vmatpush2.bf16.msra.mxu0 0
        %2199 = vmatprep.subr.bf16.mxu0 0
        %2200 = vmatpush2.bf16.msra.mxu0 0
        %2201 = vmatprep.subr.bf16.mxu0 0
        %2202 = vmatpush2.bf16.msra.mxu0 0
        %2203 = vmatprep.subr.bf16.mxu0 0
        %2204 = vmatpush2.bf16.msra.mxu0 0
        %2205 = vmatprep.subr.bf16.mxu0 0
        %2206 = vmatpush2.bf16.msra.mxu0 0
        %2207 = vmatprep.subr.bf16.mxu0 0
        %2208 = vmatpush2.bf16.msra.mxu0 0
        %2209 = vmatprep.subr.bf16.mxu0 0
        %2210 = vmatpush2.bf16.msra.mxu0 0
        %2211 = vmatprep.mubr.bf16.mxu0 0
        %2212 = vmatmul.mubr.bf16.gmra.mxu0 %v2177
        %v2213 = vpop.f32.mrf.mxu0
        %v2214 = vadd.f32 0.0, %v2213
        %v2215 = vpop.f32.mrf.mxu0
        %v2216 = vpop.f32.mrf.mxu0
        %v2217 = vadd.f32 0.0, %v2216
        %v2218 = vpop.f32.mrf.mxu0
        %2219 = vdwg.mxu0
        %v2221 = vsel %vm1995, %v2087, 0
        %2223 = vmatprep.subr.bf16.mxu0 0
        %2224 = vmatpush1.bf16.msra.mxu0 0
        %2225 = vmatprep.subr.bf16.mxu0 0
        %2226 = vmatpush1.bf16.msra.mxu0 0
        %2227 = vmatprep.subr.bf16.mxu0 0
        %2228 = vmatpush1.bf16.msra.mxu0 0
        %2229 = vmatprep.subr.bf16.mxu0 0
        %2230 = vmatpush1.bf16.msra.mxu0 0
        %2231 = vmatprep.subr.bf16.mxu0 0
        %2232 = vmatpush1.bf16.msra.mxu0 0
        %2233 = vmatprep.subr.bf16.mxu0 0
        %2234 = vmatpush1.bf16.msra.mxu0 0
        %2235 = vmatprep.subr.bf16.mxu0 0
        %2236 = vmatpush1.bf16.msra.mxu0 0
        %2237 = vmatprep.subr.bf16.mxu0 0
        %2238 = vmatpush1.bf16.msra.mxu0 %v1788
        %2239 = vmatprep.subr.bf16.mxu0 0
        %2240 = vmatpush2.bf16.msra.mxu0 0
        %2241 = vmatprep.subr.bf16.mxu0 0
        %2242 = vmatpush2.bf16.msra.mxu0 0
        %2243 = vmatprep.subr.bf16.mxu0 0
        %2244 = vmatpush2.bf16.msra.mxu0 0
        %2245 = vmatprep.subr.bf16.mxu0 0
        %2246 = vmatpush2.bf16.msra.mxu0 0
        %2247 = vmatprep.subr.bf16.mxu0 0
        %2248 = vmatpush2.bf16.msra.mxu0 0
        %2249 = vmatprep.subr.bf16.mxu0 0
        %2250 = vmatpush2.bf16.msra.mxu0 0
        %2251 = vmatprep.subr.bf16.mxu0 0
        %2252 = vmatpush2.bf16.msra.mxu0 0
        %2253 = vmatprep.subr.bf16.mxu0 0
        %2254 = vmatpush2.bf16.msra.mxu0 0
        %2255 = vmatprep.mubr.bf16.mxu0 0
        %2256 = vmatmul.mubr.bf16.gmra.mxu0 %v2221
        %v2257 = vpop.f32.mrf.mxu0
        %v2258 = vadd.f32 0.0, %v2257
        %v2259 = vpop.f32.mrf.mxu0
        %v2260 = vpop.f32.mrf.mxu0
        %v2261 = vadd.f32 0.0, %v2260
        %v2262 = vpop.f32.mrf.mxu0
        %2263 = vdwg.mxu0
        %v2264 = vcombine.low %v2126, %v2214
        %v2265 = vcombine.high %v2126, %v2214
        %v2267 = vunpack.c.l.s4 1983009808
        %v2268 = vunpack.c.0.s8 %v2267
        %v2269 = vlaneseq
        %v2270 = vshrl.u32 %v2269, 7
        %v2271 = vsub.s32 %v2268, %v2270
        %v2272 = vrot.slane %v2264, %v2271
        %v2274 = vunpack.c.l.s4 1983009808
        %v2275 = vunpack.c.0.s8 %v2274
        %v2276 = vlaneseq
        %v2277 = vshrl.u32 %v2276, 7
        %v2278 = vsub.s32 %v2275, %v2277
        %v2279 = vrot.slane %v2265, %v2278
        %v2280 = vcombine.low %v2170, %v2258
        %v2281 = vcombine.high %v2170, %v2258
        %v2283 = vunpack.c.l.s4 1983009808
        %v2284 = vunpack.c.0.s8 %v2283
        %v2285 = vlaneseq
        %v2286 = vshrl.u32 %v2285, 7
        %v2287 = vsub.s32 %v2284, %v2286
        %v2288 = vrot.slane %v2280, %v2287
        %v2290 = vunpack.c.l.s4 1983009808
        %v2291 = vunpack.c.0.s8 %v2290
        %v2292 = vlaneseq
        %v2293 = vshrl.u32 %v2292, 7
        %v2294 = vsub.s32 %v2291, %v2293
        %v2295 = vrot.slane %v2281, %v2294
        %v2296 = vcombine.low %v2272, %v2288
        %v2297 = vcombine.high %v2272, %v2288
        %v2299 = vunpack.c.l.s4 1934713408
        %v2300 = vunpack.c.0.s8 %v2299
        %v2301 = vlaneseq
        %v2302 = vshrl.u32 %v2301, 7
        %v2303 = vsub.s32 %v2300, %v2302
        %v2304 = vrot.slane %v2296, %v2303
        %v2306 = vunpack.c.l.s4 1934713408
        %v2307 = vunpack.c.0.s8 %v2306
        %v2308 = vlaneseq
        %v2309 = vshrl.u32 %v2308, 7
        %v2310 = vsub.s32 %v2307, %v2309
        %v2311 = vrot.slane %v2297, %v2310
        %v2312 = vcombine.low %v2279, %v2295
        %v2313 = vcombine.high %v2279, %v2295
        %v2315 = vunpack.c.l.s4 1934713408
        %v2316 = vunpack.c.0.s8 %v2315
        %v2317 = vlaneseq
        %v2318 = vshrl.u32 %v2317, 7
        %v2319 = vsub.s32 %v2316, %v2318
        %v2320 = vrot.slane %v2312, %v2319
        %v2322 = vunpack.c.l.s4 1934713408
        %v2323 = vunpack.c.0.s8 %v2322
        %v2324 = vlaneseq
        %v2325 = vshrl.u32 %v2324, 7
        %v2326 = vsub.s32 %v2323, %v2325
        %v2327 = vrot.slane %v2313, %v2326
        %v2328 = vcombine.high %v2304, 0.0
        %v2329 = vcombine.high %v2311, 0.0
        %v2330 = vcombine.high %v2320, 0.0
        %v2331 = vcombine.high %v2327, 0.0
        %v2332 = vcombine.low %v2129, %v2217
        %v2333 = vcombine.high %v2129, %v2217
        %v2335 = vunpack.c.l.s4 1983009808
        %v2336 = vunpack.c.0.s8 %v2335
        %v2337 = vlaneseq
        %v2338 = vshrl.u32 %v2337, 7
        %v2339 = vsub.s32 %v2336, %v2338
        %v2340 = vrot.slane %v2332, %v2339
        %v2342 = vunpack.c.l.s4 1983009808
        %v2343 = vunpack.c.0.s8 %v2342
        %v2344 = vlaneseq
        %v2345 = vshrl.u32 %v2344, 7
        %v2346 = vsub.s32 %v2343, %v2345
        %v2347 = vrot.slane %v2333, %v2346
        %v2348 = vcombine.low %v2173, %v2261
        %v2349 = vcombine.high %v2173, %v2261
        %v2351 = vunpack.c.l.s4 1983009808
        %v2352 = vunpack.c.0.s8 %v2351
        %v2353 = vlaneseq
        %v2354 = vshrl.u32 %v2353, 7
        %v2355 = vsub.s32 %v2352, %v2354
        %v2356 = vrot.slane %v2348, %v2355
        %v2358 = vunpack.c.l.s4 1983009808
        %v2359 = vunpack.c.0.s8 %v2358
        %v2360 = vlaneseq
        %v2361 = vshrl.u32 %v2360, 7
        %v2362 = vsub.s32 %v2359, %v2361
        %v2363 = vrot.slane %v2349, %v2362
        %v2364 = vcombine.low %v2340, %v2356
        %v2365 = vcombine.high %v2340, %v2356
        %v2367 = vunpack.c.l.s4 1934713408
        %v2368 = vunpack.c.0.s8 %v2367
        %v2369 = vlaneseq
        %v2370 = vshrl.u32 %v2369, 7
        %v2371 = vsub.s32 %v2368, %v2370
        %v2372 = vrot.slane %v2364, %v2371
        %v2374 = vunpack.c.l.s4 1934713408
        %v2375 = vunpack.c.0.s8 %v2374
        %v2376 = vlaneseq
        %v2377 = vshrl.u32 %v2376, 7
        %v2378 = vsub.s32 %v2375, %v2377
        %v2379 = vrot.slane %v2365, %v2378
        %v2380 = vcombine.low %v2347, %v2363
        %v2381 = vcombine.high %v2347, %v2363
        %v2383 = vunpack.c.l.s4 1934713408
        %v2384 = vunpack.c.0.s8 %v2383
        %v2385 = vlaneseq
        %v2386 = vshrl.u32 %v2385, 7
        %v2387 = vsub.s32 %v2384, %v2386
        %v2388 = vrot.slane %v2380, %v2387
        %v2390 = vunpack.c.l.s4 1934713408
        %v2391 = vunpack.c.0.s8 %v2390
        %v2392 = vlaneseq
        %v2393 = vshrl.u32 %v2392, 7
        %v2394 = vsub.s32 %v2391, %v2393
        %v2395 = vrot.slane %v2381, %v2394
        %v2396 = vcombine.high %v2372, 0.0
        %v2397 = vcombine.high %v2379, 0.0
        %v2398 = vcombine.high %v2388, 0.0
        %v2399 = vcombine.high %v2395, 0.0
        %v2400 = vcombine.low %v2304, %v2311
        %v2402 = vunpack.c.l.s4 1983009808
        %v2403 = vunpack.c.0.s8 %v2402
        %v2404 = vlaneseq
        %v2405 = vshrl.u32 %v2404, 7
        %v2406 = vsub.s32 %v2403, %v2405
        %v2407 = vrot.slane %v2400, %v2406
        %v2408 = vcombine.low %v2328, %v2329
        %v2410 = vunpack.c.l.s4 1983009808
        %v2411 = vunpack.c.0.s8 %v2410
        %v2412 = vlaneseq
        %v2413 = vshrl.u32 %v2412, 7
        %v2414 = vsub.s32 %v2411, %v2413
        %v2415 = vrot.slane %v2408, %v2414
        %v2416 = vcombine.low %v2320, %v2327
        %v2418 = vunpack.c.l.s4 1983009808
        %v2419 = vunpack.c.0.s8 %v2418
        %v2420 = vlaneseq
        %v2421 = vshrl.u32 %v2420, 7
        %v2422 = vsub.s32 %v2419, %v2421
        %v2423 = vrot.slane %v2416, %v2422
        %v2424 = vcombine.low %v2330, %v2331
        %v2426 = vunpack.c.l.s4 1983009808
        %v2427 = vunpack.c.0.s8 %v2426
        %v2428 = vlaneseq
        %v2429 = vshrl.u32 %v2428, 7
        %v2430 = vsub.s32 %v2427, %v2429
        %v2431 = vrot.slane %v2424, %v2430
        %v2432 = vcombine.low %v2407, %v2415
        %v2433 = vcombine.high %v2407, %v2415
        %v2435 = vunpack.c.l.s4 1934713408
        %v2436 = vunpack.c.0.s8 %v2435
        %v2437 = vlaneseq
        %v2438 = vshrl.u32 %v2437, 7
        %v2439 = vsub.s32 %v2436, %v2438
        %v2440 = vrot.slane %v2432, %v2439
        %v2442 = vunpack.c.l.s4 1934713408
        %v2443 = vunpack.c.0.s8 %v2442
        %v2444 = vlaneseq
        %v2445 = vshrl.u32 %v2444, 7
        %v2446 = vsub.s32 %v2443, %v2445
        %v2447 = vrot.slane %v2433, %v2446
        %v2448 = vcombine.low %v2423, %v2431
        %v2449 = vcombine.high %v2423, %v2431
        %v2451 = vunpack.c.l.s4 1934713408
        %v2452 = vunpack.c.0.s8 %v2451
        %v2453 = vlaneseq
        %v2454 = vshrl.u32 %v2453, 7
        %v2455 = vsub.s32 %v2452, %v2454
        %v2456 = vrot.slane %v2448, %v2455
        %v2458 = vunpack.c.l.s4 1934713408
        %v2459 = vunpack.c.0.s8 %v2458
        %v2460 = vlaneseq
        %v2461 = vshrl.u32 %v2460, 7
        %v2462 = vsub.s32 %v2459, %v2461
        %v2463 = vrot.slane %v2449, %v2462
        %v2464 = vcombine.low %v2440, %v2456
        %v2465 = vcombine.high %v2440, %v2456
        %v2466 = vcombine.low %v2447, %v2463
        %v2467 = vcombine.high %v2447, %v2463
        %v2468 = vcombine.low %v2372, %v2379
        %v2470 = vunpack.c.l.s4 1983009808
        %v2471 = vunpack.c.0.s8 %v2470
        %v2472 = vlaneseq
        %v2473 = vshrl.u32 %v2472, 7
        %v2474 = vsub.s32 %v2471, %v2473
        %v2475 = vrot.slane %v2468, %v2474
        %v2476 = vcombine.low %v2396, %v2397
        %v2478 = vunpack.c.l.s4 1983009808
        %v2479 = vunpack.c.0.s8 %v2478
        %v2480 = vlaneseq
        %v2481 = vshrl.u32 %v2480, 7
        %v2482 = vsub.s32 %v2479, %v2481
        %v2483 = vrot.slane %v2476, %v2482
        %v2484 = vcombine.low %v2388, %v2395
        %v2486 = vunpack.c.l.s4 1983009808
        %v2487 = vunpack.c.0.s8 %v2486
        %v2488 = vlaneseq
        %v2489 = vshrl.u32 %v2488, 7
        %v2490 = vsub.s32 %v2487, %v2489
        %v2491 = vrot.slane %v2484, %v2490
        %v2492 = vcombine.low %v2398, %v2399
        %v2494 = vunpack.c.l.s4 1983009808
        %v2495 = vunpack.c.0.s8 %v2494
        %v2496 = vlaneseq
        %v2497 = vshrl.u32 %v2496, 7
        %v2498 = vsub.s32 %v2495, %v2497
        %v2499 = vrot.slane %v2492, %v2498
        %v2500 = vcombine.low %v2475, %v2483
        %v2501 = vcombine.high %v2475, %v2483
        %v2503 = vunpack.c.l.s4 1934713408
        %v2504 = vunpack.c.0.s8 %v2503
        %v2505 = vlaneseq
        %v2506 = vshrl.u32 %v2505, 7
        %v2507 = vsub.s32 %v2504, %v2506
        %v2508 = vrot.slane %v2500, %v2507
        %v2510 = vunpack.c.l.s4 1934713408
        %v2511 = vunpack.c.0.s8 %v2510
        %v2512 = vlaneseq
        %v2513 = vshrl.u32 %v2512, 7
        %v2514 = vsub.s32 %v2511, %v2513
        %v2515 = vrot.slane %v2501, %v2514
        %v2516 = vcombine.low %v2491, %v2499
        %v2517 = vcombine.high %v2491, %v2499
        %v2519 = vunpack.c.l.s4 1934713408
        %v2520 = vunpack.c.0.s8 %v2519
        %v2521 = vlaneseq
        %v2522 = vshrl.u32 %v2521, 7
        %v2523 = vsub.s32 %v2520, %v2522
        %v2524 = vrot.slane %v2516, %v2523
        %v2526 = vunpack.c.l.s4 1934713408
        %v2527 = vunpack.c.0.s8 %v2526
        %v2528 = vlaneseq
        %v2529 = vshrl.u32 %v2528, 7
        %v2530 = vsub.s32 %v2527, %v2529
        %v2531 = vrot.slane %v2517, %v2530
        %v2532 = vcombine.low %v2508, %v2524
        %v2533 = vcombine.high %v2508, %v2524
        %v2534 = vcombine.low %v2515, %v2531
        %v2535 = vcombine.high %v2515, %v2531
        %2538 = vrot.lane.b32.xlu0 %v2465, 32
        %v2539 = vpop.permute.xlu0 %2538
        %2540 = vrot.lane.b32.xlu0 %v2533, 32
        %v2541 = vpop.permute.xlu0 %2540
        %2546 = vrot.lane.b32.xlu0 %v2466, 64
        %v2547 = vpop.permute.xlu0 %2546
        %2548 = vrot.lane.b32.xlu0 %v2534, 64
        %v2549 = vpop.permute.xlu0 %2548
        %2554 = vrot.lane.b32.xlu0 %v2467, 96
        %v2555 = vpop.permute.xlu0 %2554
        %2556 = vrot.lane.b32.xlu0 %v2535, 96
        %v2557 = vpop.permute.xlu0 %2556
        %v2560 = vsel %vm1790, %v2464, %v2539
        %v2561 = vsel %vm1790, %v2532, %v2541
        %vm2562 = vcmask 523264
        %v2563 = vsel %vm2562, %v2560, %v2547
        %v2564 = vsel %vm2562, %v2561, %v2549
        %vm2565 = vcmask 785408
        %v2566 = vsel %vm2565, %v2563, %v2555
        %v2567 = vsel %vm2565, %v2564, %v2557
        %2569 = vrot.lane.b32.xlu0 %v974, 96
        %v2570 = vpop.permute.xlu0 %2569
        %2571 = vrot.lane.b32.xlu0 %v974, 64
        %v2572 = vpop.permute.xlu0 %2571
        %2573 = vrot.lane.b32.xlu0 %v974, 32
        %v2574 = vpop.permute.xlu0 %2573
        %v2577 = vpack.i.b16 %v2570, %v974
        %v2579 = vshrl.u32 %v974, 16
        %v2580 = vshrl.u32 %v2570, 16
        %v2581 = vpack.i.b16 %v2580, %v2579
        %v2585 = vpack.i.b16 %v2574, %v2572
        %v2587 = vshrl.u32 %v2572, 16
        %v2588 = vshrl.u32 %v2574, 16
        %v2589 = vpack.i.b16 %v2588, %v2587
        %v2591 = vcombine.high %v2577, %v1003
        %v2593 = vunpack.c.l.s4 1983009808
        %v2594 = vunpack.c.0.s8 %v2593
        %v2595 = vlaneseq
        %v2596 = vshrl.u32 %v2595, 7
        %v2597 = vsub.s32 %v2594, %v2596
        %v2598 = vrot.slane %v2577, %v2597
        %v2600 = vunpack.c.l.s4 1983009808
        %v2601 = vunpack.c.0.s8 %v2600
        %v2602 = vlaneseq
        %v2603 = vshrl.u32 %v2602, 7
        %v2604 = vsub.s32 %v2601, %v2603
        %v2605 = vrot.slane %v2591, %v2604
        %v2606 = vcombine.high %v2585, %v1003
        %v2608 = vunpack.c.l.s4 1983009808
        %v2609 = vunpack.c.0.s8 %v2608
        %v2610 = vlaneseq
        %v2611 = vshrl.u32 %v2610, 7
        %v2612 = vsub.s32 %v2609, %v2611
        %v2613 = vrot.slane %v2585, %v2612
        %v2615 = vunpack.c.l.s4 1983009808
        %v2616 = vunpack.c.0.s8 %v2615
        %v2617 = vlaneseq
        %v2618 = vshrl.u32 %v2617, 7
        %v2619 = vsub.s32 %v2616, %v2618
        %v2620 = vrot.slane %v2606, %v2619
        %v2621 = vcombine.low %v2598, %v2613
        %v2622 = vcombine.high %v2598, %v2613
        %v2624 = vunpack.c.l.s4 1934713408
        %v2625 = vunpack.c.0.s8 %v2624
        %v2626 = vlaneseq
        %v2627 = vshrl.u32 %v2626, 7
        %v2628 = vsub.s32 %v2625, %v2627
        %v2629 = vrot.slane %v2621, %v2628
        %v2631 = vunpack.c.l.s4 1934713408
        %v2632 = vunpack.c.0.s8 %v2631
        %v2633 = vlaneseq
        %v2634 = vshrl.u32 %v2633, 7
        %v2635 = vsub.s32 %v2632, %v2634
        %v2636 = vrot.slane %v2622, %v2635
        %v2637 = vcombine.low %v2605, %v2620
        %v2638 = vcombine.high %v2605, %v2620
        %v2640 = vunpack.c.l.s4 1934713408
        %v2641 = vunpack.c.0.s8 %v2640
        %v2642 = vlaneseq
        %v2643 = vshrl.u32 %v2642, 7
        %v2644 = vsub.s32 %v2641, %v2643
        %v2645 = vrot.slane %v2637, %v2644
        %v2647 = vunpack.c.l.s4 1934713408
        %v2648 = vunpack.c.0.s8 %v2647
        %v2649 = vlaneseq
        %v2650 = vshrl.u32 %v2649, 7
        %v2651 = vsub.s32 %v2648, %v2650
        %v2652 = vrot.slane %v2638, %v2651
        %v2653 = vcombine.high %v2629, 0
        %v2654 = vcombine.high %v2636, 0
        %v2655 = vcombine.high %v2645, 0
        %v2656 = vcombine.high %v2652, 0
        %v2657 = vcombine.high %v2581, %v1006
        %v2659 = vunpack.c.l.s4 1983009808
        %v2660 = vunpack.c.0.s8 %v2659
        %v2661 = vlaneseq
        %v2662 = vshrl.u32 %v2661, 7
        %v2663 = vsub.s32 %v2660, %v2662
        %v2664 = vrot.slane %v2581, %v2663
        %v2666 = vunpack.c.l.s4 1983009808
        %v2667 = vunpack.c.0.s8 %v2666
        %v2668 = vlaneseq
        %v2669 = vshrl.u32 %v2668, 7
        %v2670 = vsub.s32 %v2667, %v2669
        %v2671 = vrot.slane %v2657, %v2670
        %v2672 = vcombine.high %v2589, %v1006
        %v2674 = vunpack.c.l.s4 1983009808
        %v2675 = vunpack.c.0.s8 %v2674
        %v2676 = vlaneseq
        %v2677 = vshrl.u32 %v2676, 7
        %v2678 = vsub.s32 %v2675, %v2677
        %v2679 = vrot.slane %v2589, %v2678
        %v2681 = vunpack.c.l.s4 1983009808
        %v2682 = vunpack.c.0.s8 %v2681
        %v2683 = vlaneseq
        %v2684 = vshrl.u32 %v2683, 7
        %v2685 = vsub.s32 %v2682, %v2684
        %v2686 = vrot.slane %v2672, %v2685
        %v2687 = vcombine.low %v2664, %v2679
        %v2688 = vcombine.high %v2664, %v2679
        %v2690 = vunpack.c.l.s4 1934713408
        %v2691 = vunpack.c.0.s8 %v2690
        %v2692 = vlaneseq
        %v2693 = vshrl.u32 %v2692, 7
        %v2694 = vsub.s32 %v2691, %v2693
        %v2695 = vrot.slane %v2687, %v2694
        %v2697 = vunpack.c.l.s4 1934713408
        %v2698 = vunpack.c.0.s8 %v2697
        %v2699 = vlaneseq
        %v2700 = vshrl.u32 %v2699, 7
        %v2701 = vsub.s32 %v2698, %v2700
        %v2702 = vrot.slane %v2688, %v2701
        %v2703 = vcombine.low %v2671, %v2686
        %v2704 = vcombine.high %v2671, %v2686
        %v2706 = vunpack.c.l.s4 1934713408
        %v2707 = vunpack.c.0.s8 %v2706
        %v2708 = vlaneseq
        %v2709 = vshrl.u32 %v2708, 7
        %v2710 = vsub.s32 %v2707, %v2709
        %v2711 = vrot.slane %v2703, %v2710
        %v2713 = vunpack.c.l.s4 1934713408
        %v2714 = vunpack.c.0.s8 %v2713
        %v2715 = vlaneseq
        %v2716 = vshrl.u32 %v2715, 7
        %v2717 = vsub.s32 %v2714, %v2716
        %v2718 = vrot.slane %v2704, %v2717
        %v2719 = vcombine.high %v2695, 0
        %v2720 = vcombine.high %v2702, 0
        %v2721 = vcombine.high %v2711, 0
        %v2722 = vcombine.high %v2718, 0
        %v2723 = vcombine.low %v2629, %v2636
        %v2725 = vunpack.c.l.s4 1983009808
        %v2726 = vunpack.c.0.s8 %v2725
        %v2727 = vlaneseq
        %v2728 = vshrl.u32 %v2727, 7
        %v2729 = vsub.s32 %v2726, %v2728
        %v2730 = vrot.slane %v2723, %v2729
        %v2731 = vcombine.low %v2653, %v2654
        %v2733 = vunpack.c.l.s4 1983009808
        %v2734 = vunpack.c.0.s8 %v2733
        %v2735 = vlaneseq
        %v2736 = vshrl.u32 %v2735, 7
        %v2737 = vsub.s32 %v2734, %v2736
        %v2738 = vrot.slane %v2731, %v2737
        %v2739 = vcombine.low %v2645, %v2652
        %v2741 = vunpack.c.l.s4 1983009808
        %v2742 = vunpack.c.0.s8 %v2741
        %v2743 = vlaneseq
        %v2744 = vshrl.u32 %v2743, 7
        %v2745 = vsub.s32 %v2742, %v2744
        %v2746 = vrot.slane %v2739, %v2745
        %v2747 = vcombine.low %v2655, %v2656
        %v2749 = vunpack.c.l.s4 1983009808
        %v2750 = vunpack.c.0.s8 %v2749
        %v2751 = vlaneseq
        %v2752 = vshrl.u32 %v2751, 7
        %v2753 = vsub.s32 %v2750, %v2752
        %v2754 = vrot.slane %v2747, %v2753
        %v2755 = vcombine.low %v2730, %v2738
        %v2757 = vunpack.c.l.s4 1934713408
        %v2758 = vunpack.c.0.s8 %v2757
        %v2759 = vlaneseq
        %v2760 = vshrl.u32 %v2759, 7
        %v2761 = vsub.s32 %v2758, %v2760
        %v2762 = vrot.slane %v2755, %v2761
        %v2763 = vcombine.low %v2746, %v2754
        %v2765 = vunpack.c.l.s4 1934713408
        %v2766 = vunpack.c.0.s8 %v2765
        %v2767 = vlaneseq
        %v2768 = vshrl.u32 %v2767, 7
        %v2769 = vsub.s32 %v2766, %v2768
        %v2770 = vrot.slane %v2763, %v2769
        %v2771 = vcombine.low %v2762, %v2770
        %v2772 = vcombine.high %v2762, %v2770
        %v2773 = vcombine.low %v2695, %v2702
        %v2775 = vunpack.c.l.s4 1983009808
        %v2776 = vunpack.c.0.s8 %v2775
        %v2777 = vlaneseq
        %v2778 = vshrl.u32 %v2777, 7
        %v2779 = vsub.s32 %v2776, %v2778
        %v2780 = vrot.slane %v2773, %v2779
        %v2781 = vcombine.low %v2719, %v2720
        %v2783 = vunpack.c.l.s4 1983009808
        %v2784 = vunpack.c.0.s8 %v2783
        %v2785 = vlaneseq
        %v2786 = vshrl.u32 %v2785, 7
        %v2787 = vsub.s32 %v2784, %v2786
        %v2788 = vrot.slane %v2781, %v2787
        %v2789 = vcombine.low %v2711, %v2718
        %v2791 = vunpack.c.l.s4 1983009808
        %v2792 = vunpack.c.0.s8 %v2791
        %v2793 = vlaneseq
        %v2794 = vshrl.u32 %v2793, 7
        %v2795 = vsub.s32 %v2792, %v2794
        %v2796 = vrot.slane %v2789, %v2795
        %v2797 = vcombine.low %v2721, %v2722
        %v2799 = vunpack.c.l.s4 1983009808
        %v2800 = vunpack.c.0.s8 %v2799
        %v2801 = vlaneseq
        %v2802 = vshrl.u32 %v2801, 7
        %v2803 = vsub.s32 %v2800, %v2802
        %v2804 = vrot.slane %v2797, %v2803
        %v2805 = vcombine.low %v2780, %v2788
        %v2807 = vunpack.c.l.s4 1934713408
        %v2808 = vunpack.c.0.s8 %v2807
        %v2809 = vlaneseq
        %v2810 = vshrl.u32 %v2809, 7
        %v2811 = vsub.s32 %v2808, %v2810
        %v2812 = vrot.slane %v2805, %v2811
        %v2813 = vcombine.low %v2796, %v2804
        %v2815 = vunpack.c.l.s4 1934713408
        %v2816 = vunpack.c.0.s8 %v2815
        %v2817 = vlaneseq
        %v2818 = vshrl.u32 %v2817, 7
        %v2819 = vsub.s32 %v2816, %v2818
        %v2820 = vrot.slane %v2813, %v2819
        %v2821 = vcombine.low %v2812, %v2820
        %v2822 = vcombine.high %v2812, %v2820
        %v2825 = vpack.i.b16 %v2821, %v2771
        %v2826 = vshrl.u32 %v2771, 16
        %v2827 = vshrl.u32 %v2821, 16
        %v2828 = vpack.i.b16 %v2827, %v2826
        %v2831 = vpack.i.b16 %v2822, %v2772
        %v2832 = vshrl.u32 %v2772, 16
        %v2833 = vshrl.u32 %v2822, 16
        %v2834 = vpack.i.b16 %v2833, %v2832
        %2836 = vrot.lane.b32.xlu0 %v975, 96
        %v2837 = vpop.permute.xlu0 %2836
        %2838 = vrot.lane.b32.xlu0 %v975, 64
        %v2839 = vpop.permute.xlu0 %2838
        %2840 = vrot.lane.b32.xlu0 %v975, 32
        %v2841 = vpop.permute.xlu0 %2840
        %v2844 = vpack.i.b16 %v2837, %v975
        %v2846 = vshrl.u32 %v975, 16
        %v2847 = vshrl.u32 %v2837, 16
        %v2848 = vpack.i.b16 %v2847, %v2846
        %v2852 = vpack.i.b16 %v2841, %v2839
        %v2854 = vshrl.u32 %v2839, 16
        %v2855 = vshrl.u32 %v2841, 16
        %v2856 = vpack.i.b16 %v2855, %v2854
        %v2858 = vcombine.high %v2844, %v1003
        %v2860 = vunpack.c.l.s4 1983009808
        %v2861 = vunpack.c.0.s8 %v2860
        %v2862 = vlaneseq
        %v2863 = vshrl.u32 %v2862, 7
        %v2864 = vsub.s32 %v2861, %v2863
        %v2865 = vrot.slane %v2844, %v2864
        %v2867 = vunpack.c.l.s4 1983009808
        %v2868 = vunpack.c.0.s8 %v2867
        %v2869 = vlaneseq
        %v2870 = vshrl.u32 %v2869, 7
        %v2871 = vsub.s32 %v2868, %v2870
        %v2872 = vrot.slane %v2858, %v2871
        %v2873 = vcombine.high %v2852, %v1003
        %v2875 = vunpack.c.l.s4 1983009808
        %v2876 = vunpack.c.0.s8 %v2875
        %v2877 = vlaneseq
        %v2878 = vshrl.u32 %v2877, 7
        %v2879 = vsub.s32 %v2876, %v2878
        %v2880 = vrot.slane %v2852, %v2879
        %v2882 = vunpack.c.l.s4 1983009808
        %v2883 = vunpack.c.0.s8 %v2882
        %v2884 = vlaneseq
        %v2885 = vshrl.u32 %v2884, 7
        %v2886 = vsub.s32 %v2883, %v2885
        %v2887 = vrot.slane %v2873, %v2886
        %v2888 = vcombine.low %v2865, %v2880
        %v2889 = vcombine.high %v2865, %v2880
        %v2891 = vunpack.c.l.s4 1934713408
        %v2892 = vunpack.c.0.s8 %v2891
        %v2893 = vlaneseq
        %v2894 = vshrl.u32 %v2893, 7
        %v2895 = vsub.s32 %v2892, %v2894
        %v2896 = vrot.slane %v2888, %v2895
        %v2898 = vunpack.c.l.s4 1934713408
        %v2899 = vunpack.c.0.s8 %v2898
        %v2900 = vlaneseq
        %v2901 = vshrl.u32 %v2900, 7
        %v2902 = vsub.s32 %v2899, %v2901
        %v2903 = vrot.slane %v2889, %v2902
        %v2904 = vcombine.low %v2872, %v2887
        %v2905 = vcombine.high %v2872, %v2887
        %v2907 = vunpack.c.l.s4 1934713408
        %v2908 = vunpack.c.0.s8 %v2907
        %v2909 = vlaneseq
        %v2910 = vshrl.u32 %v2909, 7
        %v2911 = vsub.s32 %v2908, %v2910
        %v2912 = vrot.slane %v2904, %v2911
        %v2914 = vunpack.c.l.s4 1934713408
        %v2915 = vunpack.c.0.s8 %v2914
        %v2916 = vlaneseq
        %v2917 = vshrl.u32 %v2916, 7
        %v2918 = vsub.s32 %v2915, %v2917
        %v2919 = vrot.slane %v2905, %v2918
        %v2920 = vcombine.high %v2896, 0
        %v2921 = vcombine.high %v2903, 0
        %v2922 = vcombine.high %v2912, 0
        %v2923 = vcombine.high %v2919, 0
        %v2924 = vcombine.high %v2848, %v1006
        %v2926 = vunpack.c.l.s4 1983009808
        %v2927 = vunpack.c.0.s8 %v2926
        %v2928 = vlaneseq
        %v2929 = vshrl.u32 %v2928, 7
        %v2930 = vsub.s32 %v2927, %v2929
        %v2931 = vrot.slane %v2848, %v2930
        %v2933 = vunpack.c.l.s4 1983009808
        %v2934 = vunpack.c.0.s8 %v2933
        %v2935 = vlaneseq
        %v2936 = vshrl.u32 %v2935, 7
        %v2937 = vsub.s32 %v2934, %v2936
        %v2938 = vrot.slane %v2924, %v2937
        %v2939 = vcombine.high %v2856, %v1006
        %v2941 = vunpack.c.l.s4 1983009808
        %v2942 = vunpack.c.0.s8 %v2941
        %v2943 = vlaneseq
        %v2944 = vshrl.u32 %v2943, 7
        %v2945 = vsub.s32 %v2942, %v2944
        %v2946 = vrot.slane %v2856, %v2945
        %v2948 = vunpack.c.l.s4 1983009808
        %v2949 = vunpack.c.0.s8 %v2948
        %v2950 = vlaneseq
        %v2951 = vshrl.u32 %v2950, 7
        %v2952 = vsub.s32 %v2949, %v2951
        %v2953 = vrot.slane %v2939, %v2952
        %v2954 = vcombine.low %v2931, %v2946
        %v2955 = vcombine.high %v2931, %v2946
        %v2957 = vunpack.c.l.s4 1934713408
        %v2958 = vunpack.c.0.s8 %v2957
        %v2959 = vlaneseq
        %v2960 = vshrl.u32 %v2959, 7
        %v2961 = vsub.s32 %v2958, %v2960
        %v2962 = vrot.slane %v2954, %v2961
        %v2964 = vunpack.c.l.s4 1934713408
        %v2965 = vunpack.c.0.s8 %v2964
        %v2966 = vlaneseq
        %v2967 = vshrl.u32 %v2966, 7
        %v2968 = vsub.s32 %v2965, %v2967
        %v2969 = vrot.slane %v2955, %v2968
        %v2970 = vcombine.low %v2938, %v2953
        %v2971 = vcombine.high %v2938, %v2953
        %v2973 = vunpack.c.l.s4 1934713408
        %v2974 = vunpack.c.0.s8 %v2973
        %v2975 = vlaneseq
        %v2976 = vshrl.u32 %v2975, 7
        %v2977 = vsub.s32 %v2974, %v2976
        %v2978 = vrot.slane %v2970, %v2977
        %v2980 = vunpack.c.l.s4 1934713408
        %v2981 = vunpack.c.0.s8 %v2980
        %v2982 = vlaneseq
        %v2983 = vshrl.u32 %v2982, 7
        %v2984 = vsub.s32 %v2981, %v2983
        %v2985 = vrot.slane %v2971, %v2984
        %v2986 = vcombine.high %v2962, 0
        %v2987 = vcombine.high %v2969, 0
        %v2988 = vcombine.high %v2978, 0
        %v2989 = vcombine.high %v2985, 0
        %v2990 = vcombine.low %v2896, %v2903
        %v2992 = vunpack.c.l.s4 1983009808
        %v2993 = vunpack.c.0.s8 %v2992
        %v2994 = vlaneseq
        %v2995 = vshrl.u32 %v2994, 7
        %v2996 = vsub.s32 %v2993, %v2995
        %v2997 = vrot.slane %v2990, %v2996
        %v2998 = vcombine.low %v2920, %v2921
        %v3000 = vunpack.c.l.s4 1983009808
        %v3001 = vunpack.c.0.s8 %v3000
        %v3002 = vlaneseq
        %v3003 = vshrl.u32 %v3002, 7
        %v3004 = vsub.s32 %v3001, %v3003
        %v3005 = vrot.slane %v2998, %v3004
        %v3006 = vcombine.low %v2912, %v2919
        %v3008 = vunpack.c.l.s4 1983009808
        %v3009 = vunpack.c.0.s8 %v3008
        %v3010 = vlaneseq
        %v3011 = vshrl.u32 %v3010, 7
        %v3012 = vsub.s32 %v3009, %v3011
        %v3013 = vrot.slane %v3006, %v3012
        %v3014 = vcombine.low %v2922, %v2923
        %v3016 = vunpack.c.l.s4 1983009808
        %v3017 = vunpack.c.0.s8 %v3016
        %v3018 = vlaneseq
        %v3019 = vshrl.u32 %v3018, 7
        %v3020 = vsub.s32 %v3017, %v3019
        %v3021 = vrot.slane %v3014, %v3020
        %v3022 = vcombine.low %v2997, %v3005
        %v3024 = vunpack.c.l.s4 1934713408
        %v3025 = vunpack.c.0.s8 %v3024
        %v3026 = vlaneseq
        %v3027 = vshrl.u32 %v3026, 7
        %v3028 = vsub.s32 %v3025, %v3027
        %v3029 = vrot.slane %v3022, %v3028
        %v3030 = vcombine.low %v3013, %v3021
        %v3032 = vunpack.c.l.s4 1934713408
        %v3033 = vunpack.c.0.s8 %v3032
        %v3034 = vlaneseq
        %v3035 = vshrl.u32 %v3034, 7
        %v3036 = vsub.s32 %v3033, %v3035
        %v3037 = vrot.slane %v3030, %v3036
        %v3038 = vcombine.low %v3029, %v3037
        %v3039 = vcombine.high %v3029, %v3037
        %v3040 = vcombine.low %v2962, %v2969
        %v3042 = vunpack.c.l.s4 1983009808
        %v3043 = vunpack.c.0.s8 %v3042
        %v3044 = vlaneseq
        %v3045 = vshrl.u32 %v3044, 7
        %v3046 = vsub.s32 %v3043, %v3045
        %v3047 = vrot.slane %v3040, %v3046
        %v3048 = vcombine.low %v2986, %v2987
        %v3050 = vunpack.c.l.s4 1983009808
        %v3051 = vunpack.c.0.s8 %v3050
        %v3052 = vlaneseq
        %v3053 = vshrl.u32 %v3052, 7
        %v3054 = vsub.s32 %v3051, %v3053
        %v3055 = vrot.slane %v3048, %v3054
        %v3056 = vcombine.low %v2978, %v2985
        %v3058 = vunpack.c.l.s4 1983009808
        %v3059 = vunpack.c.0.s8 %v3058
        %v3060 = vlaneseq
        %v3061 = vshrl.u32 %v3060, 7
        %v3062 = vsub.s32 %v3059, %v3061
        %v3063 = vrot.slane %v3056, %v3062
        %v3064 = vcombine.low %v2988, %v2989
        %v3066 = vunpack.c.l.s4 1983009808
        %v3067 = vunpack.c.0.s8 %v3066
        %v3068 = vlaneseq
        %v3069 = vshrl.u32 %v3068, 7
        %v3070 = vsub.s32 %v3067, %v3069
        %v3071 = vrot.slane %v3064, %v3070
        %v3072 = vcombine.low %v3047, %v3055
        %v3074 = vunpack.c.l.s4 1934713408
        %v3075 = vunpack.c.0.s8 %v3074
        %v3076 = vlaneseq
        %v3077 = vshrl.u32 %v3076, 7
        %v3078 = vsub.s32 %v3075, %v3077
        %v3079 = vrot.slane %v3072, %v3078
        %v3080 = vcombine.low %v3063, %v3071
        %v3082 = vunpack.c.l.s4 1934713408
        %v3083 = vunpack.c.0.s8 %v3082
        %v3084 = vlaneseq
        %v3085 = vshrl.u32 %v3084, 7
        %v3086 = vsub.s32 %v3083, %v3085
        %v3087 = vrot.slane %v3080, %v3086
        %v3088 = vcombine.low %v3079, %v3087
        %v3089 = vcombine.high %v3079, %v3087
        %v3092 = vpack.i.b16 %v3088, %v3038
        %v3093 = vshrl.u32 %v3038, 16
        %v3094 = vshrl.u32 %v3088, 16
        %v3095 = vpack.i.b16 %v3094, %v3093
        %v3098 = vpack.i.b16 %v3089, %v3039
        %v3099 = vshrl.u32 %v3039, 16
        %v3100 = vshrl.u32 %v3089, 16
        %v3101 = vpack.i.b16 %v3100, %v3099
        %3103 = vrot.lane.b32.xlu0 %v976, 96
        %v3104 = vpop.permute.xlu0 %3103
        %3105 = vrot.lane.b32.xlu0 %v976, 64
        %v3106 = vpop.permute.xlu0 %3105
        %3107 = vrot.lane.b32.xlu0 %v976, 32
        %v3108 = vpop.permute.xlu0 %3107
        %v3111 = vpack.i.b16 %v3104, %v976
        %v3113 = vshrl.u32 %v976, 16
        %v3114 = vshrl.u32 %v3104, 16
        %v3115 = vpack.i.b16 %v3114, %v3113
        %v3119 = vpack.i.b16 %v3108, %v3106
        %v3121 = vshrl.u32 %v3106, 16
        %v3122 = vshrl.u32 %v3108, 16
        %v3123 = vpack.i.b16 %v3122, %v3121
        %v3125 = vcombine.high %v3111, %v1003
        %v3127 = vunpack.c.l.s4 1983009808
        %v3128 = vunpack.c.0.s8 %v3127
        %v3129 = vlaneseq
        %v3130 = vshrl.u32 %v3129, 7
        %v3131 = vsub.s32 %v3128, %v3130
        %v3132 = vrot.slane %v3111, %v3131
        %v3134 = vunpack.c.l.s4 1983009808
        %v3135 = vunpack.c.0.s8 %v3134
        %v3136 = vlaneseq
        %v3137 = vshrl.u32 %v3136, 7
        %v3138 = vsub.s32 %v3135, %v3137
        %v3139 = vrot.slane %v3125, %v3138
        %v3140 = vcombine.high %v3119, %v1003
        %v3142 = vunpack.c.l.s4 1983009808
        %v3143 = vunpack.c.0.s8 %v3142
        %v3144 = vlaneseq
        %v3145 = vshrl.u32 %v3144, 7
        %v3146 = vsub.s32 %v3143, %v3145
        %v3147 = vrot.slane %v3119, %v3146
        %v3149 = vunpack.c.l.s4 1983009808
        %v3150 = vunpack.c.0.s8 %v3149
        %v3151 = vlaneseq
        %v3152 = vshrl.u32 %v3151, 7
        %v3153 = vsub.s32 %v3150, %v3152
        %v3154 = vrot.slane %v3140, %v3153
        %v3155 = vcombine.low %v3132, %v3147
        %v3156 = vcombine.high %v3132, %v3147
        %v3158 = vunpack.c.l.s4 1934713408
        %v3159 = vunpack.c.0.s8 %v3158
        %v3160 = vlaneseq
        %v3161 = vshrl.u32 %v3160, 7
        %v3162 = vsub.s32 %v3159, %v3161
        %v3163 = vrot.slane %v3155, %v3162
        %v3165 = vunpack.c.l.s4 1934713408
        %v3166 = vunpack.c.0.s8 %v3165
        %v3167 = vlaneseq
        %v3168 = vshrl.u32 %v3167, 7
        %v3169 = vsub.s32 %v3166, %v3168
        %v3170 = vrot.slane %v3156, %v3169
        %v3171 = vcombine.low %v3139, %v3154
        %v3172 = vcombine.high %v3139, %v3154
        %v3174 = vunpack.c.l.s4 1934713408
        %v3175 = vunpack.c.0.s8 %v3174
        %v3176 = vlaneseq
        %v3177 = vshrl.u32 %v3176, 7
        %v3178 = vsub.s32 %v3175, %v3177
        %v3179 = vrot.slane %v3171, %v3178
        %v3181 = vunpack.c.l.s4 1934713408
        %v3182 = vunpack.c.0.s8 %v3181
        %v3183 = vlaneseq
        %v3184 = vshrl.u32 %v3183, 7
        %v3185 = vsub.s32 %v3182, %v3184
        %v3186 = vrot.slane %v3172, %v3185
        %v3187 = vcombine.high %v3163, 0
        %v3188 = vcombine.high %v3170, 0
        %v3189 = vcombine.high %v3179, 0
        %v3190 = vcombine.high %v3186, 0
        %v3191 = vcombine.high %v3115, %v1006
        %v3193 = vunpack.c.l.s4 1983009808
        %v3194 = vunpack.c.0.s8 %v3193
        %v3195 = vlaneseq
        %v3196 = vshrl.u32 %v3195, 7
        %v3197 = vsub.s32 %v3194, %v3196
        %v3198 = vrot.slane %v3115, %v3197
        %v3200 = vunpack.c.l.s4 1983009808
        %v3201 = vunpack.c.0.s8 %v3200
        %v3202 = vlaneseq
        %v3203 = vshrl.u32 %v3202, 7
        %v3204 = vsub.s32 %v3201, %v3203
        %v3205 = vrot.slane %v3191, %v3204
        %v3206 = vcombine.high %v3123, %v1006
        %v3208 = vunpack.c.l.s4 1983009808
        %v3209 = vunpack.c.0.s8 %v3208
        %v3210 = vlaneseq
        %v3211 = vshrl.u32 %v3210, 7
        %v3212 = vsub.s32 %v3209, %v3211
        %v3213 = vrot.slane %v3123, %v3212
        %v3215 = vunpack.c.l.s4 1983009808
        %v3216 = vunpack.c.0.s8 %v3215
        %v3217 = vlaneseq
        %v3218 = vshrl.u32 %v3217, 7
        %v3219 = vsub.s32 %v3216, %v3218
        %v3220 = vrot.slane %v3206, %v3219
        %v3221 = vcombine.low %v3198, %v3213
        %v3222 = vcombine.high %v3198, %v3213
        %v3224 = vunpack.c.l.s4 1934713408
        %v3225 = vunpack.c.0.s8 %v3224
        %v3226 = vlaneseq
        %v3227 = vshrl.u32 %v3226, 7
        %v3228 = vsub.s32 %v3225, %v3227
        %v3229 = vrot.slane %v3221, %v3228
        %v3231 = vunpack.c.l.s4 1934713408
        %v3232 = vunpack.c.0.s8 %v3231
        %v3233 = vlaneseq
        %v3234 = vshrl.u32 %v3233, 7
        %v3235 = vsub.s32 %v3232, %v3234
        %v3236 = vrot.slane %v3222, %v3235
        %v3237 = vcombine.low %v3205, %v3220
        %v3238 = vcombine.high %v3205, %v3220
        %v3240 = vunpack.c.l.s4 1934713408
        %v3241 = vunpack.c.0.s8 %v3240
        %v3242 = vlaneseq
        %v3243 = vshrl.u32 %v3242, 7
        %v3244 = vsub.s32 %v3241, %v3243
        %v3245 = vrot.slane %v3237, %v3244
        %v3247 = vunpack.c.l.s4 1934713408
        %v3248 = vunpack.c.0.s8 %v3247
        %v3249 = vlaneseq
        %v3250 = vshrl.u32 %v3249, 7
        %v3251 = vsub.s32 %v3248, %v3250
        %v3252 = vrot.slane %v3238, %v3251
        %v3253 = vcombine.high %v3229, 0
        %v3254 = vcombine.high %v3236, 0
        %v3255 = vcombine.high %v3245, 0
        %v3256 = vcombine.high %v3252, 0
        %v3257 = vcombine.low %v3163, %v3170
        %v3259 = vunpack.c.l.s4 1983009808
        %v3260 = vunpack.c.0.s8 %v3259
        %v3261 = vlaneseq
        %v3262 = vshrl.u32 %v3261, 7
        %v3263 = vsub.s32 %v3260, %v3262
        %v3264 = vrot.slane %v3257, %v3263
        %v3265 = vcombine.low %v3187, %v3188
        %v3267 = vunpack.c.l.s4 1983009808
        %v3268 = vunpack.c.0.s8 %v3267
        %v3269 = vlaneseq
        %v3270 = vshrl.u32 %v3269, 7
        %v3271 = vsub.s32 %v3268, %v3270
        %v3272 = vrot.slane %v3265, %v3271
        %v3273 = vcombine.low %v3179, %v3186
        %v3275 = vunpack.c.l.s4 1983009808
        %v3276 = vunpack.c.0.s8 %v3275
        %v3277 = vlaneseq
        %v3278 = vshrl.u32 %v3277, 7
        %v3279 = vsub.s32 %v3276, %v3278
        %v3280 = vrot.slane %v3273, %v3279
        %v3281 = vcombine.low %v3189, %v3190
        %v3283 = vunpack.c.l.s4 1983009808
        %v3284 = vunpack.c.0.s8 %v3283
        %v3285 = vlaneseq
        %v3286 = vshrl.u32 %v3285, 7
        %v3287 = vsub.s32 %v3284, %v3286
        %v3288 = vrot.slane %v3281, %v3287
        %v3289 = vcombine.low %v3264, %v3272
        %v3291 = vunpack.c.l.s4 1934713408
        %v3292 = vunpack.c.0.s8 %v3291
        %v3293 = vlaneseq
        %v3294 = vshrl.u32 %v3293, 7
        %v3295 = vsub.s32 %v3292, %v3294
        %v3296 = vrot.slane %v3289, %v3295
        %v3297 = vcombine.low %v3280, %v3288
        %v3299 = vunpack.c.l.s4 1934713408
        %v3300 = vunpack.c.0.s8 %v3299
        %v3301 = vlaneseq
        %v3302 = vshrl.u32 %v3301, 7
        %v3303 = vsub.s32 %v3300, %v3302
        %v3304 = vrot.slane %v3297, %v3303
        %v3305 = vcombine.low %v3296, %v3304
        %v3306 = vcombine.high %v3296, %v3304
        %v3307 = vcombine.low %v3229, %v3236
        %v3309 = vunpack.c.l.s4 1983009808
        %v3310 = vunpack.c.0.s8 %v3309
        %v3311 = vlaneseq
        %v3312 = vshrl.u32 %v3311, 7
        %v3313 = vsub.s32 %v3310, %v3312
        %v3314 = vrot.slane %v3307, %v3313
        %v3315 = vcombine.low %v3253, %v3254
        %v3317 = vunpack.c.l.s4 1983009808
        %v3318 = vunpack.c.0.s8 %v3317
        %v3319 = vlaneseq
        %v3320 = vshrl.u32 %v3319, 7
        %v3321 = vsub.s32 %v3318, %v3320
        %v3322 = vrot.slane %v3315, %v3321
        %v3323 = vcombine.low %v3245, %v3252
        %v3325 = vunpack.c.l.s4 1983009808
        %v3326 = vunpack.c.0.s8 %v3325
        %v3327 = vlaneseq
        %v3328 = vshrl.u32 %v3327, 7
        %v3329 = vsub.s32 %v3326, %v3328
        %v3330 = vrot.slane %v3323, %v3329
        %v3331 = vcombine.low %v3255, %v3256
        %v3333 = vunpack.c.l.s4 1983009808
        %v3334 = vunpack.c.0.s8 %v3333
        %v3335 = vlaneseq
        %v3336 = vshrl.u32 %v3335, 7
        %v3337 = vsub.s32 %v3334, %v3336
        %v3338 = vrot.slane %v3331, %v3337
        %v3339 = vcombine.low %v3314, %v3322
        %v3341 = vunpack.c.l.s4 1934713408
        %v3342 = vunpack.c.0.s8 %v3341
        %v3343 = vlaneseq
        %v3344 = vshrl.u32 %v3343, 7
        %v3345 = vsub.s32 %v3342, %v3344
        %v3346 = vrot.slane %v3339, %v3345
        %v3347 = vcombine.low %v3330, %v3338
        %v3349 = vunpack.c.l.s4 1934713408
        %v3350 = vunpack.c.0.s8 %v3349
        %v3351 = vlaneseq
        %v3352 = vshrl.u32 %v3351, 7
        %v3353 = vsub.s32 %v3350, %v3352
        %v3354 = vrot.slane %v3347, %v3353
        %v3355 = vcombine.low %v3346, %v3354
        %v3356 = vcombine.high %v3346, %v3354
        %v3359 = vpack.i.b16 %v3355, %v3305
        %v3361 = vshrl.u32 %v3305, 16
        %v3362 = vshrl.u32 %v3355, 16
        %v3363 = vpack.i.b16 %v3362, %v3361
        %v3367 = vpack.i.b16 %v3356, %v3306
        %v3369 = vshrl.u32 %v3306, 16
        %v3370 = vshrl.u32 %v3356, 16
        %v3371 = vpack.i.b16 %v3370, %v3369
        %v3374 = vsel %vm1790, %v2825, 0
        %v3377 = vsel %vm1790, %v3092, 0
        %3379 = vmatprep.subr.bf16.mxu0 0
        %3380 = vmatpush1.bf16.xpose.msra.mxu0 0
        %3381 = vmatprep.subr.bf16.mxu0 0
        %3382 = vmatpush1.bf16.xpose.msra.mxu0 0
        %3383 = vmatprep.subr.bf16.mxu0 0
        %3384 = vmatpush1.bf16.xpose.msra.mxu0 0
        %3385 = vmatprep.subr.bf16.mxu0 0
        %3386 = vmatpush1.bf16.xpose.msra.mxu0 0
        %3387 = vmatprep.subr.bf16.mxu0 0
        %3388 = vmatpush1.bf16.xpose.msra.mxu0 0
        %3389 = vmatprep.subr.bf16.mxu0 0
        %3390 = vmatpush1.bf16.xpose.msra.mxu0 0
        %3391 = vmatprep.subr.bf16.mxu0 0
        %3392 = vmatpush1.bf16.xpose.msra.mxu0 0
        %3393 = vmatprep.subr.bf16.mxu0 0
        %3394 = vmatpush1.bf16.xpose.msra.mxu0 %v3377
        %3395 = vmatprep.subr.bf16.mxu0 0
        %3396 = vmatpush2.bf16.xpose.msra.mxu0 0
        %3397 = vmatprep.subr.bf16.mxu0 0
        %3398 = vmatpush2.bf16.xpose.msra.mxu0 0
        %3399 = vmatprep.subr.bf16.mxu0 0
        %3400 = vmatpush2.bf16.xpose.msra.mxu0 0
        %3401 = vmatprep.subr.bf16.mxu0 0
        %3402 = vmatpush2.bf16.xpose.msra.mxu0 0
        %3403 = vmatprep.subr.bf16.mxu0 0
        %3404 = vmatpush2.bf16.xpose.msra.mxu0 0
        %3405 = vmatprep.subr.bf16.mxu0 0
        %3406 = vmatpush2.bf16.xpose.msra.mxu0 0
        %3407 = vmatprep.subr.bf16.mxu0 0
        %3408 = vmatpush2.bf16.xpose.msra.mxu0 0
        %3409 = vmatprep.subr.bf16.mxu0 0
        %3410 = vmatpush2.bf16.xpose.msra.mxu0 0
        %3411 = vmatprep.mubr.bf16.mxu0 0
        %3412 = vmatmul.mubr.bf16.gmra.mxu0 %v3374
        %v3413 = vpop.f32.mrf.mxu0
        %v3414 = vadd.f32 0.0, %v3413
        %v3415 = vpop.f32.mrf.mxu0
        %v3416 = vpop.f32.mrf.mxu0
        %v3417 = vadd.f32 0.0, %v3416
        %v3418 = vpop.f32.mrf.mxu0
        %3419 = vdwg.mxu0
        %v3421 = vsel %vm1790, %v2828, 0
        %v3424 = vsel %vm1790, %v3095, 0
        %3426 = vmatprep.subr.bf16.mxu0 0
        %3427 = vmatpush1.bf16.xpose.msra.mxu0 0
        %3428 = vmatprep.subr.bf16.mxu0 0
        %3429 = vmatpush1.bf16.xpose.msra.mxu0 0
        %3430 = vmatprep.subr.bf16.mxu0 0
        %3431 = vmatpush1.bf16.xpose.msra.mxu0 0
        %3432 = vmatprep.subr.bf16.mxu0 0
        %3433 = vmatpush1.bf16.xpose.msra.mxu0 0
        %3434 = vmatprep.subr.bf16.mxu0 0
        %3435 = vmatpush1.bf16.xpose.msra.mxu0 0
        %3436 = vmatprep.subr.bf16.mxu0 0
        %3437 = vmatpush1.bf16.xpose.msra.mxu0 0
        %3438 = vmatprep.subr.bf16.mxu0 0
        %3439 = vmatpush1.bf16.xpose.msra.mxu0 0
        %3440 = vmatprep.subr.bf16.mxu0 0
        %3441 = vmatpush1.bf16.xpose.msra.mxu0 %v3424
        %3442 = vmatprep.subr.bf16.mxu0 0
        %3443 = vmatpush2.bf16.xpose.msra.mxu0 0
        %3444 = vmatprep.subr.bf16.mxu0 0
        %3445 = vmatpush2.bf16.xpose.msra.mxu0 0
        %3446 = vmatprep.subr.bf16.mxu0 0
        %3447 = vmatpush2.bf16.xpose.msra.mxu0 0
        %3448 = vmatprep.subr.bf16.mxu0 0
        %3449 = vmatpush2.bf16.xpose.msra.mxu0 0
        %3450 = vmatprep.subr.bf16.mxu0 0
        %3451 = vmatpush2.bf16.xpose.msra.mxu0 0
        %3452 = vmatprep.subr.bf16.mxu0 0
        %3453 = vmatpush2.bf16.xpose.msra.mxu0 0
        %3454 = vmatprep.subr.bf16.mxu0 0
        %3455 = vmatpush2.bf16.xpose.msra.mxu0 0
        %3456 = vmatprep.subr.bf16.mxu0 0
        %3457 = vmatpush2.bf16.xpose.msra.mxu0 0
        %3458 = vmatprep.mubr.bf16.mxu0 0
        %3459 = vmatmul.mubr.bf16.gmra.mxu0 %v3421
        %v3460 = vpop.f32.mrf.mxu0
        %v3461 = vadd.f32 0.0, %v3460
        %v3462 = vpop.f32.mrf.mxu0
        %v3463 = vpop.f32.mrf.mxu0
        %v3464 = vadd.f32 0.0, %v3463
        %v3465 = vpop.f32.mrf.mxu0
        %3466 = vdwg.mxu0
        %v3468 = vsel %vm1790, %v2831, 0
        %v3471 = vsel %vm1790, %v3098, 0
        %3473 = vmatprep.subr.bf16.mxu0 0
        %3474 = vmatpush1.bf16.xpose.msra.mxu0 0
        %3475 = vmatprep.subr.bf16.mxu0 0
        %3476 = vmatpush1.bf16.xpose.msra.mxu0 0
        %3477 = vmatprep.subr.bf16.mxu0 0
        %3478 = vmatpush1.bf16.xpose.msra.mxu0 0
        %3479 = vmatprep.subr.bf16.mxu0 0
        %3480 = vmatpush1.bf16.xpose.msra.mxu0 0
        %3481 = vmatprep.subr.bf16.mxu0 0
        %3482 = vmatpush1.bf16.xpose.msra.mxu0 0
        %3483 = vmatprep.subr.bf16.mxu0 0
        %3484 = vmatpush1.bf16.xpose.msra.mxu0 0
        %3485 = vmatprep.subr.bf16.mxu0 0
        %3486 = vmatpush1.bf16.xpose.msra.mxu0 0
        %3487 = vmatprep.subr.bf16.mxu0 0
        %3488 = vmatpush1.bf16.xpose.msra.mxu0 %v3471
        %3489 = vmatprep.subr.bf16.mxu0 0
        %3490 = vmatpush2.bf16.xpose.msra.mxu0 0
        %3491 = vmatprep.subr.bf16.mxu0 0
        %3492 = vmatpush2.bf16.xpose.msra.mxu0 0
        %3493 = vmatprep.subr.bf16.mxu0 0
        %3494 = vmatpush2.bf16.xpose.msra.mxu0 0
        %3495 = vmatprep.subr.bf16.mxu0 0
        %3496 = vmatpush2.bf16.xpose.msra.mxu0 0
        %3497 = vmatprep.subr.bf16.mxu0 0
        %3498 = vmatpush2.bf16.xpose.msra.mxu0 0
        %3499 = vmatprep.subr.bf16.mxu0 0
        %3500 = vmatpush2.bf16.xpose.msra.mxu0 0
        %3501 = vmatprep.subr.bf16.mxu0 0
        %3502 = vmatpush2.bf16.xpose.msra.mxu0 0
        %3503 = vmatprep.subr.bf16.mxu0 0
        %3504 = vmatpush2.bf16.xpose.msra.mxu0 0
        %3505 = vmatprep.mubr.bf16.mxu0 0
        %3506 = vmatmul.mubr.bf16.gmra.mxu0 %v3468
        %v3507 = vpop.f32.mrf.mxu0
        %v3508 = vadd.f32 0.0, %v3507
        %v3509 = vpop.f32.mrf.mxu0
        %v3510 = vpop.f32.mrf.mxu0
        %v3511 = vadd.f32 0.0, %v3510
        %v3512 = vpop.f32.mrf.mxu0
        %3513 = vdwg.mxu0
        %v3515 = vsel %vm1790, %v2834, 0
        %v3518 = vsel %vm1790, %v3101, 0
        %3520 = vmatprep.subr.bf16.mxu0 0
        %3521 = vmatpush1.bf16.xpose.msra.mxu0 0
        %3522 = vmatprep.subr.bf16.mxu0 0
        %3523 = vmatpush1.bf16.xpose.msra.mxu0 0
        %3524 = vmatprep.subr.bf16.mxu0 0
        %3525 = vmatpush1.bf16.xpose.msra.mxu0 0
        %3526 = vmatprep.subr.bf16.mxu0 0
        %3527 = vmatpush1.bf16.xpose.msra.mxu0 0
        %3528 = vmatprep.subr.bf16.mxu0 0
        %3529 = vmatpush1.bf16.xpose.msra.mxu0 0
        %3530 = vmatprep.subr.bf16.mxu0 0
        %3531 = vmatpush1.bf16.xpose.msra.mxu0 0
        %3532 = vmatprep.subr.bf16.mxu0 0
        %3533 = vmatpush1.bf16.xpose.msra.mxu0 0
        %3534 = vmatprep.subr.bf16.mxu0 0
        %3535 = vmatpush1.bf16.xpose.msra.mxu0 %v3518
        %3536 = vmatprep.subr.bf16.mxu0 0
        %3537 = vmatpush2.bf16.xpose.msra.mxu0 0
        %3538 = vmatprep.subr.bf16.mxu0 0
        %3539 = vmatpush2.bf16.xpose.msra.mxu0 0
        %3540 = vmatprep.subr.bf16.mxu0 0
        %3541 = vmatpush2.bf16.xpose.msra.mxu0 0
        %3542 = vmatprep.subr.bf16.mxu0 0
        %3543 = vmatpush2.bf16.xpose.msra.mxu0 0
        %3544 = vmatprep.subr.bf16.mxu0 0
        %3545 = vmatpush2.bf16.xpose.msra.mxu0 0
        %3546 = vmatprep.subr.bf16.mxu0 0
        %3547 = vmatpush2.bf16.xpose.msra.mxu0 0
        %3548 = vmatprep.subr.bf16.mxu0 0
        %3549 = vmatpush2.bf16.xpose.msra.mxu0 0
        %3550 = vmatprep.subr.bf16.mxu0 0
        %3551 = vmatpush2.bf16.xpose.msra.mxu0 0
        %3552 = vmatprep.mubr.bf16.mxu0 0
        %3553 = vmatmul.mubr.bf16.gmra.mxu0 %v3515
        %v3554 = vpop.f32.mrf.mxu0
        %v3555 = vadd.f32 0.0, %v3554
        %v3556 = vpop.f32.mrf.mxu0
        %v3557 = vpop.f32.mrf.mxu0
        %v3558 = vadd.f32 0.0, %v3557
        %v3559 = vpop.f32.mrf.mxu0
        %3560 = vdwg.mxu0
        %v3561 = vmul.f32 %v3414, 0.17677669
        %v3562 = vmul.f32 %v3417, 0.17677669
        %v3563 = vmul.f32 %v3461, 0.17677669
        %v3564 = vmul.f32 %v3464, 0.17677669
        %v3565 = vmul.f32 %v3508, 0.17677669
        %v3566 = vmul.f32 %v3511, 0.17677669
        %v3567 = vmul.f32 %v3555, 0.17677669
        %v3568 = vmul.f32 %v3558, 0.17677669
        %v3569 = vadd.f32 %v3561, %v977
        %v3570 = vadd.f32 %v3562, %v978
        %v3571 = vadd.f32 %v3563, %v977
        %v3572 = vadd.f32 %v3564, %v978
        %v3573 = vadd.f32 %v3565, %v977
        %v3574 = vadd.f32 %v3566, %v978
        %v3575 = vadd.f32 %v3567, %v977
        %v3576 = vadd.f32 %v3568, %v978
        %v3577 = vsel %vm1995, %v3569, -inf
        %3578 = vmax.xlane.f32.xlu0 %v3577
        %v3579 = vpop.xlane.xlu0 %3578
        %v3580 = vsel %vm1995, %v3570, -inf
        %3581 = vmax.xlane.f32.xlu0 %v3580
        %v3582 = vpop.xlane.xlu0 %3581
        %v3583 = vsel %vm1995, %v3571, -inf
        %3584 = vmax.xlane.f32.xlu0 %v3583
        %v3585 = vpop.xlane.xlu0 %3584
        %v3586 = vsel %vm1995, %v3572, -inf
        %3587 = vmax.xlane.f32.xlu0 %v3586
        %v3588 = vpop.xlane.xlu0 %3587
        %v3589 = vsel %vm1995, %v3573, -inf
        %3590 = vmax.xlane.f32.xlu0 %v3589
        %v3591 = vpop.xlane.xlu0 %3590
        %v3592 = vsel %vm1995, %v3574, -inf
        %3593 = vmax.xlane.f32.xlu0 %v3592
        %v3594 = vpop.xlane.xlu0 %3593
        %v3595 = vsel %vm1995, %v3575, -inf
        %3596 = vmax.xlane.f32.xlu0 %v3595
        %v3597 = vpop.xlane.xlu0 %3596
        %v3598 = vsel %vm1995, %v3576, -inf
        %3599 = vmax.xlane.f32.xlu0 %v3598
        %v3600 = vpop.xlane.xlu0 %3599
        %v3601 = vsub.f32 %v3569, %v3579
        %v3602 = vsub.f32 %v3570, %v3582
        %v3603 = vsub.f32 %v3571, %v3585
        %v3604 = vsub.f32 %v3572, %v3588
        %v3605 = vsub.f32 %v3573, %v3591
        %v3606 = vsub.f32 %v3574, %v3594
        %v3607 = vsub.f32 %v3575, %v3597
        %v3608 = vsub.f32 %v3576, %v3600
        %v3609 = vmul.f32 %v3601, 1.442695
        %v3610 = vpow.pop %v3609
        %v3611 = vmul.f32 %v3602, 1.442695
        %v3612 = vpow.pop %v3611
        %v3613 = vmul.f32 %v3603, 1.442695
        %v3614 = vpow.pop %v3613
        %v3615 = vmul.f32 %v3604, 1.442695
        %v3616 = vpow.pop %v3615
        %v3617 = vmul.f32 %v3605, 1.442695
        %v3618 = vpow.pop %v3617
        %v3619 = vmul.f32 %v3606, 1.442695
        %v3620 = vpow.pop %v3619
        %v3621 = vmul.f32 %v3607, 1.442695
        %v3622 = vpow.pop %v3621
        %v3623 = vmul.f32 %v3608, 1.442695
        %v3624 = vpow.pop %v3623
        %v3625 = vsel %vm1995, %v3610, 0.0
        %3626 = vadd.xlane.f32.xlu0 %v3625
        %v3627 = vpop.xlane.xlu0 %3626
        %v3628 = vsel %vm1995, %v3612, 0.0
        %3629 = vadd.xlane.f32.xlu0 %v3628
        %v3630 = vpop.xlane.xlu0 %3629
        %v3631 = vsel %vm1995, %v3614, 0.0
        %3632 = vadd.xlane.f32.xlu0 %v3631
        %v3633 = vpop.xlane.xlu0 %3632
        %v3634 = vsel %vm1995, %v3616, 0.0
        %3635 = vadd.xlane.f32.xlu0 %v3634
        %v3636 = vpop.xlane.xlu0 %3635
        %v3637 = vsel %vm1995, %v3618, 0.0
        %3638 = vadd.xlane.f32.xlu0 %v3637
        %v3639 = vpop.xlane.xlu0 %3638
        %v3640 = vsel %vm1995, %v3620, 0.0
        %3641 = vadd.xlane.f32.xlu0 %v3640
        %v3642 = vpop.xlane.xlu0 %3641
        %v3643 = vsel %vm1995, %v3622, 0.0
        %3644 = vadd.xlane.f32.xlu0 %v3643
        %v3645 = vpop.xlane.xlu0 %3644
        %v3646 = vsel %vm1995, %v3624, 0.0
        %3647 = vadd.xlane.f32.xlu0 %v3646
        %v3648 = vpop.xlane.xlu0 %3647
        %v3649 = vrcp.pop %v3627
        %v3650 = vrcp.pop %v3630
        %v3651 = vrcp.pop %v3633
        %v3652 = vrcp.pop %v3636
        %v3653 = vrcp.pop %v3639
        %v3654 = vrcp.pop %v3642
        %v3655 = vrcp.pop %v3645
        %v3656 = vrcp.pop %v3648
        %v3657 = vmul.f32 %v3610, %v3649
        %v3658 = vmul.f32 %v3612, %v3650
        %v3659 = vmul.f32 %v3614, %v3651
        %v3660 = vmul.f32 %v3616, %v3652
        %v3661 = vmul.f32 %v3618, %v3653
        %v3662 = vmul.f32 %v3620, %v3654
        %v3663 = vmul.f32 %v3622, %v3655
        %v3664 = vmul.f32 %v3624, %v3656
        %v3665 = vpack.c.bf16 %v3658, %v3657
        %v3666 = vpack.c.bf16 %v3660, %v3659
        %v3667 = vpack.c.bf16 %v3662, %v3661
        %v3668 = vpack.c.bf16 %v3664, %v3663
        %v3670 = vsel %vm1995, %v3665, 0
        %3672 = vmatprep.subr.bf16.mxu0 0
        %3673 = vmatpush1.bf16.msra.mxu0 0
        %3674 = vmatprep.subr.bf16.mxu0 0
        %3675 = vmatpush1.bf16.msra.mxu0 0
        %3676 = vmatprep.subr.bf16.mxu0 0
        %3677 = vmatpush1.bf16.msra.mxu0 0
        %3678 = vmatprep.subr.bf16.mxu0 0
        %3679 = vmatpush1.bf16.msra.mxu0 0
        %3680 = vmatprep.subr.bf16.mxu0 0
        %3681 = vmatpush1.bf16.msra.mxu0 0
        %3682 = vmatprep.subr.bf16.mxu0 0
        %3683 = vmatpush1.bf16.msra.mxu0 0
        %3684 = vmatprep.subr.bf16.mxu0 0
        %3685 = vmatpush1.bf16.msra.mxu0 0
        %3686 = vmatprep.subr.bf16.mxu0 0
        %3687 = vmatpush1.bf16.msra.mxu0 %v3359
        %3688 = vmatprep.subr.bf16.mxu0 0
        %3689 = vmatpush2.bf16.msra.mxu0 0
        %3690 = vmatprep.subr.bf16.mxu0 0
        %3691 = vmatpush2.bf16.msra.mxu0 0
        %3692 = vmatprep.subr.bf16.mxu0 0
        %3693 = vmatpush2.bf16.msra.mxu0 0
        %3694 = vmatprep.subr.bf16.mxu0 0
        %3695 = vmatpush2.bf16.msra.mxu0 0
        %3696 = vmatprep.subr.bf16.mxu0 0
        %3697 = vmatpush2.bf16.msra.mxu0 0
        %3698 = vmatprep.subr.bf16.mxu0 0
        %3699 = vmatpush2.bf16.msra.mxu0 0
        %3700 = vmatprep.subr.bf16.mxu0 0
        %3701 = vmatpush2.bf16.msra.mxu0 0
        %3702 = vmatprep.subr.bf16.mxu0 0
        %3703 = vmatpush2.bf16.msra.mxu0 0
        %3704 = vmatprep.mubr.bf16.mxu0 0
        %3705 = vmatmul.mubr.bf16.gmra.mxu0 %v3670
        %v3706 = vpop.f32.mrf.mxu0
        %v3707 = vadd.f32 0.0, %v3706
        %v3708 = vpop.f32.mrf.mxu0
        %v3709 = vpop.f32.mrf.mxu0
        %v3710 = vadd.f32 0.0, %v3709
        %v3711 = vpop.f32.mrf.mxu0
        %3712 = vdwg.mxu0
        %v3714 = vsel %vm1995, %v3666, 0
        %3716 = vmatprep.subr.bf16.mxu0 0
        %3717 = vmatpush1.bf16.msra.mxu0 0
        %3718 = vmatprep.subr.bf16.mxu0 0
        %3719 = vmatpush1.bf16.msra.mxu0 0
        %3720 = vmatprep.subr.bf16.mxu0 0
        %3721 = vmatpush1.bf16.msra.mxu0 0
        %3722 = vmatprep.subr.bf16.mxu0 0
        %3723 = vmatpush1.bf16.msra.mxu0 0
        %3724 = vmatprep.subr.bf16.mxu0 0
        %3725 = vmatpush1.bf16.msra.mxu0 0
        %3726 = vmatprep.subr.bf16.mxu0 0
        %3727 = vmatpush1.bf16.msra.mxu0 0
        %3728 = vmatprep.subr.bf16.mxu0 0
        %3729 = vmatpush1.bf16.msra.mxu0 0
        %3730 = vmatprep.subr.bf16.mxu0 0
        %3731 = vmatpush1.bf16.msra.mxu0 %v3363
        %3732 = vmatprep.subr.bf16.mxu0 0
        %3733 = vmatpush2.bf16.msra.mxu0 0
        %3734 = vmatprep.subr.bf16.mxu0 0
        %3735 = vmatpush2.bf16.msra.mxu0 0
        %3736 = vmatprep.subr.bf16.mxu0 0
        %3737 = vmatpush2.bf16.msra.mxu0 0
        %3738 = vmatprep.subr.bf16.mxu0 0
        %3739 = vmatpush2.bf16.msra.mxu0 0
        %3740 = vmatprep.subr.bf16.mxu0 0
        %3741 = vmatpush2.bf16.msra.mxu0 0
        %3742 = vmatprep.subr.bf16.mxu0 0
        %3743 = vmatpush2.bf16.msra.mxu0 0
        %3744 = vmatprep.subr.bf16.mxu0 0
        %3745 = vmatpush2.bf16.msra.mxu0 0
        %3746 = vmatprep.subr.bf16.mxu0 0
        %3747 = vmatpush2.bf16.msra.mxu0 0
        %3748 = vmatprep.mubr.bf16.mxu0 0
        %3749 = vmatmul.mubr.bf16.gmra.mxu0 %v3714
        %v3750 = vpop.f32.mrf.mxu0
        %v3751 = vadd.f32 0.0, %v3750
        %v3752 = vpop.f32.mrf.mxu0
        %v3753 = vpop.f32.mrf.mxu0
        %v3754 = vadd.f32 0.0, %v3753
        %v3755 = vpop.f32.mrf.mxu0
        %3756 = vdwg.mxu0
        %v3758 = vsel %vm1995, %v3667, 0
        %3760 = vmatprep.subr.bf16.mxu0 0
        %3761 = vmatpush1.bf16.msra.mxu0 0
        %3762 = vmatprep.subr.bf16.mxu0 0
        %3763 = vmatpush1.bf16.msra.mxu0 0
        %3764 = vmatprep.subr.bf16.mxu0 0
        %3765 = vmatpush1.bf16.msra.mxu0 0
        %3766 = vmatprep.subr.bf16.mxu0 0
        %3767 = vmatpush1.bf16.msra.mxu0 0
        %3768 = vmatprep.subr.bf16.mxu0 0
        %3769 = vmatpush1.bf16.msra.mxu0 0
        %3770 = vmatprep.subr.bf16.mxu0 0
        %3771 = vmatpush1.bf16.msra.mxu0 0
        %3772 = vmatprep.subr.bf16.mxu0 0
        %3773 = vmatpush1.bf16.msra.mxu0 0
        %3774 = vmatprep.subr.bf16.mxu0 0
        %3775 = vmatpush1.bf16.msra.mxu0 %v3367
        %3776 = vmatprep.subr.bf16.mxu0 0
        %3777 = vmatpush2.bf16.msra.mxu0 0
        %3778 = vmatprep.subr.bf16.mxu0 0
        %3779 = vmatpush2.bf16.msra.mxu0 0
        %3780 = vmatprep.subr.bf16.mxu0 0
        %3781 = vmatpush2.bf16.msra.mxu0 0
        %3782 = vmatprep.subr.bf16.mxu0 0
        %3783 = vmatpush2.bf16.msra.mxu0 0
        %3784 = vmatprep.subr.bf16.mxu0 0
        %3785 = vmatpush2.bf16.msra.mxu0 0
        %3786 = vmatprep.subr.bf16.mxu0 0
        %3787 = vmatpush2.bf16.msra.mxu0 0
        %3788 = vmatprep.subr.bf16.mxu0 0
        %3789 = vmatpush2.bf16.msra.mxu0 0
        %3790 = vmatprep.subr.bf16.mxu0 0
        %3791 = vmatpush2.bf16.msra.mxu0 0
        %3792 = vmatprep.mubr.bf16.mxu0 0
        %3793 = vmatmul.mubr.bf16.gmra.mxu0 %v3758
        %v3794 = vpop.f32.mrf.mxu0
        %v3795 = vadd.f32 0.0, %v3794
        %v3796 = vpop.f32.mrf.mxu0
        %v3797 = vpop.f32.mrf.mxu0
        %v3798 = vadd.f32 0.0, %v3797
        %v3799 = vpop.f32.mrf.mxu0
        %3800 = vdwg.mxu0
        %v3802 = vsel %vm1995, %v3668, 0
        %3804 = vmatprep.subr.bf16.mxu0 0
        %3805 = vmatpush1.bf16.msra.mxu0 0
        %3806 = vmatprep.subr.bf16.mxu0 0
        %3807 = vmatpush1.bf16.msra.mxu0 0
        %3808 = vmatprep.subr.bf16.mxu0 0
        %3809 = vmatpush1.bf16.msra.mxu0 0
        %3810 = vmatprep.subr.bf16.mxu0 0
        %3811 = vmatpush1.bf16.msra.mxu0 0
        %3812 = vmatprep.subr.bf16.mxu0 0
        %3813 = vmatpush1.bf16.msra.mxu0 0
        %3814 = vmatprep.subr.bf16.mxu0 0
        %3815 = vmatpush1.bf16.msra.mxu0 0
        %3816 = vmatprep.subr.bf16.mxu0 0
        %3817 = vmatpush1.bf16.msra.mxu0 0
        %3818 = vmatprep.subr.bf16.mxu0 0
        %3819 = vmatpush1.bf16.msra.mxu0 %v3371
        %3820 = vmatprep.subr.bf16.mxu0 0
        %3821 = vmatpush2.bf16.msra.mxu0 0
        %3822 = vmatprep.subr.bf16.mxu0 0
        %3823 = vmatpush2.bf16.msra.mxu0 0
        %3824 = vmatprep.subr.bf16.mxu0 0
        %3825 = vmatpush2.bf16.msra.mxu0 0
        %3826 = vmatprep.subr.bf16.mxu0 0
        %3827 = vmatpush2.bf16.msra.mxu0 0
        %3828 = vmatprep.subr.bf16.mxu0 0
        %3829 = vmatpush2.bf16.msra.mxu0 0
        %3830 = vmatprep.subr.bf16.mxu0 0
        %3831 = vmatpush2.bf16.msra.mxu0 0
        %3832 = vmatprep.subr.bf16.mxu0 0
        %3833 = vmatpush2.bf16.msra.mxu0 0
        %3834 = vmatprep.subr.bf16.mxu0 0
        %3835 = vmatpush2.bf16.msra.mxu0 0
        %3836 = vmatprep.mubr.bf16.mxu0 0
        %3837 = vmatmul.mubr.bf16.gmra.mxu0 %v3802
        %v3838 = vpop.f32.mrf.mxu0
        %v3839 = vadd.f32 0.0, %v3838
        %v3840 = vpop.f32.mrf.mxu0
        %v3841 = vpop.f32.mrf.mxu0
        %v3842 = vadd.f32 0.0, %v3841
        %v3843 = vpop.f32.mrf.mxu0
        %3844 = vdwg.mxu0
        %v3845 = vcombine.low %v3707, %v3795
        %v3846 = vcombine.high %v3707, %v3795
        %v3848 = vunpack.c.l.s4 1983009808
        %v3849 = vunpack.c.0.s8 %v3848
        %v3850 = vlaneseq
        %v3851 = vshrl.u32 %v3850, 7
        %v3852 = vsub.s32 %v3849, %v3851
        %v3853 = vrot.slane %v3845, %v3852
        %v3855 = vunpack.c.l.s4 1983009808
        %v3856 = vunpack.c.0.s8 %v3855
        %v3857 = vlaneseq
        %v3858 = vshrl.u32 %v3857, 7
        %v3859 = vsub.s32 %v3856, %v3858
        %v3860 = vrot.slane %v3846, %v3859
        %v3861 = vcombine.low %v3751, %v3839
        %v3862 = vcombine.high %v3751, %v3839
        %v3864 = vunpack.c.l.s4 1983009808
        %v3865 = vunpack.c.0.s8 %v3864
        %v3866 = vlaneseq
        %v3867 = vshrl.u32 %v3866, 7
        %v3868 = vsub.s32 %v3865, %v3867
        %v3869 = vrot.slane %v3861, %v3868
        %v3871 = vunpack.c.l.s4 1983009808
        %v3872 = vunpack.c.0.s8 %v3871
        %v3873 = vlaneseq
        %v3874 = vshrl.u32 %v3873, 7
        %v3875 = vsub.s32 %v3872, %v3874
        %v3876 = vrot.slane %v3862, %v3875
        %v3877 = vcombine.low %v3853, %v3869
        %v3878 = vcombine.high %v3853, %v3869
        %v3880 = vunpack.c.l.s4 1934713408
        %v3881 = vunpack.c.0.s8 %v3880
        %v3882 = vlaneseq
        %v3883 = vshrl.u32 %v3882, 7
        %v3884 = vsub.s32 %v3881, %v3883
        %v3885 = vrot.slane %v3877, %v3884
        %v3887 = vunpack.c.l.s4 1934713408
        %v3888 = vunpack.c.0.s8 %v3887
        %v3889 = vlaneseq
        %v3890 = vshrl.u32 %v3889, 7
        %v3891 = vsub.s32 %v3888, %v3890
        %v3892 = vrot.slane %v3878, %v3891
        %v3893 = vcombine.low %v3860, %v3876
        %v3894 = vcombine.high %v3860, %v3876
        %v3896 = vunpack.c.l.s4 1934713408
        %v3897 = vunpack.c.0.s8 %v3896
        %v3898 = vlaneseq
        %v3899 = vshrl.u32 %v3898, 7
        %v3900 = vsub.s32 %v3897, %v3899
        %v3901 = vrot.slane %v3893, %v3900
        %v3903 = vunpack.c.l.s4 1934713408
        %v3904 = vunpack.c.0.s8 %v3903
        %v3905 = vlaneseq
        %v3906 = vshrl.u32 %v3905, 7
        %v3907 = vsub.s32 %v3904, %v3906
        %v3908 = vrot.slane %v3894, %v3907
        %v3909 = vcombine.high %v3885, 0.0
        %v3910 = vcombine.high %v3892, 0.0
        %v3911 = vcombine.high %v3901, 0.0
        %v3912 = vcombine.high %v3908, 0.0
        %v3913 = vcombine.low %v3710, %v3798
        %v3914 = vcombine.high %v3710, %v3798
        %v3916 = vunpack.c.l.s4 1983009808
        %v3917 = vunpack.c.0.s8 %v3916
        %v3918 = vlaneseq
        %v3919 = vshrl.u32 %v3918, 7
        %v3920 = vsub.s32 %v3917, %v3919
        %v3921 = vrot.slane %v3913, %v3920
        %v3923 = vunpack.c.l.s4 1983009808
        %v3924 = vunpack.c.0.s8 %v3923
        %v3925 = vlaneseq
        %v3926 = vshrl.u32 %v3925, 7
        %v3927 = vsub.s32 %v3924, %v3926
        %v3928 = vrot.slane %v3914, %v3927
        %v3929 = vcombine.low %v3754, %v3842
        %v3930 = vcombine.high %v3754, %v3842
        %v3932 = vunpack.c.l.s4 1983009808
        %v3933 = vunpack.c.0.s8 %v3932
        %v3934 = vlaneseq
        %v3935 = vshrl.u32 %v3934, 7
        %v3936 = vsub.s32 %v3933, %v3935
        %v3937 = vrot.slane %v3929, %v3936
        %v3939 = vunpack.c.l.s4 1983009808
        %v3940 = vunpack.c.0.s8 %v3939
        %v3941 = vlaneseq
        %v3942 = vshrl.u32 %v3941, 7
        %v3943 = vsub.s32 %v3940, %v3942
        %v3944 = vrot.slane %v3930, %v3943
        %v3945 = vcombine.low %v3921, %v3937
        %v3946 = vcombine.high %v3921, %v3937
        %v3948 = vunpack.c.l.s4 1934713408
        %v3949 = vunpack.c.0.s8 %v3948
        %v3950 = vlaneseq
        %v3951 = vshrl.u32 %v3950, 7
        %v3952 = vsub.s32 %v3949, %v3951
        %v3953 = vrot.slane %v3945, %v3952
        %v3955 = vunpack.c.l.s4 1934713408
        %v3956 = vunpack.c.0.s8 %v3955
        %v3957 = vlaneseq
        %v3958 = vshrl.u32 %v3957, 7
        %v3959 = vsub.s32 %v3956, %v3958
        %v3960 = vrot.slane %v3946, %v3959
        %v3961 = vcombine.low %v3928, %v3944
        %v3962 = vcombine.high %v3928, %v3944
        %v3964 = vunpack.c.l.s4 1934713408
        %v3965 = vunpack.c.0.s8 %v3964
        %v3966 = vlaneseq
        %v3967 = vshrl.u32 %v3966, 7
        %v3968 = vsub.s32 %v3965, %v3967
        %v3969 = vrot.slane %v3961, %v3968
        %v3971 = vunpack.c.l.s4 1934713408
        %v3972 = vunpack.c.0.s8 %v3971
        %v3973 = vlaneseq
        %v3974 = vshrl.u32 %v3973, 7
        %v3975 = vsub.s32 %v3972, %v3974
        %v3976 = vrot.slane %v3962, %v3975
        %v3977 = vcombine.high %v3953, 0.0
        %v3978 = vcombine.high %v3960, 0.0
        %v3979 = vcombine.high %v3969, 0.0
        %v3980 = vcombine.high %v3976, 0.0
        %v3981 = vcombine.low %v3885, %v3892
        %v3983 = vunpack.c.l.s4 1983009808
        %v3984 = vunpack.c.0.s8 %v3983
        %v3985 = vlaneseq
        %v3986 = vshrl.u32 %v3985, 7
        %v3987 = vsub.s32 %v3984, %v3986
        %v3988 = vrot.slane %v3981, %v3987
        %v3989 = vcombine.low %v3909, %v3910
        %v3991 = vunpack.c.l.s4 1983009808
        %v3992 = vunpack.c.0.s8 %v3991
        %v3993 = vlaneseq
        %v3994 = vshrl.u32 %v3993, 7
        %v3995 = vsub.s32 %v3992, %v3994
        %v3996 = vrot.slane %v3989, %v3995
        %v3997 = vcombine.low %v3901, %v3908
        %v3999 = vunpack.c.l.s4 1983009808
        %v4000 = vunpack.c.0.s8 %v3999
        %v4001 = vlaneseq
        %v4002 = vshrl.u32 %v4001, 7
        %v4003 = vsub.s32 %v4000, %v4002
        %v4004 = vrot.slane %v3997, %v4003
        %v4005 = vcombine.low %v3911, %v3912
        %v4007 = vunpack.c.l.s4 1983009808
        %v4008 = vunpack.c.0.s8 %v4007
        %v4009 = vlaneseq
        %v4010 = vshrl.u32 %v4009, 7
        %v4011 = vsub.s32 %v4008, %v4010
        %v4012 = vrot.slane %v4005, %v4011
        %v4013 = vcombine.low %v3988, %v3996
        %v4014 = vcombine.high %v3988, %v3996
        %v4016 = vunpack.c.l.s4 1934713408
        %v4017 = vunpack.c.0.s8 %v4016
        %v4018 = vlaneseq
        %v4019 = vshrl.u32 %v4018, 7
        %v4020 = vsub.s32 %v4017, %v4019
        %v4021 = vrot.slane %v4013, %v4020
        %v4023 = vunpack.c.l.s4 1934713408
        %v4024 = vunpack.c.0.s8 %v4023
        %v4025 = vlaneseq
        %v4026 = vshrl.u32 %v4025, 7
        %v4027 = vsub.s32 %v4024, %v4026
        %v4028 = vrot.slane %v4014, %v4027
        %v4029 = vcombine.low %v4004, %v4012
        %v4030 = vcombine.high %v4004, %v4012
        %v4032 = vunpack.c.l.s4 1934713408
        %v4033 = vunpack.c.0.s8 %v4032
        %v4034 = vlaneseq
        %v4035 = vshrl.u32 %v4034, 7
        %v4036 = vsub.s32 %v4033, %v4035
        %v4037 = vrot.slane %v4029, %v4036
        %v4039 = vunpack.c.l.s4 1934713408
        %v4040 = vunpack.c.0.s8 %v4039
        %v4041 = vlaneseq
        %v4042 = vshrl.u32 %v4041, 7
        %v4043 = vsub.s32 %v4040, %v4042
        %v4044 = vrot.slane %v4030, %v4043
        %v4045 = vcombine.low %v4021, %v4037
        %v4046 = vcombine.high %v4021, %v4037
        %v4047 = vcombine.low %v4028, %v4044
        %v4048 = vcombine.high %v4028, %v4044
        %v4049 = vcombine.low %v3953, %v3960
        %v4051 = vunpack.c.l.s4 1983009808
        %v4052 = vunpack.c.0.s8 %v4051
        %v4053 = vlaneseq
        %v4054 = vshrl.u32 %v4053, 7
        %v4055 = vsub.s32 %v4052, %v4054
        %v4056 = vrot.slane %v4049, %v4055
        %v4057 = vcombine.low %v3977, %v3978
        %v4059 = vunpack.c.l.s4 1983009808
        %v4060 = vunpack.c.0.s8 %v4059
        %v4061 = vlaneseq
        %v4062 = vshrl.u32 %v4061, 7
        %v4063 = vsub.s32 %v4060, %v4062
        %v4064 = vrot.slane %v4057, %v4063
        %v4065 = vcombine.low %v3969, %v3976
        %v4067 = vunpack.c.l.s4 1983009808
        %v4068 = vunpack.c.0.s8 %v4067
        %v4069 = vlaneseq
        %v4070 = vshrl.u32 %v4069, 7
        %v4071 = vsub.s32 %v4068, %v4070
        %v4072 = vrot.slane %v4065, %v4071
        %v4073 = vcombine.low %v3979, %v3980
        %v4075 = vunpack.c.l.s4 1983009808
        %v4076 = vunpack.c.0.s8 %v4075
        %v4077 = vlaneseq
        %v4078 = vshrl.u32 %v4077, 7
        %v4079 = vsub.s32 %v4076, %v4078
        %v4080 = vrot.slane %v4073, %v4079
        %v4081 = vcombine.low %v4056, %v4064
        %v4082 = vcombine.high %v4056, %v4064
        %v4084 = vunpack.c.l.s4 1934713408
        %v4085 = vunpack.c.0.s8 %v4084
        %v4086 = vlaneseq
        %v4087 = vshrl.u32 %v4086, 7
        %v4088 = vsub.s32 %v4085, %v4087
        %v4089 = vrot.slane %v4081, %v4088
        %v4091 = vunpack.c.l.s4 1934713408
        %v4092 = vunpack.c.0.s8 %v4091
        %v4093 = vlaneseq
        %v4094 = vshrl.u32 %v4093, 7
        %v4095 = vsub.s32 %v4092, %v4094
        %v4096 = vrot.slane %v4082, %v4095
        %v4097 = vcombine.low %v4072, %v4080
        %v4098 = vcombine.high %v4072, %v4080
        %v4100 = vunpack.c.l.s4 1934713408
        %v4101 = vunpack.c.0.s8 %v4100
        %v4102 = vlaneseq
        %v4103 = vshrl.u32 %v4102, 7
        %v4104 = vsub.s32 %v4101, %v4103
        %v4105 = vrot.slane %v4097, %v4104
        %v4107 = vunpack.c.l.s4 1934713408
        %v4108 = vunpack.c.0.s8 %v4107
        %v4109 = vlaneseq
        %v4110 = vshrl.u32 %v4109, 7
        %v4111 = vsub.s32 %v4108, %v4110
        %v4112 = vrot.slane %v4098, %v4111
        %v4113 = vcombine.low %v4089, %v4105
        %v4114 = vcombine.high %v4089, %v4105
        %v4115 = vcombine.low %v4096, %v4112
        %v4116 = vcombine.high %v4096, %v4112
        %4119 = vrot.lane.b32.xlu0 %v4046, 32
        %v4120 = vpop.permute.xlu0 %4119
        %4121 = vrot.lane.b32.xlu0 %v4114, 32
        %v4122 = vpop.permute.xlu0 %4121
        %4127 = vrot.lane.b32.xlu0 %v4047, 64
        %v4128 = vpop.permute.xlu0 %4127
        %4129 = vrot.lane.b32.xlu0 %v4115, 64
        %v4130 = vpop.permute.xlu0 %4129
        %4135 = vrot.lane.b32.xlu0 %v4048, 96
        %v4136 = vpop.permute.xlu0 %4135
        %4137 = vrot.lane.b32.xlu0 %v4116, 96
        %v4138 = vpop.permute.xlu0 %4137
        %v4141 = vsel %vm1790, %v4045, %v4120
        %v4142 = vsel %vm1790, %v4113, %v4122
        %v4143 = vsel %vm2562, %v4141, %v4128
        %v4144 = vsel %vm2562, %v4142, %v4130
        %v4145 = vsel %vm2565, %v4143, %v4136
        %v4146 = vsel %vm2565, %v4144, %v4138
        %v4147 = vpack.c.bf16 %v2567, %v2566
        %v4148 = vpack.c.bf16 %v4146, %v4145
        %v4149 = vld [vmem:[%s533] sm:$0xf]
        %v4150 = vld [vmem:[%s533 + $0x4] sm:$0xf]
        %v4151 = vld [vmem:[%s533 + $0x8] sm:$0xf]
        %v4152 = vld [vmem:[%s533 + $0xc] sm:$0xf]
        %v4153 = vld [vmem:[%s533 + $0x10] sm:$0xf]
        %v4154 = vld [vmem:[%s533 + $0x14] sm:$0xf]
        %v4155 = vld [vmem:[%s533 + $0x18] sm:$0xf]
        %v4156 = vld [vmem:[%s533 + $0x1c] sm:$0xf]
        %v4157 = vld [vmem:[%s533 + $0x20] sm:$0xf]
        %v4158 = vld [vmem:[%s533 + $0x24] sm:$0xf]
        %v4159 = vld [vmem:[%s533 + $0x28] sm:$0xf]
        %v4160 = vld [vmem:[%s533 + $0x2c] sm:$0xf]
        %v4161 = vld [vmem:[%s533 + $0x30] sm:$0xf]
        %v4162 = vld [vmem:[%s533 + $0x34] sm:$0xf]
        %v4163 = vld [vmem:[%s533 + $0x38] sm:$0xf]
        %v4164 = vld [vmem:[%s533 + $0x3c] sm:$0xf]
        %v4165 = vld [vmem:[%s641] sm:$0x1]
        %v4167 = vlaneseq
        %v4168 = vshrl.u32 %v4167, 7
        %v4169 = vsub.s32 0, %v4168
        %v4170 = vrot.slane %v4165, %v4169
        %v4188 = vunpack.c.l.b16 %v4149
        %v4189 = vunpack.c.l.b16 %v4150
        %v4190 = vunpack.c.l.b16 %v4151
        %v4191 = vunpack.c.l.b16 %v4152
        %v4192 = vunpack.c.l.b16 %v4153
        %v4193 = vunpack.c.l.b16 %v4154
        %v4194 = vunpack.c.l.b16 %v4155
        %v4195 = vunpack.c.l.b16 %v4156
        %v4196 = vunpack.c.l.b16 %v4157
        %v4197 = vunpack.c.l.b16 %v4158
        %v4198 = vunpack.c.l.b16 %v4159
        %v4199 = vunpack.c.l.b16 %v4160
        %v4200 = vunpack.c.l.b16 %v4161
        %v4201 = vunpack.c.l.b16 %v4162
        %v4202 = vunpack.c.l.b16 %v4163
        %v4203 = vunpack.c.l.b16 %v4164
        %v4204 = vpack.c.b16 %v4189, %v4188
        %v4205 = vpack.c.b16 %v4191, %v4190
        %v4206 = vpack.c.b16 %v4193, %v4192
        %v4207 = vpack.c.b16 %v4195, %v4194
        %v4208 = vpack.c.b16 %v4197, %v4196
        %v4209 = vpack.c.b16 %v4199, %v4198
        %v4210 = vpack.c.b16 %v4201, %v4200
        %v4211 = vpack.c.b16 %v4203, %v4202
        %4220 = vmatprep.subr.bf16.mxu0 0
        %4221 = vmatpush1.bf16.msra.mxu0 %v4211
        %4222 = vmatprep.subr.bf16.mxu0 0
        %4223 = vmatpush1.bf16.msra.mxu0 %v4210
        %4224 = vmatprep.subr.bf16.mxu0 0
        %4225 = vmatpush1.bf16.msra.mxu0 %v4209
        %4226 = vmatprep.subr.bf16.mxu0 0
        %4227 = vmatpush1.bf16.msra.mxu0 %v4208
        %4228 = vmatprep.subr.bf16.mxu0 0
        %4229 = vmatpush1.bf16.msra.mxu0 %v4207
        %4230 = vmatprep.subr.bf16.mxu0 0
        %4231 = vmatpush1.bf16.msra.mxu0 %v4206
        %4232 = vmatprep.subr.bf16.mxu0 0
        %4233 = vmatpush1.bf16.msra.mxu0 %v4205
        %4234 = vmatprep.subr.bf16.mxu0 0
        %4235 = vmatpush1.bf16.msra.mxu0 %v4204
        %4236 = vmatprep.subr.bf16.mxu0 0
        %4237 = vmatpush2.bf16.msra.mxu0 0
        %4238 = vmatprep.subr.bf16.mxu0 0
        %4239 = vmatpush2.bf16.msra.mxu0 0
        %4240 = vmatprep.subr.bf16.mxu0 0
        %4241 = vmatpush2.bf16.msra.mxu0 0
        %4242 = vmatprep.subr.bf16.mxu0 0
        %4243 = vmatpush2.bf16.msra.mxu0 0
        %4244 = vmatprep.subr.bf16.mxu0 0
        %4245 = vmatpush2.bf16.msra.mxu0 0
        %4246 = vmatprep.subr.bf16.mxu0 0
        %4247 = vmatpush2.bf16.msra.mxu0 0
        %4248 = vmatprep.subr.bf16.mxu0 0
        %4249 = vmatpush2.bf16.msra.mxu0 0
        %4250 = vmatprep.subr.bf16.mxu0 0
        %4251 = vmatpush2.bf16.msra.mxu0 0
        %4252 = vmatprep.mubr.bf16.mxu0 0
        %4253 = vmatmul.mubr.bf16.gmra.mxu0 %v4147
        %v4254 = vpop.f32.mrf.mxu0
        %v4255 = vadd.f32 %v4170, %v4254
        %v4256 = vpop.f32.mrf.mxu0
        %v4257 = vpop.f32.mrf.mxu0
        %v4258 = vadd.f32 %v4170, %v4257
        %v4259 = vpop.f32.mrf.mxu0
        %4260 = vmatprep.mubr.bf16.mxu0 0
        %4261 = vmatmul.mubr.bf16.gmra.mxu0 %v4148
        %v4262 = vpop.f32.mrf.mxu0
        %v4263 = vadd.f32 %v4170, %v4262
        %v4264 = vpop.f32.mrf.mxu0
        %v4265 = vpop.f32.mrf.mxu0
        %v4266 = vadd.f32 %v4170, %v4265
        %v4267 = vpop.f32.mrf.mxu0
        %4268 = vdwg.mxu0
        %v4269 = vadd.f32 %v4255, %v686
        %v4270 = vadd.f32 %v4258, %v687
        %v4271 = vadd.f32 %v4263, %v688
        %v4272 = vadd.f32 %v4266, %v689
        %v4273 = vld [vmem:[%s644] sm:$0x1]
        %v4274 = vld [vmem:[%s647] sm:$0x1]
        %v4275 = vmul.f32 %v4269, %v4269
        %v4276 = vmul.f32 %v4270, %v4270
        %v4277 = vmul.f32 %v4271, %v4271
        %v4278 = vmul.f32 %v4272, %v4272
        %4279 = vadd.xlane.f32.xlu0 %v4275
        %v4280 = vpop.xlane.xlu0 %4279
        %4281 = vadd.xlane.f32.xlu0 %v4276
        %v4282 = vpop.xlane.xlu0 %4281
        %4283 = vadd.xlane.f32.xlu0 %v4277
        %v4284 = vpop.xlane.xlu0 %4283
        %4285 = vadd.xlane.f32.xlu0 %v4278
        %v4286 = vpop.xlane.xlu0 %4285
        %v4287 = vrcp.pop 128.0
        %v4288 = vmul.f32 %v4280, %v4287
        %v4289 = vmul.f32 %v4282, %v4287
        %v4290 = vmul.f32 %v4284, %v4287
        %v4291 = vmul.f32 %v4286, %v4287
        %v4292 = vrsqrt.pop %v4288
        %v4293 = vmul.f32 %v4288, %v4292
        %vm4294 = vcmp.eq.f32.partialorder %v4288, inf
        %v4295 = vsel %vm4294, %v4288, %v4293
        %vm4296 = vcmp.eq.f32.partialorder %v4288, 0.0
        %v4297 = vand.u32 %v4288, 2147483648
        %v4298 = vsel %vm4296, %v4297, %v4295
        %v4299 = vrsqrt.pop %v4289
        %v4300 = vmul.f32 %v4289, %v4299
        %vm4301 = vcmp.eq.f32.partialorder %v4289, inf
        %v4302 = vsel %vm4301, %v4289, %v4300
        %vm4303 = vcmp.eq.f32.partialorder %v4289, 0.0
        %v4304 = vand.u32 %v4289, 2147483648
        %v4305 = vsel %vm4303, %v4304, %v4302
        %v4306 = vrsqrt.pop %v4290
        %v4307 = vmul.f32 %v4290, %v4306
        %vm4308 = vcmp.eq.f32.partialorder %v4290, inf
        %v4309 = vsel %vm4308, %v4290, %v4307
        %vm4310 = vcmp.eq.f32.partialorder %v4290, 0.0
        %v4311 = vand.u32 %v4290, 2147483648
        %v4312 = vsel %vm4310, %v4311, %v4309
        %v4313 = vrsqrt.pop %v4291
        %v4314 = vmul.f32 %v4291, %v4313
        %vm4315 = vcmp.eq.f32.partialorder %v4291, inf
        %v4316 = vsel %vm4315, %v4291, %v4314
        %vm4317 = vcmp.eq.f32.partialorder %v4291, 0.0
        %v4318 = vand.u32 %v4291, 2147483648
        %v4319 = vsel %vm4317, %v4318, %v4316
        %v4321 = vlaneseq
        %v4322 = vshrl.u32 %v4321, 7
        %v4323 = vsub.s32 0, %v4322
        %v4324 = vrot.slane %v4273, %v4323
        %v4326 = vmul.f32 %v4324, %v4269
        %v4327 = vmul.f32 %v4324, %v4270
        %v4328 = vmul.f32 %v4324, %v4271
        %v4329 = vmul.f32 %v4324, %v4272
        %v4330 = vadd.f32 %v4298, 1e-08
        %v4331 = vadd.f32 %v4305, 1e-08
        %v4332 = vadd.f32 %v4312, 1e-08
        %v4333 = vadd.f32 %v4319, 1e-08
        %v4334 = vrcp.pop %v4330
        %v4335 = vmul.f32 %v4326, %v4334
        %v4336 = vrcp.pop %v4331
        %v4337 = vmul.f32 %v4327, %v4336
        %v4338 = vrcp.pop %v4332
        %v4339 = vmul.f32 %v4328, %v4338
        %v4340 = vrcp.pop %v4333
        %v4341 = vmul.f32 %v4329, %v4340
        %v4343 = vlaneseq
        %v4344 = vshrl.u32 %v4343, 7
        %v4345 = vsub.s32 0, %v4344
        %v4346 = vrot.slane %v4274, %v4345
        %v4348 = vadd.f32 %v4335, %v4346
        %v4349 = vadd.f32 %v4337, %v4346
        %v4350 = vadd.f32 %v4339, %v4346
        %v4351 = vadd.f32 %v4341, %v4346
        %v4352 = vpack.c.bf16 %v4349, %v4348
        %v4353 = vpack.c.bf16 %v4351, %v4350
        %v4354 = vld [vmem:[%s542] sm:$0xff]
        %v4355 = vld [vmem:[%s542 + $0x8] sm:$0xff]
        %v4356 = vld [vmem:[%s542 + $0x10] sm:$0xff]
        %v4357 = vld [vmem:[%s542 + $0x18] sm:$0xff]
        %v4358 = vld [vmem:[%s542 + $0x20] sm:$0xff]
        %v4359 = vld [vmem:[%s542 + $0x28] sm:$0xff]
        %v4360 = vld [vmem:[%s542 + $0x30] sm:$0xff]
        %v4361 = vld [vmem:[%s542 + $0x38] sm:$0xff]
        %v4362 = vld [vmem:[%s542 + $0x40] sm:$0xff]
        %v4363 = vld [vmem:[%s542 + $0x48] sm:$0xff]
        %v4364 = vld [vmem:[%s542 + $0x50] sm:$0xff]
        %v4365 = vld [vmem:[%s542 + $0x58] sm:$0xff]
        %v4366 = vld [vmem:[%s542 + $0x60] sm:$0xff]
        %v4367 = vld [vmem:[%s542 + $0x68] sm:$0xff]
        %v4368 = vld [vmem:[%s542 + $0x70] sm:$0xff]
        %v4369 = vld [vmem:[%s542 + $0x78] sm:$0xff]
        %v4370 = vld [vmem:[%s542 + $0x80] sm:$0xff]
        %v4371 = vld [vmem:[%s542 + $0x88] sm:$0xff]
        %v4372 = vld [vmem:[%s542 + $0x90] sm:$0xff]
        %v4373 = vld [vmem:[%s542 + $0x98] sm:$0xff]
        %v4374 = vld [vmem:[%s542 + $0xa0] sm:$0xff]
        %v4375 = vld [vmem:[%s542 + $0xa8] sm:$0xff]
        %v4376 = vld [vmem:[%s542 + $0xb0] sm:$0xff]
        %v4377 = vld [vmem:[%s542 + $0xb8] sm:$0xff]
        %v4378 = vld [vmem:[%s542 + $0xc0] sm:$0xff]
        %v4379 = vld [vmem:[%s542 + $0xc8] sm:$0xff]
        %v4380 = vld [vmem:[%s542 + $0xd0] sm:$0xff]
        %v4381 = vld [vmem:[%s542 + $0xd8] sm:$0xff]
        %v4382 = vld [vmem:[%s542 + $0xe0] sm:$0xff]
        %v4383 = vld [vmem:[%s542 + $0xe8] sm:$0xff]
        %v4384 = vld [vmem:[%s542 + $0xf0] sm:$0xff]
        %v4385 = vld [vmem:[%s542 + $0xf8] sm:$0xff]
        %v4386 = vld [vmem:[%s651] sm:$0xf]
        %v4388 = vlaneseq
        %v4389 = vshrl.u32 %v4388, 7
        %v4390 = vsub.s32 0, %v4389
        %v4391 = vrot.slane %v4386, %v4390
        %v4392 = vlaneseq
        %v4393 = vshrl.u32 %v4392, 7
        %v4394 = vsub.s32 1, %v4393
        %v4395 = vrot.slane %v4386, %v4394
        %v4396 = vlaneseq
        %v4397 = vshrl.u32 %v4396, 7
        %v4398 = vsub.s32 2, %v4397
        %v4399 = vrot.slane %v4386, %v4398
        %v4400 = vlaneseq
        %v4401 = vshrl.u32 %v4400, 7
        %v4402 = vsub.s32 3, %v4401
        %v4403 = vrot.slane %v4386, %v4402
        %v4440 = vunpack.c.l.b16 %v4354
        %v4441 = vunpack.c.h.b16 %v4354
        %v4442 = vunpack.c.l.b16 %v4355
        %v4443 = vunpack.c.h.b16 %v4355
        %v4444 = vunpack.c.l.b16 %v4356
        %v4445 = vunpack.c.h.b16 %v4356
        %v4446 = vunpack.c.l.b16 %v4357
        %v4447 = vunpack.c.h.b16 %v4357
        %v4448 = vunpack.c.l.b16 %v4358
        %v4449 = vunpack.c.h.b16 %v4358
        %v4450 = vunpack.c.l.b16 %v4359
        %v4451 = vunpack.c.h.b16 %v4359
        %v4452 = vunpack.c.l.b16 %v4360
        %v4453 = vunpack.c.h.b16 %v4360
        %v4454 = vunpack.c.l.b16 %v4361
        %v4455 = vunpack.c.h.b16 %v4361
        %v4456 = vunpack.c.l.b16 %v4362
        %v4457 = vunpack.c.h.b16 %v4362
        %v4458 = vunpack.c.l.b16 %v4363
        %v4459 = vunpack.c.h.b16 %v4363
        %v4460 = vunpack.c.l.b16 %v4364
        %v4461 = vunpack.c.h.b16 %v4364
        %v4462 = vunpack.c.l.b16 %v4365
        %v4463 = vunpack.c.h.b16 %v4365
        %v4464 = vunpack.c.l.b16 %v4366
        %v4465 = vunpack.c.h.b16 %v4366
        %v4466 = vunpack.c.l.b16 %v4367
        %v4467 = vunpack.c.h.b16 %v4367
        %v4468 = vunpack.c.l.b16 %v4368
        %v4469 = vunpack.c.h.b16 %v4368
        %v4470 = vunpack.c.l.b16 %v4369
        %v4471 = vunpack.c.h.b16 %v4369
        %v4472 = vunpack.c.l.b16 %v4370
        %v4473 = vunpack.c.h.b16 %v4370
        %v4474 = vunpack.c.l.b16 %v4371
        %v4475 = vunpack.c.h.b16 %v4371
        %v4476 = vunpack.c.l.b16 %v4372
        %v4477 = vunpack.c.h.b16 %v4372
        %v4478 = vunpack.c.l.b16 %v4373
        %v4479 = vunpack.c.h.b16 %v4373
        %v4480 = vunpack.c.l.b16 %v4374
        %v4481 = vunpack.c.h.b16 %v4374
        %v4482 = vunpack.c.l.b16 %v4375
        %v4483 = vunpack.c.h.b16 %v4375
        %v4484 = vunpack.c.l.b16 %v4376
        %v4485 = vunpack.c.h.b16 %v4376
        %v4486 = vunpack.c.l.b16 %v4377
        %v4487 = vunpack.c.h.b16 %v4377
        %v4488 = vunpack.c.l.b16 %v4378
        %v4489 = vunpack.c.h.b16 %v4378
        %v4490 = vunpack.c.l.b16 %v4379
        %v4491 = vunpack.c.h.b16 %v4379
        %v4492 = vunpack.c.l.b16 %v4380
        %v4493 = vunpack.c.h.b16 %v4380
        %v4494 = vunpack.c.l.b16 %v4381
        %v4495 = vunpack.c.h.b16 %v4381
        %v4496 = vunpack.c.l.b16 %v4382
        %v4497 = vunpack.c.h.b16 %v4382
        %v4498 = vunpack.c.l.b16 %v4383
        %v4499 = vunpack.c.h.b16 %v4383
        %v4500 = vunpack.c.l.b16 %v4384
        %v4501 = vunpack.c.h.b16 %v4384
        %v4502 = vunpack.c.l.b16 %v4385
        %v4503 = vunpack.c.h.b16 %v4385
        %v4504 = vpack.c.b16 %v4444, %v4440
        %v4505 = vpack.c.b16 %v4445, %v4441
        %v4506 = vpack.c.b16 %v4446, %v4442
        %v4507 = vpack.c.b16 %v4447, %v4443
        %v4508 = vpack.c.b16 %v4452, %v4448
        %v4509 = vpack.c.b16 %v4453, %v4449
        %v4510 = vpack.c.b16 %v4454, %v4450
        %v4511 = vpack.c.b16 %v4455, %v4451
        %v4512 = vpack.c.b16 %v4460, %v4456
        %v4513 = vpack.c.b16 %v4461, %v4457
        %v4514 = vpack.c.b16 %v4462, %v4458
        %v4515 = vpack.c.b16 %v4463, %v4459
        %v4516 = vpack.c.b16 %v4468, %v4464
        %v4517 = vpack.c.b16 %v4469, %v4465
        %v4518 = vpack.c.b16 %v4470, %v4466
        %v4519 = vpack.c.b16 %v4471, %v4467
        %v4520 = vpack.c.b16 %v4476, %v4472
        %v4521 = vpack.c.b16 %v4477, %v4473
        %v4522 = vpack.c.b16 %v4478, %v4474
        %v4523 = vpack.c.b16 %v4479, %v4475
        %v4524 = vpack.c.b16 %v4484, %v4480
        %v4525 = vpack.c.b16 %v4485, %v4481
        %v4526 = vpack.c.b16 %v4486, %v4482
        %v4527 = vpack.c.b16 %v4487, %v4483
        %v4528 = vpack.c.b16 %v4492, %v4488
        %v4529 = vpack.c.b16 %v4493, %v4489
        %v4530 = vpack.c.b16 %v4494, %v4490
        %v4531 = vpack.c.b16 %v4495, %v4491
        %v4532 = vpack.c.b16 %v4500, %v4496
        %v4533 = vpack.c.b16 %v4501, %v4497
        %v4534 = vpack.c.b16 %v4502, %v4498
        %v4535 = vpack.c.b16 %v4503, %v4499
        %4568 = vmatprep.subr.bf16.mxu0 %v4533
        %4569 = vmatpush1.bf16.msra.mxu0 %v4532
        %4570 = vmatprep.subr.bf16.mxu0 %v4529
        %4571 = vmatpush1.bf16.msra.mxu0 %v4528
        %4572 = vmatprep.subr.bf16.mxu0 %v4525
        %4573 = vmatpush1.bf16.msra.mxu0 %v4524
        %4574 = vmatprep.subr.bf16.mxu0 %v4521
        %4575 = vmatpush1.bf16.msra.mxu0 %v4520
        %4576 = vmatprep.subr.bf16.mxu0 %v4517
        %4577 = vmatpush1.bf16.msra.mxu0 %v4516
        %4578 = vmatprep.subr.bf16.mxu0 %v4513
        %4579 = vmatpush1.bf16.msra.mxu0 %v4512
        %4580 = vmatprep.subr.bf16.mxu0 %v4509
        %4581 = vmatpush1.bf16.msra.mxu0 %v4508
        %4582 = vmatprep.subr.bf16.mxu0 %v4505
        %4583 = vmatpush1.bf16.msra.mxu0 %v4504
        %4584 = vmatprep.subr.bf16.mxu0 0
        %4585 = vmatpush2.bf16.msra.mxu0 0
        %4586 = vmatprep.subr.bf16.mxu0 0
        %4587 = vmatpush2.bf16.msra.mxu0 0
        %4588 = vmatprep.subr.bf16.mxu0 0
        %4589 = vmatpush2.bf16.msra.mxu0 0
        %4590 = vmatprep.subr.bf16.mxu0 0
        %4591 = vmatpush2.bf16.msra.mxu0 0
        %4592 = vmatprep.subr.bf16.mxu0 0
        %4593 = vmatpush2.bf16.msra.mxu0 0
        %4594 = vmatprep.subr.bf16.mxu0 0
        %4595 = vmatpush2.bf16.msra.mxu0 0
        %4596 = vmatprep.subr.bf16.mxu0 0
        %4597 = vmatpush2.bf16.msra.mxu0 0
        %4598 = vmatprep.subr.bf16.mxu0 0
        %4599 = vmatpush2.bf16.msra.mxu0 0
        %4600 = vmatprep.mubr.bf16.mxu0 0
        %4601 = vmatmul.mubr.bf16.gmra.mxu0 %v4352
        %v4602 = vpop.f32.mrf.mxu0
        %v4603 = vadd.f32 %v4391, %v4602
        %v4604 = vpop.f32.mrf.mxu0
        %v4605 = vadd.f32 %v4395, %v4604
        %v4606 = vpop.f32.mrf.mxu0
        %v4607 = vadd.f32 %v4391, %v4606
        %v4608 = vpop.f32.mrf.mxu0
        %v4609 = vadd.f32 %v4395, %v4608
        %4610 = vmatprep.mubr.bf16.mxu0 0
        %4611 = vmatmul.mubr.bf16.gmra.mxu0 %v4353
        %v4612 = vpop.f32.mrf.mxu0
        %v4613 = vadd.f32 %v4391, %v4612
        %v4614 = vpop.f32.mrf.mxu0
        %v4615 = vadd.f32 %v4395, %v4614
        %v4616 = vpop.f32.mrf.mxu0
        %v4617 = vadd.f32 %v4391, %v4616
        %v4618 = vpop.f32.mrf.mxu0
        %v4619 = vadd.f32 %v4395, %v4618
        %4620 = vdwg.mxu0
        %4621 = vmatprep.subr.bf16.mxu0 %v4535
        %4622 = vmatpush1.bf16.msra.mxu0 %v4534
        %4623 = vmatprep.subr.bf16.mxu0 %v4531
        %4624 = vmatpush1.bf16.msra.mxu0 %v4530
        %4625 = vmatprep.subr.bf16.mxu0 %v4527
        %4626 = vmatpush1.bf16.msra.mxu0 %v4526
        %4627 = vmatprep.subr.bf16.mxu0 %v4523
        %4628 = vmatpush1.bf16.msra.mxu0 %v4522
        %4629 = vmatprep.subr.bf16.mxu0 %v4519
        %4630 = vmatpush1.bf16.msra.mxu0 %v4518
        %4631 = vmatprep.subr.bf16.mxu0 %v4515
        %4632 = vmatpush1.bf16.msra.mxu0 %v4514
        %4633 = vmatprep.subr.bf16.mxu0 %v4511
        %4634 = vmatpush1.bf16.msra.mxu0 %v4510
        %4635 = vmatprep.subr.bf16.mxu0 %v4507
        %4636 = vmatpush1.bf16.msra.mxu0 %v4506
        %4637 = vmatprep.subr.bf16.mxu0 0
        %4638 = vmatpush2.bf16.msra.mxu0 0
        %4639 = vmatprep.subr.bf16.mxu0 0
        %4640 = vmatpush2.bf16.msra.mxu0 0
        %4641 = vmatprep.subr.bf16.mxu0 0
        %4642 = vmatpush2.bf16.msra.mxu0 0
        %4643 = vmatprep.subr.bf16.mxu0 0
        %4644 = vmatpush2.bf16.msra.mxu0 0
        %4645 = vmatprep.subr.bf16.mxu0 0
        %4646 = vmatpush2.bf16.msra.mxu0 0
        %4647 = vmatprep.subr.bf16.mxu0 0
        %4648 = vmatpush2.bf16.msra.mxu0 0
        %4649 = vmatprep.subr.bf16.mxu0 0
        %4650 = vmatpush2.bf16.msra.mxu0 0
        %4651 = vmatprep.subr.bf16.mxu0 0
        %4652 = vmatpush2.bf16.msra.mxu0 0
        %4653 = vmatprep.mubr.bf16.mxu0 0
        %4654 = vmatmul.mubr.bf16.gmra.mxu0 %v4352
        %v4655 = vpop.f32.mrf.mxu0
        %v4656 = vadd.f32 %v4399, %v4655
        %v4657 = vpop.f32.mrf.mxu0
        %v4658 = vadd.f32 %v4403, %v4657
        %v4659 = vpop.f32.mrf.mxu0
        %v4660 = vadd.f32 %v4399, %v4659
        %v4661 = vpop.f32.mrf.mxu0
        %v4662 = vadd.f32 %v4403, %v4661
        %4663 = vmatprep.mubr.bf16.mxu0 0
        %4664 = vmatmul.mubr.bf16.gmra.mxu0 %v4353
        %v4665 = vpop.f32.mrf.mxu0
        %v4666 = vadd.f32 %v4399, %v4665
        %v4667 = vpop.f32.mrf.mxu0
        %v4668 = vadd.f32 %v4403, %v4667
        %v4669 = vpop.f32.mrf.mxu0
        %v4670 = vadd.f32 %v4399, %v4669
        %v4671 = vpop.f32.mrf.mxu0
        %v4672 = vadd.f32 %v4403, %v4671
        %4673 = vdwg.mxu0
        %v4674 = vmul.f32 %v4603, 0.70710677
        %v4675 = vmul.f32 %v4605, 0.70710677
        %v4676 = vmul.f32 %v4656, 0.70710677
        %v4677 = vmul.f32 %v4658, 0.70710677
        %v4678 = vmul.f32 %v4607, 0.70710677
        %v4679 = vmul.f32 %v4609, 0.70710677
        %v4680 = vmul.f32 %v4660, 0.70710677
        %v4681 = vmul.f32 %v4662, 0.70710677
        %v4682 = vmul.f32 %v4613, 0.70710677
        %v4683 = vmul.f32 %v4615, 0.70710677
        %v4684 = vmul.f32 %v4666, 0.70710677
        %v4685 = vmul.f32 %v4668, 0.70710677
        %v4686 = vmul.f32 %v4617, 0.70710677
        %v4687 = vmul.f32 %v4619, 0.70710677
        %v4688 = vmul.f32 %v4670, 0.70710677
        %v4689 = vmul.f32 %v4672, 0.70710677
        %v4690 = vand.u32 2147483647, %v4674
        %v4691 = vand.u32 2147483647, %v4675
        %v4692 = vand.u32 2147483647, %v4676
        %v4693 = vand.u32 2147483647, %v4677
        %v4694 = vand.u32 2147483647, %v4678
        %v4695 = vand.u32 2147483647, %v4679
        %v4696 = vand.u32 2147483647, %v4680
        %v4697 = vand.u32 2147483647, %v4681
        %v4698 = vand.u32 2147483647, %v4682
        %v4699 = vand.u32 2147483647, %v4683
        %v4700 = vand.u32 2147483647, %v4684
        %v4701 = vand.u32 2147483647, %v4685
        %v4702 = vand.u32 2147483647, %v4686
        %v4703 = vand.u32 2147483647, %v4687
        %v4704 = vand.u32 2147483647, %v4688
        %v4705 = vand.u32 2147483647, %v4689
        %v4706 = vmul.f32 %v4690, 0.3275911
        %v4707 = vmul.f32 %v4691, 0.3275911
        %v4708 = vmul.f32 %v4692, 0.3275911
        %v4709 = vmul.f32 %v4693, 0.3275911
        %v4710 = vmul.f32 %v4694, 0.3275911
        %v4711 = vmul.f32 %v4695, 0.3275911
        %v4712 = vmul.f32 %v4696, 0.3275911
        %v4713 = vmul.f32 %v4697, 0.3275911
        %v4714 = vmul.f32 %v4698, 0.3275911
        %v4715 = vmul.f32 %v4699, 0.3275911
        %v4716 = vmul.f32 %v4700, 0.3275911
        %v4717 = vmul.f32 %v4701, 0.3275911
        %v4718 = vmul.f32 %v4702, 0.3275911
        %v4719 = vmul.f32 %v4703, 0.3275911
        %v4720 = vmul.f32 %v4704, 0.3275911
        %v4721 = vmul.f32 %v4705, 0.3275911
        %v4722 = vadd.f32 %v4706, 1.0
        %v4723 = vadd.f32 %v4707, 1.0
        %v4724 = vadd.f32 %v4708, 1.0
        %v4725 = vadd.f32 %v4709, 1.0
        %v4726 = vadd.f32 %v4710, 1.0
        %v4727 = vadd.f32 %v4711, 1.0
        %v4728 = vadd.f32 %v4712, 1.0
        %v4729 = vadd.f32 %v4713, 1.0
        %v4730 = vadd.f32 %v4714, 1.0
        %v4731 = vadd.f32 %v4715, 1.0
        %v4732 = vadd.f32 %v4716, 1.0
        %v4733 = vadd.f32 %v4717, 1.0
        %v4734 = vadd.f32 %v4718, 1.0
        %v4735 = vadd.f32 %v4719, 1.0
        %v4736 = vadd.f32 %v4720, 1.0
        %v4737 = vadd.f32 %v4721, 1.0
        %v4738 = vrcp.pop %v4722
        %v4739 = vmul.f32 1.0, %v4738
        %v4740 = vrcp.pop %v4723
        %v4741 = vmul.f32 1.0, %v4740
        %v4742 = vrcp.pop %v4724
        %v4743 = vmul.f32 1.0, %v4742
        %v4744 = vrcp.pop %v4725
        %v4745 = vmul.f32 1.0, %v4744
        %v4746 = vrcp.pop %v4726
        %v4747 = vmul.f32 1.0, %v4746
        %v4748 = vrcp.pop %v4727
        %v4749 = vmul.f32 1.0, %v4748
        %v4750 = vrcp.pop %v4728
        %v4751 = vmul.f32 1.0, %v4750
        %v4752 = vrcp.pop %v4729
        %v4753 = vmul.f32 1.0, %v4752
        %v4754 = vrcp.pop %v4730
        %v4755 = vmul.f32 1.0, %v4754
        %v4756 = vrcp.pop %v4731
        %v4757 = vmul.f32 1.0, %v4756
        %v4758 = vrcp.pop %v4732
        %v4759 = vmul.f32 1.0, %v4758
        %v4760 = vrcp.pop %v4733
        %v4761 = vmul.f32 1.0, %v4760
        %v4762 = vrcp.pop %v4734
        %v4763 = vmul.f32 1.0, %v4762
        %v4764 = vrcp.pop %v4735
        %v4765 = vmul.f32 1.0, %v4764
        %v4766 = vrcp.pop %v4736
        %v4767 = vmul.f32 1.0, %v4766
        %v4768 = vrcp.pop %v4737
        %v4769 = vmul.f32 1.0, %v4768
        %v4770 = vmul.f32 %v4739, 1.0614054
        %v4771 = vmul.f32 %v4741, 1.0614054
        %v4772 = vmul.f32 %v4743, 1.0614054
        %v4773 = vmul.f32 %v4745, 1.0614054
        %v4774 = vmul.f32 %v4747, 1.0614054
        %v4775 = vmul.f32 %v4749, 1.0614054
        %v4776 = vmul.f32 %v4751, 1.0614054
        %v4777 = vmul.f32 %v4753, 1.0614054
        %v4778 = vmul.f32 %v4755, 1.0614054
        %v4779 = vmul.f32 %v4757, 1.0614054
        %v4780 = vmul.f32 %v4759, 1.0614054
        %v4781 = vmul.f32 %v4761, 1.0614054
        %v4782 = vmul.f32 %v4763, 1.0614054
        %v4783 = vmul.f32 %v4765, 1.0614054
        %v4784 = vmul.f32 %v4767, 1.0614054
        %v4785 = vmul.f32 %v4769, 1.0614054
        %v4786 = vadd.f32 %v4770, -1.4531521
        %v4787 = vadd.f32 %v4771, -1.4531521
        %v4788 = vadd.f32 %v4772, -1.4531521
        %v4789 = vadd.f32 %v4773, -1.4531521
        %v4790 = vadd.f32 %v4774, -1.4531521
        %v4791 = vadd.f32 %v4775, -1.4531521
        %v4792 = vadd.f32 %v4776, -1.4531521
        %v4793 = vadd.f32 %v4777, -1.4531521
        %v4794 = vadd.f32 %v4778, -1.4531521
        %v4795 = vadd.f32 %v4779, -1.4531521
        %v4796 = vadd.f32 %v4780, -1.4531521
        %v4797 = vadd.f32 %v4781, -1.4531521
        %v4798 = vadd.f32 %v4782, -1.4531521
        %v4799 = vadd.f32 %v4783, -1.4531521
        %v4800 = vadd.f32 %v4784, -1.4531521
        %v4801 = vadd.f32 %v4785, -1.4531521
        %v4802 = vmul.f32 %v4786, %v4739
        %v4803 = vmul.f32 %v4787, %v4741
        %v4804 = vmul.f32 %v4788, %v4743
        %v4805 = vmul.f32 %v4789, %v4745
        %v4806 = vmul.f32 %v4790, %v4747
        %v4807 = vmul.f32 %v4791, %v4749
        %v4808 = vmul.f32 %v4792, %v4751
        %v4809 = vmul.f32 %v4793, %v4753
        %v4810 = vmul.f32 %v4794, %v4755
        %v4811 = vmul.f32 %v4795, %v4757
        %v4812 = vmul.f32 %v4796, %v4759
        %v4813 = vmul.f32 %v4797, %v4761
        %v4814 = vmul.f32 %v4798, %v4763
        %v4815 = vmul.f32 %v4799, %v4765
        %v4816 = vmul.f32 %v4800, %v4767
        %v4817 = vmul.f32 %v4801, %v4769
        %v4818 = vadd.f32 %v4802, 1.4214138
        %v4819 = vadd.f32 %v4803, 1.4214138
        %v4820 = vadd.f32 %v4804, 1.4214138
        %v4821 = vadd.f32 %v4805, 1.4214138
        %v4822 = vadd.f32 %v4806, 1.4214138
        %v4823 = vadd.f32 %v4807, 1.4214138
        %v4824 = vadd.f32 %v4808, 1.4214138
        %v4825 = vadd.f32 %v4809, 1.4214138
        %v4826 = vadd.f32 %v4810, 1.4214138
        %v4827 = vadd.f32 %v4811, 1.4214138
        %v4828 = vadd.f32 %v4812, 1.4214138
        %v4829 = vadd.f32 %v4813, 1.4214138
        %v4830 = vadd.f32 %v4814, 1.4214138
        %v4831 = vadd.f32 %v4815, 1.4214138
        %v4832 = vadd.f32 %v4816, 1.4214138
        %v4833 = vadd.f32 %v4817, 1.4214138
        %v4834 = vmul.f32 %v4818, %v4739
        %v4835 = vmul.f32 %v4819, %v4741
        %v4836 = vmul.f32 %v4820, %v4743
        %v4837 = vmul.f32 %v4821, %v4745
        %v4838 = vmul.f32 %v4822, %v4747
        %v4839 = vmul.f32 %v4823, %v4749
        %v4840 = vmul.f32 %v4824, %v4751
        %v4841 = vmul.f32 %v4825, %v4753
        %v4842 = vmul.f32 %v4826, %v4755
        %v4843 = vmul.f32 %v4827, %v4757
        %v4844 = vmul.f32 %v4828, %v4759
        %v4845 = vmul.f32 %v4829, %v4761
        %v4846 = vmul.f32 %v4830, %v4763
        %v4847 = vmul.f32 %v4831, %v4765
        %v4848 = vmul.f32 %v4832, %v4767
        %v4849 = vmul.f32 %v4833, %v4769
        %v4850 = vadd.f32 %v4834, -0.28449672
        %v4851 = vadd.f32 %v4835, -0.28449672
        %v4852 = vadd.f32 %v4836, -0.28449672
        %v4853 = vadd.f32 %v4837, -0.28449672
        %v4854 = vadd.f32 %v4838, -0.28449672
        %v4855 = vadd.f32 %v4839, -0.28449672
        %v4856 = vadd.f32 %v4840, -0.28449672
        %v4857 = vadd.f32 %v4841, -0.28449672
        %v4858 = vadd.f32 %v4842, -0.28449672
        %v4859 = vadd.f32 %v4843, -0.28449672
        %v4860 = vadd.f32 %v4844, -0.28449672
        %v4861 = vadd.f32 %v4845, -0.28449672
        %v4862 = vadd.f32 %v4846, -0.28449672
        %v4863 = vadd.f32 %v4847, -0.28449672
        %v4864 = vadd.f32 %v4848, -0.28449672
        %v4865 = vadd.f32 %v4849, -0.28449672
        %v4866 = vmul.f32 %v4850, %v4739
        %v4867 = vmul.f32 %v4851, %v4741
        %v4868 = vmul.f32 %v4852, %v4743
        %v4869 = vmul.f32 %v4853, %v4745
        %v4870 = vmul.f32 %v4854, %v4747
        %v4871 = vmul.f32 %v4855, %v4749
        %v4872 = vmul.f32 %v4856, %v4751
        %v4873 = vmul.f32 %v4857, %v4753
        %v4874 = vmul.f32 %v4858, %v4755
        %v4875 = vmul.f32 %v4859, %v4757
        %v4876 = vmul.f32 %v4860, %v4759
        %v4877 = vmul.f32 %v4861, %v4761
        %v4878 = vmul.f32 %v4862, %v4763
        %v4879 = vmul.f32 %v4863, %v4765
        %v4880 = vmul.f32 %v4864, %v4767
        %v4881 = vmul.f32 %v4865, %v4769
        %v4882 = vadd.f32 %v4866, 0.2548296
        %v4883 = vadd.f32 %v4867, 0.2548296
        %v4884 = vadd.f32 %v4868, 0.2548296
        %v4885 = vadd.f32 %v4869, 0.2548296
        %v4886 = vadd.f32 %v4870, 0.2548296
        %v4887 = vadd.f32 %v4871, 0.2548296
        %v4888 = vadd.f32 %v4872, 0.2548296
        %v4889 = vadd.f32 %v4873, 0.2548296
        %v4890 = vadd.f32 %v4874, 0.2548296
        %v4891 = vadd.f32 %v4875, 0.2548296
        %v4892 = vadd.f32 %v4876, 0.2548296
        %v4893 = vadd.f32 %v4877, 0.2548296
        %v4894 = vadd.f32 %v4878, 0.2548296
        %v4895 = vadd.f32 %v4879, 0.2548296
        %v4896 = vadd.f32 %v4880, 0.2548296
        %v4897 = vadd.f32 %v4881, 0.2548296
        %v4898 = vmul.f32 %v4882, %v4739
        %v4899 = vmul.f32 %v4883, %v4741
        %v4900 = vmul.f32 %v4884, %v4743
        %v4901 = vmul.f32 %v4885, %v4745
        %v4902 = vmul.f32 %v4886, %v4747
        %v4903 = vmul.f32 %v4887, %v4749
        %v4904 = vmul.f32 %v4888, %v4751
        %v4905 = vmul.f32 %v4889, %v4753
        %v4906 = vmul.f32 %v4890, %v4755
        %v4907 = vmul.f32 %v4891, %v4757
        %v4908 = vmul.f32 %v4892, %v4759
        %v4909 = vmul.f32 %v4893, %v4761
        %v4910 = vmul.f32 %v4894, %v4763
        %v4911 = vmul.f32 %v4895, %v4765
        %v4912 = vmul.f32 %v4896, %v4767
        %v4913 = vmul.f32 %v4897, %v4769
        %v4914 = vsub.f32 0.0, %v4674
        %v4915 = vsub.f32 0.0, %v4675
        %v4916 = vsub.f32 0.0, %v4676
        %v4917 = vsub.f32 0.0, %v4677
        %v4918 = vsub.f32 0.0, %v4678
        %v4919 = vsub.f32 0.0, %v4679
        %v4920 = vsub.f32 0.0, %v4680
        %v4921 = vsub.f32 0.0, %v4681
        %v4922 = vsub.f32 0.0, %v4682
        %v4923 = vsub.f32 0.0, %v4683
        %v4924 = vsub.f32 0.0, %v4684
        %v4925 = vsub.f32 0.0, %v4685
        %v4926 = vsub.f32 0.0, %v4686
        %v4927 = vsub.f32 0.0, %v4687
        %v4928 = vsub.f32 0.0, %v4688
        %v4929 = vsub.f32 0.0, %v4689
        %v4930 = vmul.f32 %v4914, %v4674
        %v4931 = vmul.f32 %v4915, %v4675
        %v4932 = vmul.f32 %v4916, %v4676
        %v4933 = vmul.f32 %v4917, %v4677
        %v4934 = vmul.f32 %v4918, %v4678
        %v4935 = vmul.f32 %v4919, %v4679
        %v4936 = vmul.f32 %v4920, %v4680
        %v4937 = vmul.f32 %v4921, %v4681
        %v4938 = vmul.f32 %v4922, %v4682
        %v4939 = vmul.f32 %v4923, %v4683
        %v4940 = vmul.f32 %v4924, %v4684
        %v4941 = vmul.f32 %v4925, %v4685
        %v4942 = vmul.f32 %v4926, %v4686
        %v4943 = vmul.f32 %v4927, %v4687
        %v4944 = vmul.f32 %v4928, %v4688
        %v4945 = vmul.f32 %v4929, %v4689
        %v4946 = vmul.f32 %v4930, 1.442695
        %v4947 = vpow.pop %v4946
        %v4948 = vmul.f32 %v4931, 1.442695
        %v4949 = vpow.pop %v4948
        %v4950 = vmul.f32 %v4932, 1.442695
        %v4951 = vpow.pop %v4950
        %v4952 = vmul.f32 %v4933, 1.442695
        %v4953 = vpow.pop %v4952
        %v4954 = vmul.f32 %v4934, 1.442695
        %v4955 = vpow.pop %v4954
        %v4956 = vmul.f32 %v4935, 1.442695
        %v4957 = vpow.pop %v4956
        %v4958 = vmul.f32 %v4936, 1.442695
        %v4959 = vpow.pop %v4958
        %v4960 = vmul.f32 %v4937, 1.442695
        %v4961 = vpow.pop %v4960
        %v4962 = vmul.f32 %v4938, 1.442695
        %v4963 = vpow.pop %v4962
        %v4964 = vmul.f32 %v4939, 1.442695
        %v4965 = vpow.pop %v4964
        %v4966 = vmul.f32 %v4940, 1.442695
        %v4967 = vpow.pop %v4966
        %v4968 = vmul.f32 %v4941, 1.442695
        %v4969 = vpow.pop %v4968
        %v4970 = vmul.f32 %v4942, 1.442695
        %v4971 = vpow.pop %v4970
        %v4972 = vmul.f32 %v4943, 1.442695
        %v4973 = vpow.pop %v4972
        %v4974 = vmul.f32 %v4944, 1.442695
        %v4975 = vpow.pop %v4974
        %v4976 = vmul.f32 %v4945, 1.442695
        %v4977 = vpow.pop %v4976
        %v4978 = vmul.f32 %v4898, %v4947
        %v4979 = vmul.f32 %v4899, %v4949
        %v4980 = vmul.f32 %v4900, %v4951
        %v4981 = vmul.f32 %v4901, %v4953
        %v4982 = vmul.f32 %v4902, %v4955
        %v4983 = vmul.f32 %v4903, %v4957
        %v4984 = vmul.f32 %v4904, %v4959
        %v4985 = vmul.f32 %v4905, %v4961
        %v4986 = vmul.f32 %v4906, %v4963
        %v4987 = vmul.f32 %v4907, %v4965
        %v4988 = vmul.f32 %v4908, %v4967
        %v4989 = vmul.f32 %v4909, %v4969
        %v4990 = vmul.f32 %v4910, %v4971
        %v4991 = vmul.f32 %v4911, %v4973
        %v4992 = vmul.f32 %v4912, %v4975
        %v4993 = vmul.f32 %v4913, %v4977
        %v4994 = vsub.f32 1.0, %v4978
        %v4995 = vsub.f32 1.0, %v4979
        %v4996 = vsub.f32 1.0, %v4980
        %v4997 = vsub.f32 1.0, %v4981
        %v4998 = vsub.f32 1.0, %v4982
        %v4999 = vsub.f32 1.0, %v4983
        %v5000 = vsub.f32 1.0, %v4984
        %v5001 = vsub.f32 1.0, %v4985
        %v5002 = vsub.f32 1.0, %v4986
        %v5003 = vsub.f32 1.0, %v4987
        %v5004 = vsub.f32 1.0, %v4988
        %v5005 = vsub.f32 1.0, %v4989
        %v5006 = vsub.f32 1.0, %v4990
        %v5007 = vsub.f32 1.0, %v4991
        %v5008 = vsub.f32 1.0, %v4992
        %v5009 = vsub.f32 1.0, %v4993
        %vm5010 = vcmp.ge.f32.partialorder %v4674, 0.0
        %vm5011 = vcmp.ge.f32.partialorder %v4675, 0.0
        %vm5012 = vcmp.ge.f32.partialorder %v4676, 0.0
        %vm5013 = vcmp.ge.f32.partialorder %v4677, 0.0
        %vm5014 = vcmp.ge.f32.partialorder %v4678, 0.0
        %vm5015 = vcmp.ge.f32.partialorder %v4679, 0.0
        %vm5016 = vcmp.ge.f32.partialorder %v4680, 0.0
        %vm5017 = vcmp.ge.f32.partialorder %v4681, 0.0
        %vm5018 = vcmp.ge.f32.partialorder %v4682, 0.0
        %vm5019 = vcmp.ge.f32.partialorder %v4683, 0.0
        %vm5020 = vcmp.ge.f32.partialorder %v4684, 0.0
        %vm5021 = vcmp.ge.f32.partialorder %v4685, 0.0
        %vm5022 = vcmp.ge.f32.partialorder %v4686, 0.0
        %vm5023 = vcmp.ge.f32.partialorder %v4687, 0.0
        %vm5024 = vcmp.ge.f32.partialorder %v4688, 0.0
        %vm5025 = vcmp.ge.f32.partialorder %v4689, 0.0
        %v5026 = vsub.f32 0.0, %v4994
        %v5027 = vsub.f32 0.0, %v4995
        %v5028 = vsub.f32 0.0, %v4996
        %v5029 = vsub.f32 0.0, %v4997
        %v5030 = vsub.f32 0.0, %v4998
        %v5031 = vsub.f32 0.0, %v4999
        %v5032 = vsub.f32 0.0, %v5000
        %v5033 = vsub.f32 0.0, %v5001
        %v5034 = vsub.f32 0.0, %v5002
        %v5035 = vsub.f32 0.0, %v5003
        %v5036 = vsub.f32 0.0, %v5004
        %v5037 = vsub.f32 0.0, %v5005
        %v5038 = vsub.f32 0.0, %v5006
        %v5039 = vsub.f32 0.0, %v5007
        %v5040 = vsub.f32 0.0, %v5008
        %v5041 = vsub.f32 0.0, %v5009
        %v5042 = vsel %vm5010, %v4994, %v5026
        %v5043 = vsel %vm5011, %v4995, %v5027
        %v5044 = vsel %vm5012, %v4996, %v5028
        %v5045 = vsel %vm5013, %v4997, %v5029
        %v5046 = vsel %vm5014, %v4998, %v5030
        %v5047 = vsel %vm5015, %v4999, %v5031
        %v5048 = vsel %vm5016, %v5000, %v5032
        %v5049 = vsel %vm5017, %v5001, %v5033
        %v5050 = vsel %vm5018, %v5002, %v5034
        %v5051 = vsel %vm5019, %v5003, %v5035
        %v5052 = vsel %vm5020, %v5004, %v5036
        %v5053 = vsel %vm5021, %v5005, %v5037
        %v5054 = vsel %vm5022, %v5006, %v5038
        %v5055 = vsel %vm5023, %v5007, %v5039
        %v5056 = vsel %vm5024, %v5008, %v5040
        %v5057 = vsel %vm5025, %v5009, %v5041
        %v5058 = vmul.f32 %v4603, 0.5
        %v5059 = vmul.f32 %v4605, 0.5
        %v5060 = vmul.f32 %v4656, 0.5
        %v5061 = vmul.f32 %v4658, 0.5
        %v5062 = vmul.f32 %v4607, 0.5
        %v5063 = vmul.f32 %v4609, 0.5
        %v5064 = vmul.f32 %v4660, 0.5
        %v5065 = vmul.f32 %v4662, 0.5
        %v5066 = vmul.f32 %v4613, 0.5
        %v5067 = vmul.f32 %v4615, 0.5
        %v5068 = vmul.f32 %v4666, 0.5
        %v5069 = vmul.f32 %v4668, 0.5
        %v5070 = vmul.f32 %v4617, 0.5
        %v5071 = vmul.f32 %v4619, 0.5
        %v5072 = vmul.f32 %v4670, 0.5
        %v5073 = vmul.f32 %v4672, 0.5
        %v5074 = vadd.f32 %v5042, 1.0
        %v5075 = vadd.f32 %v5043, 1.0
        %v5076 = vadd.f32 %v5044, 1.0
        %v5077 = vadd.f32 %v5045, 1.0
        %v5078 = vadd.f32 %v5046, 1.0
        %v5079 = vadd.f32 %v5047, 1.0
        %v5080 = vadd.f32 %v5048, 1.0
        %v5081 = vadd.f32 %v5049, 1.0
        %v5082 = vadd.f32 %v5050, 1.0
        %v5083 = vadd.f32 %v5051, 1.0
        %v5084 = vadd.f32 %v5052, 1.0
        %v5085 = vadd.f32 %v5053, 1.0
        %v5086 = vadd.f32 %v5054, 1.0
        %v5087 = vadd.f32 %v5055, 1.0
        %v5088 = vadd.f32 %v5056, 1.0
        %v5089 = vadd.f32 %v5057, 1.0
        %v5090 = vmul.f32 %v5058, %v5074
        %v5091 = vmul.f32 %v5059, %v5075
        %v5092 = vmul.f32 %v5060, %v5076
        %v5093 = vmul.f32 %v5061, %v5077
        %v5094 = vmul.f32 %v5062, %v5078
        %v5095 = vmul.f32 %v5063, %v5079
        %v5096 = vmul.f32 %v5064, %v5080
        %v5097 = vmul.f32 %v5065, %v5081
        %v5098 = vmul.f32 %v5066, %v5082
        %v5099 = vmul.f32 %v5067, %v5083
        %v5100 = vmul.f32 %v5068, %v5084
        %v5101 = vmul.f32 %v5069, %v5085
        %v5102 = vmul.f32 %v5070, %v5086
        %v5103 = vmul.f32 %v5071, %v5087
        %v5104 = vmul.f32 %v5072, %v5088
        %v5105 = vmul.f32 %v5073, %v5089
        %v5106 = vpack.c.bf16 %v5094, %v5090
        %v5107 = vpack.c.bf16 %v5095, %v5091
        %v5108 = vpack.c.bf16 %v5096, %v5092
        %v5109 = vpack.c.bf16 %v5097, %v5093
        %v5110 = vpack.c.bf16 %v5102, %v5098
        %v5111 = vpack.c.bf16 %v5103, %v5099
        %v5112 = vpack.c.bf16 %v5104, %v5100
        %v5113 = vpack.c.bf16 %v5105, %v5101
        %v5114 = vld [vmem:[%s551] sm:$0xf]
        %v5115 = vld [vmem:[%s551 + $0x4] sm:$0xf]
        %v5116 = vld [vmem:[%s551 + $0x8] sm:$0xf]
        %v5117 = vld [vmem:[%s551 + $0xc] sm:$0xf]
        %v5118 = vld [vmem:[%s551 + $0x10] sm:$0xf]
        %v5119 = vld [vmem:[%s551 + $0x14] sm:$0xf]
        %v5120 = vld [vmem:[%s551 + $0x18] sm:$0xf]
        %v5121 = vld [vmem:[%s551 + $0x1c] sm:$0xf]
        %v5122 = vld [vmem:[%s551 + $0x20] sm:$0xf]
        %v5123 = vld [vmem:[%s551 + $0x24] sm:$0xf]
        %v5124 = vld [vmem:[%s551 + $0x28] sm:$0xf]
        %v5125 = vld [vmem:[%s551 + $0x2c] sm:$0xf]
        %v5126 = vld [vmem:[%s551 + $0x30] sm:$0xf]
        %v5127 = vld [vmem:[%s551 + $0x34] sm:$0xf]
        %v5128 = vld [vmem:[%s551 + $0x38] sm:$0xf]
        %v5129 = vld [vmem:[%s551 + $0x3c] sm:$0xf]
        %v5130 = vld [vmem:[%s551 + $0x40] sm:$0xf]
        %v5131 = vld [vmem:[%s551 + $0x44] sm:$0xf]
        %v5132 = vld [vmem:[%s551 + $0x48] sm:$0xf]
        %v5133 = vld [vmem:[%s551 + $0x4c] sm:$0xf]
        %v5134 = vld [vmem:[%s551 + $0x50] sm:$0xf]
        %v5135 = vld [vmem:[%s551 + $0x54] sm:$0xf]
        %v5136 = vld [vmem:[%s551 + $0x58] sm:$0xf]
        %v5137 = vld [vmem:[%s551 + $0x5c] sm:$0xf]
        %v5138 = vld [vmem:[%s551 + $0x60] sm:$0xf]
        %v5139 = vld [vmem:[%s551 + $0x64] sm:$0xf]
        %v5140 = vld [vmem:[%s551 + $0x68] sm:$0xf]
        %v5141 = vld [vmem:[%s551 + $0x6c] sm:$0xf]
        %v5142 = vld [vmem:[%s551 + $0x70] sm:$0xf]
        %v5143 = vld [vmem:[%s551 + $0x74] sm:$0xf]
        %v5144 = vld [vmem:[%s551 + $0x78] sm:$0xf]
        %v5145 = vld [vmem:[%s551 + $0x7c] sm:$0xf]
        %v5146 = vld [vmem:[%s551 + $0x80] sm:$0xf]
        %v5147 = vld [vmem:[%s551 + $0x84] sm:$0xf]
        %v5148 = vld [vmem:[%s551 + $0x88] sm:$0xf]
        %v5149 = vld [vmem:[%s551 + $0x8c] sm:$0xf]
        %v5150 = vld [vmem:[%s551 + $0x90] sm:$0xf]
        %v5151 = vld [vmem:[%s551 + $0x94] sm:$0xf]
        %v5152 = vld [vmem:[%s551 + $0x98] sm:$0xf]
        %v5153 = vld [vmem:[%s551 + $0x9c] sm:$0xf]
        %v5154 = vld [vmem:[%s551 + $0xa0] sm:$0xf]
        %v5155 = vld [vmem:[%s551 + $0xa4] sm:$0xf]
        %v5156 = vld [vmem:[%s551 + $0xa8] sm:$0xf]
        %v5157 = vld [vmem:[%s551 + $0xac] sm:$0xf]
        %v5158 = vld [vmem:[%s551 + $0xb0] sm:$0xf]
        %v5159 = vld [vmem:[%s551 + $0xb4] sm:$0xf]
        %v5160 = vld [vmem:[%s551 + $0xb8] sm:$0xf]
        %v5161 = vld [vmem:[%s551 + $0xbc] sm:$0xf]
        %v5162 = vld [vmem:[%s551 + $0xc0] sm:$0xf]
        %v5163 = vld [vmem:[%s551 + $0xc4] sm:$0xf]
        %v5164 = vld [vmem:[%s551 + $0xc8] sm:$0xf]
        %v5165 = vld [vmem:[%s551 + $0xcc] sm:$0xf]
        %v5166 = vld [vmem:[%s551 + $0xd0] sm:$0xf]
        %v5167 = vld [vmem:[%s551 + $0xd4] sm:$0xf]
        %v5168 = vld [vmem:[%s551 + $0xd8] sm:$0xf]
        %v5169 = vld [vmem:[%s551 + $0xdc] sm:$0xf]
        %v5170 = vld [vmem:[%s551 + $0xe0] sm:$0xf]
        %v5171 = vld [vmem:[%s551 + $0xe4] sm:$0xf]
        %v5172 = vld [vmem:[%s551 + $0xe8] sm:$0xf]
        %v5173 = vld [vmem:[%s551 + $0xec] sm:$0xf]
        %v5174 = vld [vmem:[%s551 + $0xf0] sm:$0xf]
        %v5175 = vld [vmem:[%s551 + $0xf4] sm:$0xf]
        %v5176 = vld [vmem:[%s551 + $0xf8] sm:$0xf]
        %v5177 = vld [vmem:[%s551 + $0xfc] sm:$0xf]
        %v5178 = vld [vmem:[%s654] sm:$0x1]
        %v5180 = vlaneseq
        %v5181 = vshrl.u32 %v5180, 7
        %v5182 = vsub.s32 0, %v5181
        %v5183 = vrot.slane %v5178, %v5182
        %v5249 = vunpack.c.l.b16 %v5114
        %v5250 = vunpack.c.l.b16 %v5115
        %v5251 = vunpack.c.l.b16 %v5116
        %v5252 = vunpack.c.l.b16 %v5117
        %v5253 = vunpack.c.l.b16 %v5118
        %v5254 = vunpack.c.l.b16 %v5119
        %v5255 = vunpack.c.l.b16 %v5120
        %v5256 = vunpack.c.l.b16 %v5121
        %v5257 = vunpack.c.l.b16 %v5122
        %v5258 = vunpack.c.l.b16 %v5123
        %v5259 = vunpack.c.l.b16 %v5124
        %v5260 = vunpack.c.l.b16 %v5125
        %v5261 = vunpack.c.l.b16 %v5126
        %v5262 = vunpack.c.l.b16 %v5127
        %v5263 = vunpack.c.l.b16 %v5128
        %v5264 = vunpack.c.l.b16 %v5129
        %v5265 = vunpack.c.l.b16 %v5130
        %v5266 = vunpack.c.l.b16 %v5131
        %v5267 = vunpack.c.l.b16 %v5132
        %v5268 = vunpack.c.l.b16 %v5133
        %v5269 = vunpack.c.l.b16 %v5134
        %v5270 = vunpack.c.l.b16 %v5135
        %v5271 = vunpack.c.l.b16 %v5136
        %v5272 = vunpack.c.l.b16 %v5137
        %v5273 = vunpack.c.l.b16 %v5138
        %v5274 = vunpack.c.l.b16 %v5139
        %v5275 = vunpack.c.l.b16 %v5140
        %v5276 = vunpack.c.l.b16 %v5141
        %v5277 = vunpack.c.l.b16 %v5142
        %v5278 = vunpack.c.l.b16 %v5143
        %v5279 = vunpack.c.l.b16 %v5144
        %v5280 = vunpack.c.l.b16 %v5145
        %v5281 = vunpack.c.l.b16 %v5146
        %v5282 = vunpack.c.l.b16 %v5147
        %v5283 = vunpack.c.l.b16 %v5148
        %v5284 = vunpack.c.l.b16 %v5149
        %v5285 = vunpack.c.l.b16 %v5150
        %v5286 = vunpack.c.l.b16 %v5151
        %v5287 = vunpack.c.l.b16 %v5152
        %v5288 = vunpack.c.l.b16 %v5153
        %v5289 = vunpack.c.l.b16 %v5154
        %v5290 = vunpack.c.l.b16 %v5155
        %v5291 = vunpack.c.l.b16 %v5156
        %v5292 = vunpack.c.l.b16 %v5157
        %v5293 = vunpack.c.l.b16 %v5158
        %v5294 = vunpack.c.l.b16 %v5159
        %v5295 = vunpack.c.l.b16 %v5160
        %v5296 = vunpack.c.l.b16 %v5161
        %v5297 = vunpack.c.l.b16 %v5162
        %v5298 = vunpack.c.l.b16 %v5163
        %v5299 = vunpack.c.l.b16 %v5164
        %v5300 = vunpack.c.l.b16 %v5165
        %v5301 = vunpack.c.l.b16 %v5166
        %v5302 = vunpack.c.l.b16 %v5167
        %v5303 = vunpack.c.l.b16 %v5168
        %v5304 = vunpack.c.l.b16 %v5169
        %v5305 = vunpack.c.l.b16 %v5170
        %v5306 = vunpack.c.l.b16 %v5171
        %v5307 = vunpack.c.l.b16 %v5172
        %v5308 = vunpack.c.l.b16 %v5173
        %v5309 = vunpack.c.l.b16 %v5174
        %v5310 = vunpack.c.l.b16 %v5175
        %v5311 = vunpack.c.l.b16 %v5176
        %v5312 = vunpack.c.l.b16 %v5177
        %v5313 = vpack.c.b16 %v5250, %v5249
        %v5314 = vpack.c.b16 %v5252, %v5251
        %v5315 = vpack.c.b16 %v5254, %v5253
        %v5316 = vpack.c.b16 %v5256, %v5255
        %v5317 = vpack.c.b16 %v5258, %v5257
        %v5318 = vpack.c.b16 %v5260, %v5259
        %v5319 = vpack.c.b16 %v5262, %v5261
        %v5320 = vpack.c.b16 %v5264, %v5263
        %v5321 = vpack.c.b16 %v5266, %v5265
        %v5322 = vpack.c.b16 %v5268, %v5267
        %v5323 = vpack.c.b16 %v5270, %v5269
        %v5324 = vpack.c.b16 %v5272, %v5271
        %v5325 = vpack.c.b16 %v5274, %v5273
        %v5326 = vpack.c.b16 %v5276, %v5275
        %v5327 = vpack.c.b16 %v5278, %v5277
        %v5328 = vpack.c.b16 %v5280, %v5279
        %v5329 = vpack.c.b16 %v5282, %v5281
        %v5330 = vpack.c.b16 %v5284, %v5283
        %v5331 = vpack.c.b16 %v5286, %v5285
        %v5332 = vpack.c.b16 %v5288, %v5287
        %v5333 = vpack.c.b16 %v5290, %v5289
        %v5334 = vpack.c.b16 %v5292, %v5291
        %v5335 = vpack.c.b16 %v5294, %v5293
        %v5336 = vpack.c.b16 %v5296, %v5295
        %v5337 = vpack.c.b16 %v5298, %v5297
        %v5338 = vpack.c.b16 %v5300, %v5299
        %v5339 = vpack.c.b16 %v5302, %v5301
        %v5340 = vpack.c.b16 %v5304, %v5303
        %v5341 = vpack.c.b16 %v5306, %v5305
        %v5342 = vpack.c.b16 %v5308, %v5307
        %v5343 = vpack.c.b16 %v5310, %v5309
        %v5344 = vpack.c.b16 %v5312, %v5311
        %5377 = vmatprep.subr.bf16.mxu0 0
        %5378 = vmatpush1.bf16.msra.mxu0 %v5320
        %5379 = vmatprep.subr.bf16.mxu0 0
        %5380 = vmatpush1.bf16.msra.mxu0 %v5319
        %5381 = vmatprep.subr.bf16.mxu0 0
        %5382 = vmatpush1.bf16.msra.mxu0 %v5318
        %5383 = vmatprep.subr.bf16.mxu0 0
        %5384 = vmatpush1.bf16.msra.mxu0 %v5317
        %5385 = vmatprep.subr.bf16.mxu0 0
        %5386 = vmatpush1.bf16.msra.mxu0 %v5316
        %5387 = vmatprep.subr.bf16.mxu0 0
        %5388 = vmatpush1.bf16.msra.mxu0 %v5315
        %5389 = vmatprep.subr.bf16.mxu0 0
        %5390 = vmatpush1.bf16.msra.mxu0 %v5314
        %5391 = vmatprep.subr.bf16.mxu0 0
        %5392 = vmatpush1.bf16.msra.mxu0 %v5313
        %5393 = vmatprep.subr.bf16.mxu0 0
        %5394 = vmatpush2.bf16.msra.mxu0 %v5328
        %5395 = vmatprep.subr.bf16.mxu0 0
        %5396 = vmatpush2.bf16.msra.mxu0 %v5327
        %5397 = vmatprep.subr.bf16.mxu0 0
        %5398 = vmatpush2.bf16.msra.mxu0 %v5326
        %5399 = vmatprep.subr.bf16.mxu0 0
        %5400 = vmatpush2.bf16.msra.mxu0 %v5325
        %5401 = vmatprep.subr.bf16.mxu0 0
        %5402 = vmatpush2.bf16.msra.mxu0 %v5324
        %5403 = vmatprep.subr.bf16.mxu0 0
        %5404 = vmatpush2.bf16.msra.mxu0 %v5323
        %5405 = vmatprep.subr.bf16.mxu0 0
        %5406 = vmatpush2.bf16.msra.mxu0 %v5322
        %5407 = vmatprep.subr.bf16.mxu0 0
        %5408 = vmatpush2.bf16.msra.mxu0 %v5321
        %5409 = vmatprep.mubr.bf16.mxu0 %v5107
        %5410 = vmatmul.mubr.bf16.gmra.mxu0 %v5106
        %v5411 = vpop.f32.mrf.mxu0
        %v5412 = vadd.f32 %v5183, %v5411
        %v5413 = vpop.f32.mrf.mxu0
        %v5414 = vpop.f32.mrf.mxu0
        %v5415 = vadd.f32 %v5183, %v5414
        %v5416 = vpop.f32.mrf.mxu0
        %5417 = vmatprep.mubr.bf16.mxu0 %v5111
        %5418 = vmatmul.mubr.bf16.gmra.mxu0 %v5110
        %v5419 = vpop.f32.mrf.mxu0
        %v5420 = vadd.f32 %v5183, %v5419
        %v5421 = vpop.f32.mrf.mxu0
        %v5422 = vpop.f32.mrf.mxu0
        %v5423 = vadd.f32 %v5183, %v5422
        %v5424 = vpop.f32.mrf.mxu0
        %5425 = vdwg.mxu0
        %5426 = vmatprep.subr.bf16.mxu0 0
        %5427 = vmatpush1.bf16.msra.mxu0 %v5336
        %5428 = vmatprep.subr.bf16.mxu0 0
        %5429 = vmatpush1.bf16.msra.mxu0 %v5335
        %5430 = vmatprep.subr.bf16.mxu0 0
        %5431 = vmatpush1.bf16.msra.mxu0 %v5334
        %5432 = vmatprep.subr.bf16.mxu0 0
        %5433 = vmatpush1.bf16.msra.mxu0 %v5333
        %5434 = vmatprep.subr.bf16.mxu0 0
        %5435 = vmatpush1.bf16.msra.mxu0 %v5332
        %5436 = vmatprep.subr.bf16.mxu0 0
        %5437 = vmatpush1.bf16.msra.mxu0 %v5331
        %5438 = vmatprep.subr.bf16.mxu0 0
        %5439 = vmatpush1.bf16.msra.mxu0 %v5330
        %5440 = vmatprep.subr.bf16.mxu0 0
        %5441 = vmatpush1.bf16.msra.mxu0 %v5329
        %5442 = vmatprep.subr.bf16.mxu0 0
        %5443 = vmatpush2.bf16.msra.mxu0 %v5344
        %5444 = vmatprep.subr.bf16.mxu0 0
        %5445 = vmatpush2.bf16.msra.mxu0 %v5343
        %5446 = vmatprep.subr.bf16.mxu0 0
        %5447 = vmatpush2.bf16.msra.mxu0 %v5342
        %5448 = vmatprep.subr.bf16.mxu0 0
        %5449 = vmatpush2.bf16.msra.mxu0 %v5341
        %5450 = vmatprep.subr.bf16.mxu0 0
        %5451 = vmatpush2.bf16.msra.mxu0 %v5340
        %5452 = vmatprep.subr.bf16.mxu0 0
        %5453 = vmatpush2.bf16.msra.mxu0 %v5339
        %5454 = vmatprep.subr.bf16.mxu0 0
        %5455 = vmatpush2.bf16.msra.mxu0 %v5338
        %5456 = vmatprep.subr.bf16.mxu0 0
        %5457 = vmatpush2.bf16.msra.mxu0 %v5337
        %5458 = vmatprep.mubr.bf16.mxu0 %v5109
        %5459 = vmatmul.mubr.bf16.gmra.mxu0 %v5108
        %v5460 = vpop.f32.mrf.mxu0
        %v5461 = vadd.f32 %v5412, %v5460
        %v5462 = vpop.f32.mrf.mxu0
        %v5463 = vpop.f32.mrf.mxu0
        %v5464 = vadd.f32 %v5415, %v5463
        %v5465 = vpop.f32.mrf.mxu0
        %5466 = vmatprep.mubr.bf16.mxu0 %v5113
        %5467 = vmatmul.mubr.bf16.gmra.mxu0 %v5112
        %v5468 = vpop.f32.mrf.mxu0
        %v5469 = vadd.f32 %v5420, %v5468
        %v5470 = vpop.f32.mrf.mxu0
        %v5471 = vpop.f32.mrf.mxu0
        %v5472 = vadd.f32 %v5423, %v5471
        %v5473 = vpop.f32.mrf.mxu0
        %5474 = vdwg.mxu0
        %v5475 = vadd.f32 %v5461, %v4348
        %v5476 = vadd.f32 %v5464, %v4349
        %v5477 = vadd.f32 %v5469, %v4350
        %v5478 = vadd.f32 %v5472, %v4351
        %v5479 = vld [vmem:[%s657] sm:$0x1]
        %v5480 = vld [vmem:[%s660] sm:$0x1]
        %v5481 = vmul.f32 %v5475, %v5475
        %v5482 = vmul.f32 %v5476, %v5476
        %v5483 = vmul.f32 %v5477, %v5477
        %v5484 = vmul.f32 %v5478, %v5478
        %5485 = vadd.xlane.f32.xlu0 %v5481
        %v5486 = vpop.xlane.xlu0 %5485
        %5487 = vadd.xlane.f32.xlu0 %v5482
        %v5488 = vpop.xlane.xlu0 %5487
        %5489 = vadd.xlane.f32.xlu0 %v5483
        %v5490 = vpop.xlane.xlu0 %5489
        %5491 = vadd.xlane.f32.xlu0 %v5484
        %v5492 = vpop.xlane.xlu0 %5491
        %v5493 = vmul.f32 %v5486, %v4287
        %v5494 = vmul.f32 %v5488, %v4287
        %v5495 = vmul.f32 %v5490, %v4287
        %v5496 = vmul.f32 %v5492, %v4287
        %v5497 = vrsqrt.pop %v5493
        %v5498 = vmul.f32 %v5493, %v5497
        %vm5499 = vcmp.eq.f32.partialorder %v5493, inf
        %v5500 = vsel %vm5499, %v5493, %v5498
        %vm5501 = vcmp.eq.f32.partialorder %v5493, 0.0
        %v5502 = vand.u32 %v5493, 2147483648
        %v5503 = vsel %vm5501, %v5502, %v5500
        %v5504 = vrsqrt.pop %v5494
        %v5505 = vmul.f32 %v5494, %v5504
        %vm5506 = vcmp.eq.f32.partialorder %v5494, inf
        %v5507 = vsel %vm5506, %v5494, %v5505
        %vm5508 = vcmp.eq.f32.partialorder %v5494, 0.0
        %v5509 = vand.u32 %v5494, 2147483648
        %v5510 = vsel %vm5508, %v5509, %v5507
        %v5511 = vrsqrt.pop %v5495
        %v5512 = vmul.f32 %v5495, %v5511
        %vm5513 = vcmp.eq.f32.partialorder %v5495, inf
        %v5514 = vsel %vm5513, %v5495, %v5512
        %vm5515 = vcmp.eq.f32.partialorder %v5495, 0.0
        %v5516 = vand.u32 %v5495, 2147483648
        %v5517 = vsel %vm5515, %v5516, %v5514
        %v5518 = vrsqrt.pop %v5496
        %v5519 = vmul.f32 %v5496, %v5518
        %vm5520 = vcmp.eq.f32.partialorder %v5496, inf
        %v5521 = vsel %vm5520, %v5496, %v5519
        %vm5522 = vcmp.eq.f32.partialorder %v5496, 0.0
        %v5523 = vand.u32 %v5496, 2147483648
        %v5524 = vsel %vm5522, %v5523, %v5521
        %v5526 = vlaneseq
        %v5527 = vshrl.u32 %v5526, 7
        %v5528 = vsub.s32 0, %v5527
        %v5529 = vrot.slane %v5479, %v5528
        %v5531 = vmul.f32 %v5529, %v5475
        %v5532 = vmul.f32 %v5529, %v5476
        %v5533 = vmul.f32 %v5529, %v5477
        %v5534 = vmul.f32 %v5529, %v5478
        %v5535 = vadd.f32 %v5503, 1e-08
        %v5536 = vadd.f32 %v5510, 1e-08
        %v5537 = vadd.f32 %v5517, 1e-08
        %v5538 = vadd.f32 %v5524, 1e-08
        %v5539 = vrcp.pop %v5535
        %v5540 = vmul.f32 %v5531, %v5539
        %v5541 = vrcp.pop %v5536
        %v5542 = vmul.f32 %v5532, %v5541
        %v5543 = vrcp.pop %v5537
        %v5544 = vmul.f32 %v5533, %v5543
        %v5545 = vrcp.pop %v5538
        %v5546 = vmul.f32 %v5534, %v5545
        %v5548 = vlaneseq
        %v5549 = vshrl.u32 %v5548, 7
        %v5550 = vsub.s32 0, %v5549
        %v5551 = vrot.slane %v5480, %v5550
        %v5553 = vadd.f32 %v5540, %v5551
        %v5554 = vadd.f32 %v5542, %v5551
        %v5555 = vadd.f32 %v5544, %v5551
        %v5556 = vadd.f32 %v5546, %v5551
        %5557 = vst [vmem:[%s13] sm:$0xff] %v5553
        %5558 = vst [vmem:[%s13 + $0x8] sm:$0xff] %v5554
        %5559 = vst [vmem:[%s13 + $0x10] sm:$0xff] %v5555
        %5560 = vst [vmem:[%s13 + $0x18] sm:$0xff] %v5556
        // Predicated region
        $region89: #{forward.2} parent=71 // pred_check
          %p5561 = pneg %p376
        $region90: #{forward.2} parent=71 // pred_check_branch
          %5563 = sbr.rel (%p5561) target = $region92
        $region91: #{forward.2} parent=71 // pred_region
          _
        $region92: #{forward.2} parent=71 // pred_fallthru
          _
        // Predicated region
        $region93: #{forward.2} parent=71 // pred_check
          %p5564 = pneg %p376
        $region94: #{forward.2} parent=71 // pred_check_branch
          %5566 = sbr.rel (%p5564) target = $region96
        $region95: #{forward.2} parent=71 // pred_region
          _
        $region96: #{forward.2} parent=71 // pred_fallthru
          _
      $region72: #{forward.2} parent=5 // pred_fallthru
        _
      %p5567 = scmp.le.s32.totalorder 2, %s25
      // Predicated region
      $region97: #{forward.2} parent=5 // pred_check
        %p5568 = pneg %p5567
      $region98: #{forward.2} parent=5 // pred_check_branch
        %5570 = sbr.rel (%p5568) target = $region100
      $region99: #{forward.2} parent=5 // pred_region
        %s5571 = ssub.s32 %s25, 2
      $region100: #{forward.2} parent=5 // pred_fallthru
        _
    $region6: #{forward.2} parent=1 // loop_footer
      %s29 = sadd.s32 1, %s25
    $region7: #{forward.2} parent=1 // loop_footer_branch
      %24 = sbr.rel target = $region3
    $region8: #{forward.2} parent=1 // loop_exit
      _
    %5572 = vsyncpa [#allocation4], 1
    %s5573 = scalar_lea.sflag [#allocation4], 1
    %5574 = vsyncpa %s5573, 1
    %5575 = vsyncpa [#allocation6], 1
    %s5576 = scalar_lea.sflag [#allocation6], 1
    %5577 = vsyncpa %s5576, 1

</llo_original>
